<compile_context>
chip_gen: v5e
topology: v5e:2x2
jax: 0.10.0
libtpu: 0.0.40
codegen_flags: <defaults>
</compile_context>

<pallas_src>
import functools

import numpy as np
import jax
import jax.numpy as jnp
from jax.experimental import pallas as pl
from jax.experimental.pallas import tpu as pltpu

_EPS = 1e-5
_LEAK = 0.2


def _mm(a, b):
    # f32 accumulation on the MXU; default precision (same numerics policy as the
    # previously-accepted version).
    return jnp.dot(a, b, preferred_element_type=jnp.float32)


# --------------------------------------------------------------------------- fused kernel
def _disc_kernel(cfg, *refs):
    """Whole NLayerDiscriminator (optionally preceded by cumulative avg-pools), one sample."""
    out_ref = refs[-1]
    it = iter(refs[:-1])

    a = next(it)[0]                                   # (H, W*C) activation, channels on lanes

    # cumulative AvgPool2d(3, s=2, p=1, count_include_pad=False) for scale index > 0
    for _ in range(cfg["n_pool"]):
        rp = next(it)                                 # (H_out, H_in)   row pooling (1/rows)
        cp = next(it)                                 # (Win*C, Wout*C) column pooling band
        a = _mm(rp[...], _mm(a, cp[...]))

    # conv stack: Conv(k4, p1) [+bias] [+InstanceNorm] [+LeakyReLU(0.2)]
    for lcfg in cfg["layers"]:
        sel = next(it)                                # (4, H_out, H_in)       vertical tap selectors
        bw = next(it)                                 # (4, Win*Cin, Wout*Cout) band weights
        acc = None
        for t in range(4):                            # unrolled vertical taps
            y = _mm(sel[t], _mm(a, bw[t]))
            acc = y if acc is None else acc + y
        if lcfg["bias"]:
            acc = acc + next(it)[...]                 # (1, Wout*Cout), broadcast over rows
        if lcfg["norm"]:
            sc = next(it)                             # (Wout*Cout, Cout) lane -> channel gather
            sct = next(it)                            # (Cout, Wout*Cout) channel -> lane scatter
            inv = 1.0 / float(lcfg["hw"])
            rowsum = jnp.sum(acc, axis=0, keepdims=True)             # (1, W*C)
            mean_b = _mm(_mm(rowsum, sc[...]) * inv, sct[...])       # per-channel mean, rebroadcast
            cen = acc - mean_b
            sqsum = jnp.sum(cen * cen, axis=0, keepdims=True)
            var_c = _mm(sqsum, sc[...]) * inv                        # (1, C) biased variance
            acc = cen * _mm(jax.lax.rsqrt(var_c + _EPS), sct[...])
        if lcfg["act"]:
            acc = jnp.where(acc >= 0.0, acc, _LEAK * acc)            # LeakyReLU(0.2)
        a = acc

    out_ref[0] = a.astype(out_ref.dtype)


# --------------------------------------------------------------------------- host-side factorization
def _conv_mats(w4, stride, h_in, w_in):
    """Factor a k=4, pad=1 Conv2d into 4 (row-selector, band-weight) matrix pairs."""
    _, _, cin, cout = w4.shape
    h_out = (h_in + 2 - 4) // stride + 1
    w_out = (w_in + 2 - 4) // stride + 1
    sel = np.zeros((4, h_out, h_in), np.float32)
    for d in range(4):
        for i in range(h_out):
            j = stride * i + d - 1
            if 0 <= j < h_in:
                sel[d, i, j] = 1.0
    place = np.zeros((4, w_in, w_out), np.float32)    # horizontal tap placement (stride + pad)
    for dj in range(4):
        for ow in range(w_out):
            w = stride * ow + dj - 1
            if 0 <= w < w_in:
                place[dj, w, ow] = 1.0
    band = jnp.einsum("jwp,tjcd->twcpd", jnp.asarray(place), w4)
    band = band.reshape(4, w_in * cin, w_out * cout)
    return jnp.asarray(sel), band, h_out, w_out


def _pool_mats(h_in, w_in, c):
    """AvgPool2d(3, stride=2, padding=1, count_include_pad=False) as row/col matrices."""
    h_out = (h_in + 2 - 3) // 2 + 1
    w_out = (w_in + 2 - 3) // 2 + 1
    rp = np.zeros((h_out, h_in), np.float32)
    for i in range(h_out):
        rows = [r for r in (2 * i - 1, 2 * i, 2 * i + 1) if 0 <= r < h_in]
        for r in rows:
            rp[i, r] = 1.0 / len(rows)
    cp = np.zeros((w_in * c, w_out * c), np.float32)
    for ow in range(w_out):
        cols = [w for w in (2 * ow - 1, 2 * ow, 2 * ow + 1) if 0 <= w < w_in]
        for w in cols:
            cp[w * c:w * c + c, ow * c:ow * c + c] += np.eye(c, dtype=np.float32) / len(cols)
    return jnp.asarray(rp), jnp.asarray(cp), h_out, w_out


def _chan_mats(w, c):
    sc = np.tile(np.eye(c, dtype=np.float32), (w, 1))   # (w*c, c): lane (w*c + cc) -> channel cc
    return jnp.asarray(sc), jnp.asarray(sc.T)


def _const_spec(shape):
    nd = len(shape)
    return pl.BlockSpec(shape, lambda n: (0,) * nd)


# --------------------------------------------------------------------------- wrappers
_LAYER_DEFS = (("w1", "b1", 2, False, True),   # Conv(4->8,  s2) + LeakyReLU
               ("w2", None, 2, True, True),    # Conv(8->16, s2) + InstanceNorm + LeakyReLU
               ("w3", None, 1, True, True),    # Conv(16->32,s1) + InstanceNorm + LeakyReLU
               ("w4", "b4", 1, False, False))  # Conv(32->1, s1)


def nlayer_discriminator_fused(x_nhwc, params, n_pool):
    """One PatchGAN discriminator, fully fused in one pallas_call.

    `n_pool` cumulative AvgPool2d(3,2,1) stages (the multi-scale downsampling for scale
    index > 0) are applied to the input inside the same kernel.
    """
    n, h, w, c = x_nhwc.shape
    operands = [x_nhwc.reshape(n, h, w * c)]
    in_specs = [pl.BlockSpec((1, h, w * c), lambda i: (i, 0, 0))]
    layer_cfgs = []

    for _ in range(n_pool):
        rp, cp, h, w = _pool_mats(h, w, c)
        operands += [rp, cp]
        in_specs += [_const_spec(rp.shape), _const_spec(cp.shape)]

    for wk, bk, stride, do_norm, do_act in _LAYER_DEFS:
        w4 = params[wk]
        cout = w4.shape[-1]
        sel, band, h, w = _conv_mats(w4, stride, h, w)
        operands += [sel, band]
        in_specs += [_const_spec(sel.shape), _const_spec(band.shape)]
        if bk is not None:
            bias_b = jnp.tile(params[bk], w)[None, :]          # (1, w*cout)
            operands.append(bias_b)
            in_specs.append(_const_spec(bias_b.shape))
        if do_norm:
            sc, sct = _chan_mats(w, cout)
            operands += [sc, sct]
            in_specs += [_const_spec(sc.shape), _const_spec(sct.shape)]
        layer_cfgs.append({"bias": bk is not None, "norm": do_norm,
                           "act": do_act, "hw": h * w})
        c = cout

    cfg = {"n_pool": n_pool, "layers": layer_cfgs}
    out = pl.pallas_call(
        functools.partial(_disc_kernel, cfg),
        out_shape=jax.ShapeDtypeStruct((n, h, w * c), jnp.float32),
        grid=(n,),
        in_specs=in_specs,
        out_specs=pl.BlockSpec((1, h, w * c), lambda i: (i, 0, 0)),
        compiler_params=pltpu.CompilerParams(dimension_semantics=("parallel",)),
    )(*operands)
    return out.reshape(n, h, w, c)


def multiscale_discriminator(x_nchw, params_list):
    """Matches MultiScaleDiscriminator.forward: [[D0(x)], [D1(pool(x))], ...], NCHW in/out."""
    x_nhwc = jnp.transpose(x_nchw, (0, 2, 3, 1))
    result = []
    for i, p in enumerate(params_list):
        y = nlayer_discriminator_fused(x_nhwc, p, n_pool=i)
        result.append([jnp.transpose(y, (0, 3, 1, 2))])
    return result


def init_params(key, input_nc, ndf, num_D):
    """Deterministic init: weights N(0, 0.02) in (kh, kw, Cin, Cout) layout, biases zero."""
    params = []
    for _ in range(num_D):
        keys = jax.random.split(key, 5)
        key = keys[0]
        p = {
            "w1": 0.02 * jax.random.normal(keys[1], (4, 4, input_nc, ndf), jnp.float32),
            "b1": jnp.zeros((ndf,), jnp.float32),
            "w2": 0.02 * jax.random.normal(keys[2], (4, 4, ndf, ndf * 2), jnp.float32),
            "w3": 0.02 * jax.random.normal(keys[3], (4, 4, ndf * 2, ndf * 4), jnp.float32),
            "w4": 0.02 * jax.random.normal(keys[4], (4, 4, ndf * 4, 1), jnp.float32),
            "b4": jnp.zeros((1,), jnp.float32),
        }
        params.append(p)
    return params


# TODO(synk): spectral_norm (opt.use_sn=True) path not implemented; this is the
# norm='instance', use_sn=False configuration of the module.

if __name__ == "__main__":
    INPUT_NC, NDF, NUM_D = 4, 8, 2
    key = jax.random.PRNGKey(0)
    key, xk = jax.random.split(key)
    # NCHW input, same axis convention as the PyTorch module.
    x = jax.random.normal(xk, (2, INPUT_NC, 32, 32), jnp.float32)
    params = init_params(key, INPUT_NC, NDF, NUM_D)

    outs = multiscale_discriminator(x, params)
    for branch in outs:
        for t in branch:
            jax.block_until_ready(t)

    # Expected shapes: D0 -> (2,1,6,6); D1 (after avgpool to 16x16) -> (2,1,2,2)
    assert outs[0][0].shape == (2, 1, 6, 6), outs[0][0].shape
    assert outs[1][0].shape == (2, 1, 2, 2), outs[1][0].shape
    print("KERNEL_OK")
</pallas_src>

<mosaic_0001>
module attributes {stable_mosaic.version = 11 : i64} {
  func.func @_disc_kernel(%arg0: i32, %arg1: memref<1x32x128xf32, #tpu.memory_space<vmem>>, %arg2: memref<4x16x32xf32, #tpu.memory_space<vmem>>, %arg3: memref<4x128x128xf32, #tpu.memory_space<vmem>>, %arg4: memref<1x128xf32, #tpu.memory_space<vmem>>, %arg5: memref<4x8x16xf32, #tpu.memory_space<vmem>>, %arg6: memref<4x128x128xf32, #tpu.memory_space<vmem>>, %arg7: memref<128x16xf32, #tpu.memory_space<vmem>>, %arg8: memref<16x128xf32, #tpu.memory_space<vmem>>, %arg9: memref<4x7x8xf32, #tpu.memory_space<vmem>>, %arg10: memref<4x128x224xf32, #tpu.memory_space<vmem>>, %arg11: memref<224x32xf32, #tpu.memory_space<vmem>>, %arg12: memref<32x224xf32, #tpu.memory_space<vmem>>, %arg13: memref<4x6x7xf32, #tpu.memory_space<vmem>>, %arg14: memref<4x224x6xf32, #tpu.memory_space<vmem>>, %arg15: memref<1x6xf32, #tpu.memory_space<vmem>>, %arg16: memref<1x6x6xf32, #tpu.memory_space<vmem>>) attributes {dimension_semantics = [#tpu.dimension_semantics<parallel>], iteration_bounds = array<i64: 2>, scalar_prefetch = 0 : i64, scratch_operands = 0 : i64, tpu.core_type = #tpu.core_type<tc>, window_params = [{transform_indices = @transform_0, window_bounds = array<i64: 1, 32, 128>}, {pipeline_mode = #tpu.pipeline_mode<synchronous>, transform_indices = @transform_1, window_bounds = array<i64: 4, 16, 32>}, {pipeline_mode = #tpu.pipeline_mode<synchronous>, transform_indices = @transform_2, window_bounds = array<i64: 4, 128, 128>}, {pipeline_mode = #tpu.pipeline_mode<synchronous>, transform_indices = @transform_3, window_bounds = array<i64: 1, 128>}, {pipeline_mode = #tpu.pipeline_mode<synchronous>, transform_indices = @transform_4, window_bounds = array<i64: 4, 8, 16>}, {pipeline_mode = #tpu.pipeline_mode<synchronous>, transform_indices = @transform_5, window_bounds = array<i64: 4, 128, 128>}, {pipeline_mode = #tpu.pipeline_mode<synchronous>, transform_indices = @transform_6, window_bounds = array<i64: 128, 16>}, {pipeline_mode = #tpu.pipeline_mode<synchronous>, transform_indices = @transform_7, window_bounds = array<i64: 16, 128>}, {pipeline_mode = #tpu.pipeline_mode<synchronous>, transform_indices = @transform_8, window_bounds = array<i64: 4, 7, 8>}, {pipeline_mode = #tpu.pipeline_mode<synchronous>, transform_indices = @transform_9, window_bounds = array<i64: 4, 128, 224>}, {pipeline_mode = #tpu.pipeline_mode<synchronous>, transform_indices = @transform_10, window_bounds = array<i64: 224, 32>}, {pipeline_mode = #tpu.pipeline_mode<synchronous>, transform_indices = @transform_11, window_bounds = array<i64: 32, 224>}, {pipeline_mode = #tpu.pipeline_mode<synchronous>, transform_indices = @transform_12, window_bounds = array<i64: 4, 6, 7>}, {pipeline_mode = #tpu.pipeline_mode<synchronous>, transform_indices = @transform_13, window_bounds = array<i64: 4, 224, 6>}, {pipeline_mode = #tpu.pipeline_mode<synchronous>, transform_indices = @transform_14, window_bounds = array<i64: 1, 6>}, {transform_indices = @transform_15, window_bounds = array<i64: 1, 6, 6>}]} {
    %c0 = arith.constant 0 : index
    %c0_0 = arith.constant 0 : index
    %c0_1 = arith.constant 0 : index
    %0 = vector.load %arg1[%c0, %c0_0, %c0_1] : memref<1x32x128xf32, #tpu.memory_space<vmem>>, vector<1x32x128xf32>
    %1 = vector.shape_cast %0 : vector<1x32x128xf32> to vector<32x128xf32>
    %c0_2 = arith.constant 0 : index
    %c0_3 = arith.constant 0 : index
    %c0_4 = arith.constant 0 : index
    %2 = vector.load %arg2[%c0_2, %c0_3, %c0_4] : memref<4x16x32xf32, #tpu.memory_space<vmem>>, vector<1x16x32xf32>
    %3 = vector.shape_cast %2 : vector<1x16x32xf32> to vector<16x32xf32>
    %c0_5 = arith.constant 0 : index
    %c0_6 = arith.constant 0 : index
    %c0_7 = arith.constant 0 : index
    %4 = vector.load %arg3[%c0_5, %c0_6, %c0_7] : memref<4x128x128xf32, #tpu.memory_space<vmem>>, vector<1x128x128xf32>
    %5 = vector.shape_cast %4 : vector<1x128x128xf32> to vector<128x128xf32>
    %cst = arith.constant dense<0.000000e+00> : vector<32x128xf32>
    %6 = tpu.matmul %1, %5, %cst {dimension_numbers = #tpu.dot_dimension_numbers<[1], [0], [0], [1], [0, 0, 1, 1], [], []>} : vector<32x128xf32>, vector<128x128xf32>, vector<32x128xf32> -> vector<32x128xf32>
    %cst_8 = arith.constant dense<0.000000e+00> : vector<16x128xf32>
    %7 = tpu.matmul %3, %6, %cst_8 {dimension_numbers = #tpu.dot_dimension_numbers<[1], [0], [0], [1], [0, 0, 1, 1], [], []>} : vector<16x32xf32>, vector<32x128xf32>, vector<16x128xf32> -> vector<16x128xf32>
    %c1 = arith.constant 1 : index
    %c0_9 = arith.constant 0 : index
    %c0_10 = arith.constant 0 : index
    %8 = vector.load %arg2[%c1, %c0_9, %c0_10] : memref<4x16x32xf32, #tpu.memory_space<vmem>>, vector<1x16x32xf32>
    %9 = vector.shape_cast %8 : vector<1x16x32xf32> to vector<16x32xf32>
    %c1_11 = arith.constant 1 : index
    %c0_12 = arith.constant 0 : index
    %c0_13 = arith.constant 0 : index
    %10 = vector.load %arg3[%c1_11, %c0_12, %c0_13] : memref<4x128x128xf32, #tpu.memory_space<vmem>>, vector<1x128x128xf32>
    %11 = vector.shape_cast %10 : vector<1x128x128xf32> to vector<128x128xf32>
    %cst_14 = arith.constant dense<0.000000e+00> : vector<32x128xf32>
    %12 = tpu.matmul %1, %11, %cst_14 {dimension_numbers = #tpu.dot_dimension_numbers<[1], [0], [0], [1], [0, 0, 1, 1], [], []>} : vector<32x128xf32>, vector<128x128xf32>, vector<32x128xf32> -> vector<32x128xf32>
    %cst_15 = arith.constant dense<0.000000e+00> : vector<16x128xf32>
    %13 = tpu.matmul %9, %12, %cst_15 {dimension_numbers = #tpu.dot_dimension_numbers<[1], [0], [0], [1], [0, 0, 1, 1], [], []>} : vector<16x32xf32>, vector<32x128xf32>, vector<16x128xf32> -> vector<16x128xf32>
    %14 = arith.addf %7, %13 : vector<16x128xf32>
    %c2 = arith.constant 2 : index
    %c0_16 = arith.constant 0 : index
    %c0_17 = arith.constant 0 : index
    %15 = vector.load %arg2[%c2, %c0_16, %c0_17] : memref<4x16x32xf32, #tpu.memory_space<vmem>>, vector<1x16x32xf32>
    %16 = vector.shape_cast %15 : vector<1x16x32xf32> to vector<16x32xf32>
    %c2_18 = arith.constant 2 : index
    %c0_19 = arith.constant 0 : index
    %c0_20 = arith.constant 0 : index
    %17 = vector.load %arg3[%c2_18, %c0_19, %c0_20] : memref<4x128x128xf32, #tpu.memory_space<vmem>>, vector<1x128x128xf32>
    %18 = vector.shape_cast %17 : vector<1x128x128xf32> to vector<128x128xf32>
    %cst_21 = arith.constant dense<0.000000e+00> : vector<32x128xf32>
    %19 = tpu.matmul %1, %18, %cst_21 {dimension_numbers = #tpu.dot_dimension_numbers<[1], [0], [0], [1], [0, 0, 1, 1], [], []>} : vector<32x128xf32>, vector<128x128xf32>, vector<32x128xf32> -> vector<32x128xf32>
    %cst_22 = arith.constant dense<0.000000e+00> : vector<16x128xf32>
    %20 = tpu.matmul %16, %19, %cst_22 {dimension_numbers = #tpu.dot_dimension_numbers<[1], [0], [0], [1], [0, 0, 1, 1], [], []>} : vector<16x32xf32>, vector<32x128xf32>, vector<16x128xf32> -> vector<16x128xf32>
    %21 = arith.addf %14, %20 : vector<16x128xf32>
    %c3 = arith.constant 3 : index
    %c0_23 = arith.constant 0 : index
    %c0_24 = arith.constant 0 : index
    %22 = vector.load %arg2[%c3, %c0_23, %c0_24] : memref<4x16x32xf32, #tpu.memory_space<vmem>>, vector<1x16x32xf32>
    %23 = vector.shape_cast %22 : vector<1x16x32xf32> to vector<16x32xf32>
    %c3_25 = arith.constant 3 : index
    %c0_26 = arith.constant 0 : index
    %c0_27 = arith.constant 0 : index
    %24 = vector.load %arg3[%c3_25, %c0_26, %c0_27] : memref<4x128x128xf32, #tpu.memory_space<vmem>>, vector<1x128x128xf32>
    %25 = vector.shape_cast %24 : vector<1x128x128xf32> to vector<128x128xf32>
    %cst_28 = arith.constant dense<0.000000e+00> : vector<32x128xf32>
    %26 = tpu.matmul %1, %25, %cst_28 {dimension_numbers = #tpu.dot_dimension_numbers<[1], [0], [0], [1], [0, 0, 1, 1], [], []>} : vector<32x128xf32>, vector<128x128xf32>, vector<32x128xf32> -> vector<32x128xf32>
    %cst_29 = arith.constant dense<0.000000e+00> : vector<16x128xf32>
    %27 = tpu.matmul %23, %26, %cst_29 {dimension_numbers = #tpu.dot_dimension_numbers<[1], [0], [0], [1], [0, 0, 1, 1], [], []>} : vector<16x32xf32>, vector<32x128xf32>, vector<16x128xf32> -> vector<16x128xf32>
    %28 = arith.addf %21, %27 : vector<16x128xf32>
    %c0_30 = arith.constant 0 : index
    %c0_31 = arith.constant 0 : index
    %29 = vector.load %arg4[%c0_30, %c0_31] : memref<1x128xf32, #tpu.memory_space<vmem>>, vector<1x128xf32>
    %30 = vector.broadcast %29 : vector<1x128xf32> to vector<16x128xf32>
    %31 = arith.addf %28, %30 : vector<16x128xf32>
    %cst_32 = arith.constant 0.000000e+00 : f32
    %32 = vector.broadcast %cst_32 : f32 to vector<16x128xf32>
    %33 = arith.cmpf oge, %31, %32 : vector<16x128xf32>
    %cst_33 = arith.constant 2.000000e-01 : f32
    %34 = vector.broadcast %cst_33 : f32 to vector<16x128xf32>
    %35 = arith.mulf %34, %31 : vector<16x128xf32>
    %36 = arith.select %33, %31, %35 : vector<16x128xi1>, vector<16x128xf32>
    %c0_34 = arith.constant 0 : index
    %c0_35 = arith.constant 0 : index
    %c0_36 = arith.constant 0 : index
    %37 = vector.load %arg5[%c0_34, %c0_35, %c0_36] : memref<4x8x16xf32, #tpu.memory_space<vmem>>, vector<1x8x16xf32>
    %38 = vector.shape_cast %37 : vector<1x8x16xf32> to vector<8x16xf32>
    %c0_37 = arith.constant 0 : index
    %c0_38 = arith.constant 0 : index
    %c0_39 = arith.constant 0 : index
    %39 = vector.load %arg6[%c0_37, %c0_38, %c0_39] : memref<4x128x128xf32, #tpu.memory_space<vmem>>, vector<1x128x128xf32>
    %40 = vector.shape_cast %39 : vector<1x128x128xf32> to vector<128x128xf32>
    %cst_40 = arith.constant dense<0.000000e+00> : vector<16x128xf32>
    %41 = tpu.matmul %36, %40, %cst_40 {dimension_numbers = #tpu.dot_dimension_numbers<[1], [0], [0], [1], [0, 0, 1, 1], [], []>} : vector<16x128xf32>, vector<128x128xf32>, vector<16x128xf32> -> vector<16x128xf32>
    %cst_41 = arith.constant dense<0.000000e+00> : vector<8x128xf32>
    %42 = tpu.matmul %38, %41, %cst_41 {dimension_numbers = #tpu.dot_dimension_numbers<[1], [0], [0], [1], [0, 0, 1, 1], [], []>} : vector<8x16xf32>, vector<16x128xf32>, vector<8x128xf32> -> vector<8x128xf32>
    %c1_42 = arith.constant 1 : index
    %c0_43 = arith.constant 0 : index
    %c0_44 = arith.constant 0 : index
    %43 = vector.load %arg5[%c1_42, %c0_43, %c0_44] : memref<4x8x16xf32, #tpu.memory_space<vmem>>, vector<1x8x16xf32>
    %44 = vector.shape_cast %43 : vector<1x8x16xf32> to vector<8x16xf32>
    %c1_45 = arith.constant 1 : index
    %c0_46 = arith.constant 0 : index
    %c0_47 = arith.constant 0 : index
    %45 = vector.load %arg6[%c1_45, %c0_46, %c0_47] : memref<4x128x128xf32, #tpu.memory_space<vmem>>, vector<1x128x128xf32>
    %46 = vector.shape_cast %45 : vector<1x128x128xf32> to vector<128x128xf32>
    %cst_48 = arith.constant dense<0.000000e+00> : vector<16x128xf32>
    %47 = tpu.matmul %36, %46, %cst_48 {dimension_numbers = #tpu.dot_dimension_numbers<[1], [0], [0], [1], [0, 0, 1, 1], [], []>} : vector<16x128xf32>, vector<128x128xf32>, vector<16x128xf32> -> vector<16x128xf32>
    %cst_49 = arith.constant dense<0.000000e+00> : vector<8x128xf32>
    %48 = tpu.matmul %44, %47, %cst_49 {dimension_numbers = #tpu.dot_dimension_numbers<[1], [0], [0], [1], [0, 0, 1, 1], [], []>} : vector<8x16xf32>, vector<16x128xf32>, vector<8x128xf32> -> vector<8x128xf32>
    %49 = arith.addf %42, %48 : vector<8x128xf32>
    %c2_50 = arith.constant 2 : index
    %c0_51 = arith.constant 0 : index
    %c0_52 = arith.constant 0 : index
    %50 = vector.load %arg5[%c2_50, %c0_51, %c0_52] : memref<4x8x16xf32, #tpu.memory_space<vmem>>, vector<1x8x16xf32>
    %51 = vector.shape_cast %50 : vector<1x8x16xf32> to vector<8x16xf32>
    %c2_53 = arith.constant 2 : index
    %c0_54 = arith.constant 0 : index
    %c0_55 = arith.constant 0 : index
    %52 = vector.load %arg6[%c2_53, %c0_54, %c0_55] : memref<4x128x128xf32, #tpu.memory_space<vmem>>, vector<1x128x128xf32>
    %53 = vector.shape_cast %52 : vector<1x128x128xf32> to vector<128x128xf32>
    %cst_56 = arith.constant dense<0.000000e+00> : vector<16x128xf32>
    %54 = tpu.matmul %36, %53, %cst_56 {dimension_numbers = #tpu.dot_dimension_numbers<[1], [0], [0], [1], [0, 0, 1, 1], [], []>} : vector<16x128xf32>, vector<128x128xf32>, vector<16x128xf32> -> vector<16x128xf32>
    %cst_57 = arith.constant dense<0.000000e+00> : vector<8x128xf32>
    %55 = tpu.matmul %51, %54, %cst_57 {dimension_numbers = #tpu.dot_dimension_numbers<[1], [0], [0], [1], [0, 0, 1, 1], [], []>} : vector<8x16xf32>, vector<16x128xf32>, vector<8x128xf32> -> vector<8x128xf32>
    %56 = arith.addf %49, %55 : vector<8x128xf32>
    %c3_58 = arith.constant 3 : index
    %c0_59 = arith.constant 0 : index
    %c0_60 = arith.constant 0 : index
    %57 = vector.load %arg5[%c3_58, %c0_59, %c0_60] : memref<4x8x16xf32, #tpu.memory_space<vmem>>, vector<1x8x16xf32>
    %58 = vector.shape_cast %57 : vector<1x8x16xf32> to vector<8x16xf32>
    %c3_61 = arith.constant 3 : index
    %c0_62 = arith.constant 0 : index
    %c0_63 = arith.constant 0 : index
    %59 = vector.load %arg6[%c3_61, %c0_62, %c0_63] : memref<4x128x128xf32, #tpu.memory_space<vmem>>, vector<1x128x128xf32>
    %60 = vector.shape_cast %59 : vector<1x128x128xf32> to vector<128x128xf32>
    %cst_64 = arith.constant dense<0.000000e+00> : vector<16x128xf32>
    %61 = tpu.matmul %36, %60, %cst_64 {dimension_numbers = #tpu.dot_dimension_numbers<[1], [0], [0], [1], [0, 0, 1, 1], [], []>} : vector<16x128xf32>, vector<128x128xf32>, vector<16x128xf32> -> vector<16x128xf32>
    %cst_65 = arith.constant dense<0.000000e+00> : vector<8x128xf32>
    %62 = tpu.matmul %58, %61, %cst_65 {dimension_numbers = #tpu.dot_dimension_numbers<[1], [0], [0], [1], [0, 0, 1, 1], [], []>} : vector<8x16xf32>, vector<16x128xf32>, vector<8x128xf32> -> vector<8x128xf32>
    %63 = arith.addf %56, %62 : vector<8x128xf32>
    %cst_66 = arith.constant dense<0.000000e+00> : vector<128xf32>
    %64 = vector.multi_reduction <add>, %63, %cst_66 [0] : vector<8x128xf32> to vector<128xf32>
    %65 = vector.shape_cast %64 : vector<128xf32> to vector<1x128xf32>
    %c0_67 = arith.constant 0 : index
    %c0_68 = arith.constant 0 : index
    %66 = vector.load %arg7[%c0_67, %c0_68] : memref<128x16xf32, #tpu.memory_space<vmem>>, vector<128x16xf32>
    %cst_69 = arith.constant dense<0.000000e+00> : vector<1x16xf32>
    %67 = tpu.matmul %65, %66, %cst_69 {dimension_numbers = #tpu.dot_dimension_numbers<[1], [0], [0], [1], [0, 0, 1, 1], [], []>} : vector<1x128xf32>, vector<128x16xf32>, vector<1x16xf32> -> vector<1x16xf32>
    %cst_70 = arith.constant 1.562500e-02 : f32
    %68 = vector.broadcast %cst_70 : f32 to vector<1x16xf32>
    %69 = arith.mulf %67, %68 : vector<1x16xf32>
    %c0_71 = arith.constant 0 : index
    %c0_72 = arith.constant 0 : index
    %70 = vector.load %arg8[%c0_71, %c0_72] : memref<16x128xf32, #tpu.memory_space<vmem>>, vector<16x128xf32>
    %cst_73 = arith.constant dense<0.000000e+00> : vector<1x128xf32>
    %71 = tpu.matmul %69, %70, %cst_73 {dimension_numbers = #tpu.dot_dimension_numbers<[1], [0], [0], [1], [0, 0, 1, 1], [], []>} : vector<1x16xf32>, vector<16x128xf32>, vector<1x128xf32> -> vector<1x128xf32>
    %72 = vector.broadcast %71 : vector<1x128xf32> to vector<8x128xf32>
    %73 = arith.subf %63, %72 : vector<8x128xf32>
    %74 = arith.mulf %73, %73 : vector<8x128xf32>
    %cst_74 = arith.constant dense<0.000000e+00> : vector<128xf32>
    %75 = vector.multi_reduction <add>, %74, %cst_74 [0] : vector<8x128xf32> to vector<128xf32>
    %76 = vector.shape_cast %75 : vector<128xf32> to vector<1x128xf32>
    %c0_75 = arith.constant 0 : index
    %c0_76 = arith.constant 0 : index
    %77 = vector.load %arg7[%c0_75, %c0_76] : memref<128x16xf32, #tpu.memory_space<vmem>>, vector<128x16xf32>
    %cst_77 = arith.constant dense<0.000000e+00> : vector<1x16xf32>
    %78 = tpu.matmul %76, %77, %cst_77 {dimension_numbers = #tpu.dot_dimension_numbers<[1], [0], [0], [1], [0, 0, 1, 1], [], []>} : vector<1x128xf32>, vector<128x16xf32>, vector<1x16xf32> -> vector<1x16xf32>
    %cst_78 = arith.constant 1.562500e-02 : f32
    %79 = vector.broadcast %cst_78 : f32 to vector<1x16xf32>
    %80 = arith.mulf %78, %79 : vector<1x16xf32>
    %cst_79 = arith.constant 9.99999974E-6 : f32
    %81 = vector.broadcast %cst_79 : f32 to vector<1x16xf32>
    %82 = arith.addf %80, %81 : vector<1x16xf32>
    %83 = math.rsqrt %82 : vector<1x16xf32>
    %c0_80 = arith.constant 0 : index
    %c0_81 = arith.constant 0 : index
    %84 = vector.load %arg8[%c0_80, %c0_81] : memref<16x128xf32, #tpu.memory_space<vmem>>, vector<16x128xf32>
    %cst_82 = arith.constant dense<0.000000e+00> : vector<1x128xf32>
    %85 = tpu.matmul %83, %84, %cst_82 {dimension_numbers = #tpu.dot_dimension_numbers<[1], [0], [0], [1], [0, 0, 1, 1], [], []>} : vector<1x16xf32>, vector<16x128xf32>, vector<1x128xf32> -> vector<1x128xf32>
    %86 = vector.broadcast %85 : vector<1x128xf32> to vector<8x128xf32>
    %87 = arith.mulf %73, %86 : vector<8x128xf32>
    %cst_83 = arith.constant 0.000000e+00 : f32
    %88 = vector.broadcast %cst_83 : f32 to vector<8x128xf32>
    %89 = arith.cmpf oge, %87, %88 : vector<8x128xf32>
    %cst_84 = arith.constant 2.000000e-01 : f32
    %90 = vector.broadcast %cst_84 : f32 to vector<8x128xf32>
    %91 = arith.mulf %90, %87 : vector<8x128xf32>
    %92 = arith.select %89, %87, %91 : vector<8x128xi1>, vector<8x128xf32>
    %c0_85 = arith.constant 0 : index
    %c0_86 = arith.constant 0 : index
    %c0_87 = arith.constant 0 : index
    %93 = vector.load %arg9[%c0_85, %c0_86, %c0_87] : memref<4x7x8xf32, #tpu.memory_space<vmem>>, vector<1x7x8xf32>
    %94 = vector.shape_cast %93 : vector<1x7x8xf32> to vector<7x8xf32>
    %c0_88 = arith.constant 0 : index
    %c0_89 = arith.constant 0 : index
    %c0_90 = arith.constant 0 : index
    %95 = vector.load %arg10[%c0_88, %c0_89, %c0_90] : memref<4x128x224xf32, #tpu.memory_space<vmem>>, vector<1x128x224xf32>
    %96 = vector.shape_cast %95 : vector<1x128x224xf32> to vector<128x224xf32>
    %cst_91 = arith.constant dense<0.000000e+00> : vector<8x224xf32>
    %97 = tpu.matmul %92, %96, %cst_91 {dimension_numbers = #tpu.dot_dimension_numbers<[1], [0], [0], [1], [0, 0, 1, 1], [], []>} : vector<8x128xf32>, vector<128x224xf32>, vector<8x224xf32> -> vector<8x224xf32>
    %cst_92 = arith.constant dense<0.000000e+00> : vector<7x224xf32>
    %98 = tpu.matmul %94, %97, %cst_92 {dimension_numbers = #tpu.dot_dimension_numbers<[1], [0], [0], [1], [0, 0, 1, 1], [], []>} : vector<7x8xf32>, vector<8x224xf32>, vector<7x224xf32> -> vector<7x224xf32>
    %c1_93 = arith.constant 1 : index
    %c0_94 = arith.constant 0 : index
    %c0_95 = arith.constant 0 : index
    %99 = vector.load %arg9[%c1_93, %c0_94, %c0_95] : memref<4x7x8xf32, #tpu.memory_space<vmem>>, vector<1x7x8xf32>
    %100 = vector.shape_cast %99 : vector<1x7x8xf32> to vector<7x8xf32>
    %c1_96 = arith.constant 1 : index
    %c0_97 = arith.constant 0 : index
    %c0_98 = arith.constant 0 : index
    %101 = vector.load %arg10[%c1_96, %c0_97, %c0_98] : memref<4x128x224xf32, #tpu.memory_space<vmem>>, vector<1x128x224xf32>
    %102 = vector.shape_cast %101 : vector<1x128x224xf32> to vector<128x224xf32>
    %cst_99 = arith.constant dense<0.000000e+00> : vector<8x224xf32>
    %103 = tpu.matmul %92, %102, %cst_99 {dimension_numbers = #tpu.dot_dimension_numbers<[1], [0], [0], [1], [0, 0, 1, 1], [], []>} : vector<8x128xf32>, vector<128x224xf32>, vector<8x224xf32> -> vector<8x224xf32>
    %cst_100 = arith.constant dense<0.000000e+00> : vector<7x224xf32>
    %104 = tpu.matmul %100, %103, %cst_100 {dimension_numbers = #tpu.dot_dimension_numbers<[1], [0], [0], [1], [0, 0, 1, 1], [], []>} : vector<7x8xf32>, vector<8x224xf32>, vector<7x224xf32> -> vector<7x224xf32>
    %105 = arith.addf %98, %104 : vector<7x224xf32>
    %c2_101 = arith.constant 2 : index
    %c0_102 = arith.constant 0 : index
    %c0_103 = arith.constant 0 : index
    %106 = vector.load %arg9[%c2_101, %c0_102, %c0_103] : memref<4x7x8xf32, #tpu.memory_space<vmem>>, vector<1x7x8xf32>
    %107 = vector.shape_cast %106 : vector<1x7x8xf32> to vector<7x8xf32>
    %c2_104 = arith.constant 2 : index
    %c0_105 = arith.constant 0 : index
    %c0_106 = arith.constant 0 : index
    %108 = vector.load %arg10[%c2_104, %c0_105, %c0_106] : memref<4x128x224xf32, #tpu.memory_space<vmem>>, vector<1x128x224xf32>
    %109 = vector.shape_cast %108 : vector<1x128x224xf32> to vector<128x224xf32>
    %cst_107 = arith.constant dense<0.000000e+00> : vector<8x224xf32>
    %110 = tpu.matmul %92, %109, %cst_107 {dimension_numbers = #tpu.dot_dimension_numbers<[1], [0], [0], [1], [0, 0, 1, 1], [], []>} : vector<8x128xf32>, vector<128x224xf32>, vector<8x224xf32> -> vector<8x224xf32>
    %cst_108 = arith.constant dense<0.000000e+00> : vector<7x224xf32>
    %111 = tpu.matmul %107, %110, %cst_108 {dimension_numbers = #tpu.dot_dimension_numbers<[1], [0], [0], [1], [0, 0, 1, 1], [], []>} : vector<7x8xf32>, vector<8x224xf32>, vector<7x224xf32> -> vector<7x224xf32>
    %112 = arith.addf %105, %111 : vector<7x224xf32>
    %c3_109 = arith.constant 3 : index
    %c0_110 = arith.constant 0 : index
    %c0_111 = arith.constant 0 : index
    %113 = vector.load %arg9[%c3_109, %c0_110, %c0_111] : memref<4x7x8xf32, #tpu.memory_space<vmem>>, vector<1x7x8xf32>
    %114 = vector.shape_cast %113 : vector<1x7x8xf32> to vector<7x8xf32>
    %c3_112 = arith.constant 3 : index
    %c0_113 = arith.constant 0 : index
    %c0_114 = arith.constant 0 : index
    %115 = vector.load %arg10[%c3_112, %c0_113, %c0_114] : memref<4x128x224xf32, #tpu.memory_space<vmem>>, vector<1x128x224xf32>
    %116 = vector.shape_cast %115 : vector<1x128x224xf32> to vector<128x224xf32>
    %cst_115 = arith.constant dense<0.000000e+00> : vector<8x224xf32>
    %117 = tpu.matmul %92, %116, %cst_115 {dimension_numbers = #tpu.dot_dimension_numbers<[1], [0], [0], [1], [0, 0, 1, 1], [], []>} : vector<8x128xf32>, vector<128x224xf32>, vector<8x224xf32> -> vector<8x224xf32>
    %cst_116 = arith.constant dense<0.000000e+00> : vector<7x224xf32>
    %118 = tpu.matmul %114, %117, %cst_116 {dimension_numbers = #tpu.dot_dimension_numbers<[1], [0], [0], [1], [0, 0, 1, 1], [], []>} : vector<7x8xf32>, vector<8x224xf32>, vector<7x224xf32> -> vector<7x224xf32>
    %119 = arith.addf %112, %118 : vector<7x224xf32>
    %cst_117 = arith.constant dense<0.000000e+00> : vector<224xf32>
    %120 = vector.multi_reduction <add>, %119, %cst_117 [0] : vector<7x224xf32> to vector<224xf32>
    %121 = vector.shape_cast %120 : vector<224xf32> to vector<1x224xf32>
    %c0_118 = arith.constant 0 : index
    %c0_119 = arith.constant 0 : index
    %122 = vector.load %arg11[%c0_118, %c0_119] : memref<224x32xf32, #tpu.memory_space<vmem>>, vector<224x32xf32>
    %cst_120 = arith.constant dense<0.000000e+00> : vector<1x32xf32>
    %123 = tpu.matmul %121, %122, %cst_120 {dimension_numbers = #tpu.dot_dimension_numbers<[1], [0], [0], [1], [0, 0, 1, 1], [], []>} : vector<1x224xf32>, vector<224x32xf32>, vector<1x32xf32> -> vector<1x32xf32>
    %cst_121 = arith.constant 0.0204081628 : f32
    %124 = vector.broadcast %cst_121 : f32 to vector<1x32xf32>
    %125 = arith.mulf %123, %124 : vector<1x32xf32>
    %c0_122 = arith.constant 0 : index
    %c0_123 = arith.constant 0 : index
    %126 = vector.load %arg12[%c0_122, %c0_123] : memref<32x224xf32, #tpu.memory_space<vmem>>, vector<32x224xf32>
    %cst_124 = arith.constant dense<0.000000e+00> : vector<1x224xf32>
    %127 = tpu.matmul %125, %126, %cst_124 {dimension_numbers = #tpu.dot_dimension_numbers<[1], [0], [0], [1], [0, 0, 1, 1], [], []>} : vector<1x32xf32>, vector<32x224xf32>, vector<1x224xf32> -> vector<1x224xf32>
    %128 = vector.broadcast %127 : vector<1x224xf32> to vector<7x224xf32>
    %129 = arith.subf %119, %128 : vector<7x224xf32>
    %130 = arith.mulf %129, %129 : vector<7x224xf32>
    %cst_125 = arith.constant dense<0.000000e+00> : vector<224xf32>
    %131 = vector.multi_reduction <add>, %130, %cst_125 [0] : vector<7x224xf32> to vector<224xf32>
    %132 = vector.shape_cast %131 : vector<224xf32> to vector<1x224xf32>
    %c0_126 = arith.constant 0 : index
    %c0_127 = arith.constant 0 : index
    %133 = vector.load %arg11[%c0_126, %c0_127] : memref<224x32xf32, #tpu.memory_space<vmem>>, vector<224x32xf32>
    %cst_128 = arith.constant dense<0.000000e+00> : vector<1x32xf32>
    %134 = tpu.matmul %132, %133, %cst_128 {dimension_numbers = #tpu.dot_dimension_numbers<[1], [0], [0], [1], [0, 0, 1, 1], [], []>} : vector<1x224xf32>, vector<224x32xf32>, vector<1x32xf32> -> vector<1x32xf32>
    %cst_129 = arith.constant 0.0204081628 : f32
    %135 = vector.broadcast %cst_129 : f32 to vector<1x32xf32>
    %136 = arith.mulf %134, %135 : vector<1x32xf32>
    %cst_130 = arith.constant 9.99999974E-6 : f32
    %137 = vector.broadcast %cst_130 : f32 to vector<1x32xf32>
    %138 = arith.addf %136, %137 : vector<1x32xf32>
    %139 = math.rsqrt %138 : vector<1x32xf32>
    %c0_131 = arith.constant 0 : index
    %c0_132 = arith.constant 0 : index
    %140 = vector.load %arg12[%c0_131, %c0_132] : memref<32x224xf32, #tpu.memory_space<vmem>>, vector<32x224xf32>
    %cst_133 = arith.constant dense<0.000000e+00> : vector<1x224xf32>
    %141 = tpu.matmul %139, %140, %cst_133 {dimension_numbers = #tpu.dot_dimension_numbers<[1], [0], [0], [1], [0, 0, 1, 1], [], []>} : vector<1x32xf32>, vector<32x224xf32>, vector<1x224xf32> -> vector<1x224xf32>
    %142 = vector.broadcast %141 : vector<1x224xf32> to vector<7x224xf32>
    %143 = arith.mulf %129, %142 : vector<7x224xf32>
    %cst_134 = arith.constant 0.000000e+00 : f32
    %144 = vector.broadcast %cst_134 : f32 to vector<7x224xf32>
    %145 = arith.cmpf oge, %143, %144 : vector<7x224xf32>
    %cst_135 = arith.constant 2.000000e-01 : f32
    %146 = vector.broadcast %cst_135 : f32 to vector<7x224xf32>
    %147 = arith.mulf %146, %143 : vector<7x224xf32>
    %148 = arith.select %145, %143, %147 : vector<7x224xi1>, vector<7x224xf32>
    %c0_136 = arith.constant 0 : index
    %c0_137 = arith.constant 0 : index
    %c0_138 = arith.constant 0 : index
    %149 = vector.load %arg13[%c0_136, %c0_137, %c0_138] : memref<4x6x7xf32, #tpu.memory_space<vmem>>, vector<1x6x7xf32>
    %150 = vector.shape_cast %149 : vector<1x6x7xf32> to vector<6x7xf32>
    %c0_139 = arith.constant 0 : index
    %c0_140 = arith.constant 0 : index
    %c0_141 = arith.constant 0 : index
    %151 = vector.load %arg14[%c0_139, %c0_140, %c0_141] : memref<4x224x6xf32, #tpu.memory_space<vmem>>, vector<1x224x6xf32>
    %152 = vector.shape_cast %151 : vector<1x224x6xf32> to vector<224x6xf32>
    %cst_142 = arith.constant dense<0.000000e+00> : vector<7x6xf32>
    %153 = tpu.matmul %148, %152, %cst_142 {dimension_numbers = #tpu.dot_dimension_numbers<[1], [0], [0], [1], [0, 0, 1, 1], [], []>} : vector<7x224xf32>, vector<224x6xf32>, vector<7x6xf32> -> vector<7x6xf32>
    %cst_143 = arith.constant dense<0.000000e+00> : vector<6x6xf32>
    %154 = tpu.matmul %150, %153, %cst_143 {dimension_numbers = #tpu.dot_dimension_numbers<[1], [0], [0], [1], [0, 0, 1, 1], [], []>} : vector<6x7xf32>, vector<7x6xf32>, vector<6x6xf32> -> vector<6x6xf32>
    %c1_144 = arith.constant 1 : index
    %c0_145 = arith.constant 0 : index
    %c0_146 = arith.constant 0 : index
    %155 = vector.load %arg13[%c1_144, %c0_145, %c0_146] : memref<4x6x7xf32, #tpu.memory_space<vmem>>, vector<1x6x7xf32>
    %156 = vector.shape_cast %155 : vector<1x6x7xf32> to vector<6x7xf32>
    %c1_147 = arith.constant 1 : index
    %c0_148 = arith.constant 0 : index
    %c0_149 = arith.constant 0 : index
    %157 = vector.load %arg14[%c1_147, %c0_148, %c0_149] : memref<4x224x6xf32, #tpu.memory_space<vmem>>, vector<1x224x6xf32>
    %158 = vector.shape_cast %157 : vector<1x224x6xf32> to vector<224x6xf32>
    %cst_150 = arith.constant dense<0.000000e+00> : vector<7x6xf32>
    %159 = tpu.matmul %148, %158, %cst_150 {dimension_numbers = #tpu.dot_dimension_numbers<[1], [0], [0], [1], [0, 0, 1, 1], [], []>} : vector<7x224xf32>, vector<224x6xf32>, vector<7x6xf32> -> vector<7x6xf32>
    %cst_151 = arith.constant dense<0.000000e+00> : vector<6x6xf32>
    %160 = tpu.matmul %156, %159, %cst_151 {dimension_numbers = #tpu.dot_dimension_numbers<[1], [0], [0], [1], [0, 0, 1, 1], [], []>} : vector<6x7xf32>, vector<7x6xf32>, vector<6x6xf32> -> vector<6x6xf32>
    %161 = arith.addf %154, %160 : vector<6x6xf32>
    %c2_152 = arith.constant 2 : index
    %c0_153 = arith.constant 0 : index
    %c0_154 = arith.constant 0 : index
    %162 = vector.load %arg13[%c2_152, %c0_153, %c0_154] : memref<4x6x7xf32, #tpu.memory_space<vmem>>, vector<1x6x7xf32>
    %163 = vector.shape_cast %162 : vector<1x6x7xf32> to vector<6x7xf32>
    %c2_155 = arith.constant 2 : index
    %c0_156 = arith.constant 0 : index
    %c0_157 = arith.constant 0 : index
    %164 = vector.load %arg14[%c2_155, %c0_156, %c0_157] : memref<4x224x6xf32, #tpu.memory_space<vmem>>, vector<1x224x6xf32>
    %165 = vector.shape_cast %164 : vector<1x224x6xf32> to vector<224x6xf32>
    %cst_158 = arith.constant dense<0.000000e+00> : vector<7x6xf32>
    %166 = tpu.matmul %148, %165, %cst_158 {dimension_numbers = #tpu.dot_dimension_numbers<[1], [0], [0], [1], [0, 0, 1, 1], [], []>} : vector<7x224xf32>, vector<224x6xf32>, vector<7x6xf32> -> vector<7x6xf32>
    %cst_159 = arith.constant dense<0.000000e+00> : vector<6x6xf32>
    %167 = tpu.matmul %163, %166, %cst_159 {dimension_numbers = #tpu.dot_dimension_numbers<[1], [0], [0], [1], [0, 0, 1, 1], [], []>} : vector<6x7xf32>, vector<7x6xf32>, vector<6x6xf32> -> vector<6x6xf32>
    %168 = arith.addf %161, %167 : vector<6x6xf32>
    %c3_160 = arith.constant 3 : index
    %c0_161 = arith.constant 0 : index
    %c0_162 = arith.constant 0 : index
    %169 = vector.load %arg13[%c3_160, %c0_161, %c0_162] : memref<4x6x7xf32, #tpu.memory_space<vmem>>, vector<1x6x7xf32>
    %170 = vector.shape_cast %169 : vector<1x6x7xf32> to vector<6x7xf32>
    %c3_163 = arith.constant 3 : index
    %c0_164 = arith.constant 0 : index
    %c0_165 = arith.constant 0 : index
    %171 = vector.load %arg14[%c3_163, %c0_164, %c0_165] : memref<4x224x6xf32, #tpu.memory_space<vmem>>, vector<1x224x6xf32>
    %172 = vector.shape_cast %171 : vector<1x224x6xf32> to vector<224x6xf32>
    %cst_166 = arith.constant dense<0.000000e+00> : vector<7x6xf32>
    %173 = tpu.matmul %148, %172, %cst_166 {dimension_numbers = #tpu.dot_dimension_numbers<[1], [0], [0], [1], [0, 0, 1, 1], [], []>} : vector<7x224xf32>, vector<224x6xf32>, vector<7x6xf32> -> vector<7x6xf32>
    %cst_167 = arith.constant dense<0.000000e+00> : vector<6x6xf32>
    %174 = tpu.matmul %170, %173, %cst_167 {dimension_numbers = #tpu.dot_dimension_numbers<[1], [0], [0], [1], [0, 0, 1, 1], [], []>} : vector<6x7xf32>, vector<7x6xf32>, vector<6x6xf32> -> vector<6x6xf32>
    %175 = arith.addf %168, %174 : vector<6x6xf32>
    %c0_168 = arith.constant 0 : index
    %c0_169 = arith.constant 0 : index
    %176 = vector.load %arg15[%c0_168, %c0_169] : memref<1x6xf32, #tpu.memory_space<vmem>>, vector<1x6xf32>
    %177 = vector.broadcast %176 : vector<1x6xf32> to vector<6x6xf32>
    %178 = arith.addf %175, %177 : vector<6x6xf32>
    %c0_170 = arith.constant 0 : index
    %c0_171 = arith.constant 0 : index
    %c0_172 = arith.constant 0 : index
    %179 = vector.load %arg16[%c0_170, %c0_171, %c0_172] : memref<1x6x6xf32, #tpu.memory_space<vmem>>, vector<1x6x6xf32>
    %180 = vector.shape_cast %179 : vector<1x6x6xf32> to vector<6x6xf32>
    %181 = vector.shape_cast %178 : vector<6x6xf32> to vector<1x6x6xf32>
    tpu.vector_store %arg16[%c0_170, %c0_171, %c0_172], %181 {strides = array<i32>} : memref<1x6x6xf32, #tpu.memory_space<vmem>>, vector<1x6x6xf32>,
    return
  }
  func.func @transform_0(%arg0: i32) -> (i32, i32, i32) {
    %c0_i32 = arith.constant 0 : i32
    %c0_i32_0 = arith.constant 0 : i32
    %c0_i32_1 = arith.constant 0 : i32
    return %arg0, %c0_i32, %c0_i32_0 : i32, i32, i32
  }
  func.func @transform_1(%arg0: i32) -> (i32, i32, i32) {
    %c0_i32 = arith.constant 0 : i32
    %c0_i32_0 = arith.constant 0 : i32
    %c0_i32_1 = arith.constant 0 : i32
    %c0_i32_2 = arith.constant 0 : i32
    return %c0_i32, %c0_i32_0, %c0_i32_1 : i32, i32, i32
  }
  func.func @transform_2(%arg0: i32) -> (i32, i32, i32) {
    %c0_i32 = arith.constant 0 : i32
    %c0_i32_0 = arith.constant 0 : i32
    %c0_i32_1 = arith.constant 0 : i32
    %c0_i32_2 = arith.constant 0 : i32
    return %c0_i32, %c0_i32_0, %c0_i32_1 : i32, i32, i32
  }
  func.func @transform_3(%arg0: i32) -> (i32, i32) {
    %c0_i32 = arith.constant 0 : i32
    %c0_i32_0 = arith.constant 0 : i32
    %c0_i32_1 = arith.constant 0 : i32
    return %c0_i32, %c0_i32_0 : i32, i32
  }
  func.func @transform_4(%arg0: i32) -> (i32, i32, i32) {
    %c0_i32 = arith.constant 0 : i32
    %c0_i32_0 = arith.constant 0 : i32
    %c0_i32_1 = arith.constant 0 : i32
    %c0_i32_2 = arith.constant 0 : i32
    return %c0_i32, %c0_i32_0, %c0_i32_1 : i32, i32, i32
  }
  func.func @transform_5(%arg0: i32) -> (i32, i32, i32) {
    %c0_i32 = arith.constant 0 : i32
    %c0_i32_0 = arith.constant 0 : i32
    %c0_i32_1 = arith.constant 0 : i32
    %c0_i32_2 = arith.constant 0 : i32
    return %c0_i32, %c0_i32_0, %c0_i32_1 : i32, i32, i32
  }
  func.func @transform_6(%arg0: i32) -> (i32, i32) {
    %c0_i32 = arith.constant 0 : i32
    %c0_i32_0 = arith.constant 0 : i32
    %c0_i32_1 = arith.constant 0 : i32
    return %c0_i32, %c0_i32_0 : i32, i32
  }
  func.func @transform_7(%arg0: i32) -> (i32, i32) {
    %c0_i32 = arith.constant 0 : i32
    %c0_i32_0 = arith.constant 0 : i32
    %c0_i32_1 = arith.constant 0 : i32
    return %c0_i32, %c0_i32_0 : i32, i32
  }
  func.func @transform_8(%arg0: i32) -> (i32, i32, i32) {
    %c0_i32 = arith.constant 0 : i32
    %c0_i32_0 = arith.constant 0 : i32
    %c0_i32_1 = arith.constant 0 : i32
    %c0_i32_2 = arith.constant 0 : i32
    return %c0_i32, %c0_i32_0, %c0_i32_1 : i32, i32, i32
  }
  func.func @transform_9(%arg0: i32) -> (i32, i32, i32) {
    %c0_i32 = arith.constant 0 : i32
    %c0_i32_0 = arith.constant 0 : i32
    %c0_i32_1 = arith.constant 0 : i32
    %c0_i32_2 = arith.constant 0 : i32
    return %c0_i32, %c0_i32_0, %c0_i32_1 : i32, i32, i32
  }
  func.func @transform_10(%arg0: i32) -> (i32, i32) {
    %c0_i32 = arith.constant 0 : i32
    %c0_i32_0 = arith.constant 0 : i32
    %c0_i32_1 = arith.constant 0 : i32
    return %c0_i32, %c0_i32_0 : i32, i32
  }
  func.func @transform_11(%arg0: i32) -> (i32, i32) {
    %c0_i32 = arith.constant 0 : i32
    %c0_i32_0 = arith.constant 0 : i32
    %c0_i32_1 = arith.constant 0 : i32
    return %c0_i32, %c0_i32_0 : i32, i32
  }
  func.func @transform_12(%arg0: i32) -> (i32, i32, i32) {
    %c0_i32 = arith.constant 0 : i32
    %c0_i32_0 = arith.constant 0 : i32
    %c0_i32_1 = arith.constant 0 : i32
    %c0_i32_2 = arith.constant 0 : i32
    return %c0_i32, %c0_i32_0, %c0_i32_1 : i32, i32, i32
  }
  func.func @transform_13(%arg0: i32) -> (i32, i32, i32) {
    %c0_i32 = arith.constant 0 : i32
    %c0_i32_0 = arith.constant 0 : i32
    %c0_i32_1 = arith.constant 0 : i32
    %c0_i32_2 = arith.constant 0 : i32
    return %c0_i32, %c0_i32_0, %c0_i32_1 : i32, i32, i32
  }
  func.func @transform_14(%arg0: i32) -> (i32, i32) {
    %c0_i32 = arith.constant 0 : i32
    %c0_i32_0 = arith.constant 0 : i32
    %c0_i32_1 = arith.constant 0 : i32
    return %c0_i32, %c0_i32_0 : i32, i32
  }
  func.func @transform_15(%arg0: i32) -> (i32, i32, i32) {
    %c0_i32 = arith.constant 0 : i32
    %c0_i32_0 = arith.constant 0 : i32
    %c0_i32_1 = arith.constant 0 : i32
    return %arg0, %c0_i32, %c0_i32_0 : i32, i32, i32
  }
}

</mosaic_0001>

<llo_original>
// kernel: tpu_custom_call.1
$region0: #{tpu_custom_call.1}
  #allocation0 [shape = 'u32[]', space=smem, size = 0x4, offset = 0x4, fixed_abs, tag = 'smem constant byte address 0x4 - core index']
  #allocation1 [shape = 'u32[72,128]{1,0:T(1,128)}', space=vmem, size = 0x9000, scoped, tag = 'internal scratch']
  %s0 = inlined_call_operand.vmem [shape: f32[2,32,128], index: 0, kind: input, shape index: {}]
  %s1 = inlined_call_operand.vmem [shape: f32[4,16,32], index: 1, kind: input, shape index: {}]
  %s2 = inlined_call_operand.vmem [shape: f32[4,128,128], index: 2, kind: input, shape index: {}]
  %s3 = inlined_call_operand.vmem [shape: f32[1,128], index: 3, kind: input, shape index: {}]
  %s4 = inlined_call_operand.vmem [shape: f32[4,8,16], index: 4, kind: input, shape index: {}]
  %s5 = inlined_call_operand.vmem [shape: f32[4,128,128], index: 5, kind: input, shape index: {}]
  %s6 = inlined_call_operand.vmem [shape: f32[128,16], index: 6, kind: input, shape index: {}]
  %s7 = inlined_call_operand.vmem [shape: f32[16,128], index: 7, kind: input, shape index: {}]
  %s8 = inlined_call_operand.vmem [shape: f32[4,7,8], index: 8, kind: input, shape index: {}]
  %s9 = inlined_call_operand.vmem [shape: f32[4,128,224], index: 9, kind: input, shape index: {}]
  %s10 = inlined_call_operand.vmem [shape: f32[224,32], index: 10, kind: input, shape index: {}]
  %s11 = inlined_call_operand.vmem [shape: f32[32,224], index: 11, kind: input, shape index: {}]
  %s12 = inlined_call_operand.vmem [shape: f32[4,6,7], index: 12, kind: input, shape index: {}]
  %s13 = inlined_call_operand.vmem [shape: f32[4,224,6], index: 13, kind: input, shape index: {}]
  %s14 = inlined_call_operand.vmem [shape: f32[1,6], index: 14, kind: input, shape index: {}]
  %s15 = inlined_call_operand.vmem [shape: f32[2,6,6], index: 15, kind: output, shape index: {}]
  %s16 = sld [smem:[#allocation0]]
  $region93: #{tpu_custom_call.1} parent=0
    _
  %s18 = ssub.s32 1, %s16
  %s19 = scalar_select 0, %s18, %s16
  loop: start=0, step=1, limit=4
  $region2: #{tpu_custom_call.1} parent=0 // loop_pre_header
    _
  $region3: #{tpu_custom_call.1} parent=0 // loop_header
    %s21 = sphi 0, %s25
    %p22 = scmp.ge.s32.totalorder %s21, 4
    %s31 = sphi 0, %s33
    %s34 = sphi 0, %s31
    %s35 = sphi 0, %s34
    %s51 = sphi 0, %s35
    %s55 = sphi 0, %s55
    %s57 = sphi 0, %s55
    %s58 = sphi 0, %s57
    %s72 = sphi 0, %s58
    %s76 = sphi 0, %s76
    %s78 = sphi 0, %s76
    %s79 = sphi 0, %s78
    %s93 = sphi 0, %s79
    %s97 = sphi 0, %s97
    %s99 = sphi 0, %s97
    %s100 = sphi 0, %s99
    %s114 = sphi 0, %s100
    %s118 = sphi 0, %s118
    %s120 = sphi 0, %s118
    %s121 = sphi 0, %s120
    %s135 = sphi 0, %s121
    %s139 = sphi 0, %s139
    %s141 = sphi 0, %s139
    %s142 = sphi 0, %s141
    %s156 = sphi 0, %s142
    %s160 = sphi 0, %s160
    %s162 = sphi 0, %s160
    %s163 = sphi 0, %s162
    %s177 = sphi 0, %s163
    %s181 = sphi 0, %s181
    %s183 = sphi 0, %s181
    %s184 = sphi 0, %s183
    %s198 = sphi 0, %s184
    %s202 = sphi 0, %s202
    %s204 = sphi 0, %s202
    %s205 = sphi 0, %s204
    %s219 = sphi 0, %s205
    %s223 = sphi 0, %s223
    %s225 = sphi 0, %s223
    %s226 = sphi 0, %s225
    %s240 = sphi 0, %s226
    %s244 = sphi 0, %s244
    %s246 = sphi 0, %s244
    %s247 = sphi 0, %s246
    %s261 = sphi 0, %s247
    %s265 = sphi 0, %s265
    %s267 = sphi 0, %s265
    %s268 = sphi 0, %s267
    %s282 = sphi 0, %s268
    %s286 = sphi 0, %s286
    %s288 = sphi 0, %s286
    %s289 = sphi 0, %s288
    %s303 = sphi 0, %s289
    %s307 = sphi 0, %s307
    %s309 = sphi 0, %s307
    %s310 = sphi 0, %s309
    %s324 = sphi 0, %s310
    %s328 = sphi 0, %s328
    %s330 = sphi 0, %s328
    %s331 = sphi 0, %s330
    %s345 = sphi 0, %s331
    %s351 = sphi 0, %s353
    %s354 = sphi 0, %s351
    %s355 = sphi 0, %s354
    %s371 = sphi 0, %s355
  $region4: #{tpu_custom_call.1} parent=0 // loop_header_branch
    %24 = sbr.rel (%p22) target = $region8
  $region5: #{tpu_custom_call.1} parent=0 // loop_body
    %s26 = ssub.s32 %s21, 1
    %s27 = ssub.s32 %s21, 2
    %s28 = sadd.s32 %s21, 1
    %s29 = ssub.s32 %s21, %s28
    %p30 = scmp.eq.s32.totalorder %s29, 0
    %s32 = sadd.s32 %s31, 1
    %s33 = scalar_select %p30, %s31, %s32
    %p36 = pneg %p30
    %p37 = scmp.eq.s32.totalorder %s21, 1
    %p38 = por %p36, %p37
    %p39 = scmp.ne.s32.totalorder %s31, %s34
    %p40 = scmp.eq.s32.totalorder %s21, 0
    %p41 = por %p39, %p40
    %p42 = scmp.ne.s32.totalorder %s31, %s34
    %p43 = scmp.eq.s32.totalorder %s26, 1
    %p44 = por %p42, %p43
    %p45 = scmp.ne.s32.totalorder %s34, %s35
    %p46 = scmp.eq.s32.totalorder %s26, 0
    %p47 = por %p45, %p46
    %p48 = scmp.ne.s32.totalorder %s34, %s35
    %p49 = scmp.eq.s32.totalorder %s27, 1
    %p50 = por %p48, %p49
    %p52 = scmp.ne.s32.totalorder %s35, %s51
    %p53 = scmp.eq.s32.totalorder %s27, 0
    %p54 = por %p52, %p53
    %s56 = sadd.s32 %s55, 1
    %p59 = scmp.eq.s32.totalorder %s21, 1
    %p60 = scmp.ne.s32.totalorder %s55, %s57
    %p61 = scmp.eq.s32.totalorder %s21, 0
    %p62 = por %p60, %p61
    %p63 = scmp.ne.s32.totalorder %s55, %s57
    %p64 = scmp.eq.s32.totalorder %s26, 1
    %p65 = por %p63, %p64
    %p66 = scmp.ne.s32.totalorder %s57, %s58
    %p67 = scmp.eq.s32.totalorder %s26, 0
    %p68 = por %p66, %p67
    %p69 = scmp.ne.s32.totalorder %s57, %s58
    %p70 = scmp.eq.s32.totalorder %s27, 1
    %p71 = por %p69, %p70
    %p73 = scmp.ne.s32.totalorder %s58, %s72
    %p74 = scmp.eq.s32.totalorder %s27, 0
    %p75 = por %p73, %p74
    %s77 = sadd.s32 %s76, 1
    %p80 = scmp.eq.s32.totalorder %s21, 1
    %p81 = scmp.ne.s32.totalorder %s76, %s78
    %p82 = scmp.eq.s32.totalorder %s21, 0
    %p83 = por %p81, %p82
    %p84 = scmp.ne.s32.totalorder %s76, %s78
    %p85 = scmp.eq.s32.totalorder %s26, 1
    %p86 = por %p84, %p85
    %p87 = scmp.ne.s32.totalorder %s78, %s79
    %p88 = scmp.eq.s32.totalorder %s26, 0
    %p89 = por %p87, %p88
    %p90 = scmp.ne.s32.totalorder %s78, %s79
    %p91 = scmp.eq.s32.totalorder %s27, 1
    %p92 = por %p90, %p91
    %p94 = scmp.ne.s32.totalorder %s79, %s93
    %p95 = scmp.eq.s32.totalorder %s27, 0
    %p96 = por %p94, %p95
    %s98 = sadd.s32 %s97, 1
    %p101 = scmp.eq.s32.totalorder %s21, 1
    %p102 = scmp.ne.s32.totalorder %s97, %s99
    %p103 = scmp.eq.s32.totalorder %s21, 0
    %p104 = por %p102, %p103
    %p105 = scmp.ne.s32.totalorder %s97, %s99
    %p106 = scmp.eq.s32.totalorder %s26, 1
    %p107 = por %p105, %p106
    %p108 = scmp.ne.s32.totalorder %s99, %s100
    %p109 = scmp.eq.s32.totalorder %s26, 0
    %p110 = por %p108, %p109
    %p111 = scmp.ne.s32.totalorder %s99, %s100
    %p112 = scmp.eq.s32.totalorder %s27, 1
    %p113 = por %p111, %p112
    %p115 = scmp.ne.s32.totalorder %s100, %s114
    %p116 = scmp.eq.s32.totalorder %s27, 0
    %p117 = por %p115, %p116
    %s119 = sadd.s32 %s118, 1
    %p122 = scmp.eq.s32.totalorder %s21, 1
    %p123 = scmp.ne.s32.totalorder %s118, %s120
    %p124 = scmp.eq.s32.totalorder %s21, 0
    %p125 = por %p123, %p124
    %p126 = scmp.ne.s32.totalorder %s118, %s120
    %p127 = scmp.eq.s32.totalorder %s26, 1
    %p128 = por %p126, %p127
    %p129 = scmp.ne.s32.totalorder %s120, %s121
    %p130 = scmp.eq.s32.totalorder %s26, 0
    %p131 = por %p129, %p130
    %p132 = scmp.ne.s32.totalorder %s120, %s121
    %p133 = scmp.eq.s32.totalorder %s27, 1
    %p134 = por %p132, %p133
    %p136 = scmp.ne.s32.totalorder %s121, %s135
    %p137 = scmp.eq.s32.totalorder %s27, 0
    %p138 = por %p136, %p137
    %s140 = sadd.s32 %s139, 1
    %p143 = scmp.eq.s32.totalorder %s21, 1
    %p144 = scmp.ne.s32.totalorder %s139, %s141
    %p145 = scmp.eq.s32.totalorder %s21, 0
    %p146 = por %p144, %p145
    %p147 = scmp.ne.s32.totalorder %s139, %s141
    %p148 = scmp.eq.s32.totalorder %s26, 1
    %p149 = por %p147, %p148
    %p150 = scmp.ne.s32.totalorder %s141, %s142
    %p151 = scmp.eq.s32.totalorder %s26, 0
    %p152 = por %p150, %p151
    %p153 = scmp.ne.s32.totalorder %s141, %s142
    %p154 = scmp.eq.s32.totalorder %s27, 1
    %p155 = por %p153, %p154
    %p157 = scmp.ne.s32.totalorder %s142, %s156
    %p158 = scmp.eq.s32.totalorder %s27, 0
    %p159 = por %p157, %p158
    %s161 = sadd.s32 %s160, 1
    %p164 = scmp.eq.s32.totalorder %s21, 1
    %p165 = scmp.ne.s32.totalorder %s160, %s162
    %p166 = scmp.eq.s32.totalorder %s21, 0
    %p167 = por %p165, %p166
    %p168 = scmp.ne.s32.totalorder %s160, %s162
    %p169 = scmp.eq.s32.totalorder %s26, 1
    %p170 = por %p168, %p169
    %p171 = scmp.ne.s32.totalorder %s162, %s163
    %p172 = scmp.eq.s32.totalorder %s26, 0
    %p173 = por %p171, %p172
    %p174 = scmp.ne.s32.totalorder %s162, %s163
    %p175 = scmp.eq.s32.totalorder %s27, 1
    %p176 = por %p174, %p175
    %p178 = scmp.ne.s32.totalorder %s163, %s177
    %p179 = scmp.eq.s32.totalorder %s27, 0
    %p180 = por %p178, %p179
    %s182 = sadd.s32 %s181, 1
    %p185 = scmp.eq.s32.totalorder %s21, 1
    %p186 = scmp.ne.s32.totalorder %s181, %s183
    %p187 = scmp.eq.s32.totalorder %s21, 0
    %p188 = por %p186, %p187
    %p189 = scmp.ne.s32.totalorder %s181, %s183
    %p190 = scmp.eq.s32.totalorder %s26, 1
    %p191 = por %p189, %p190
    %p192 = scmp.ne.s32.totalorder %s183, %s184
    %p193 = scmp.eq.s32.totalorder %s26, 0
    %p194 = por %p192, %p193
    %p195 = scmp.ne.s32.totalorder %s183, %s184
    %p196 = scmp.eq.s32.totalorder %s27, 1
    %p197 = por %p195, %p196
    %p199 = scmp.ne.s32.totalorder %s184, %s198
    %p200 = scmp.eq.s32.totalorder %s27, 0
    %p201 = por %p199, %p200
    %s203 = sadd.s32 %s202, 1
    %p206 = scmp.eq.s32.totalorder %s21, 1
    %p207 = scmp.ne.s32.totalorder %s202, %s204
    %p208 = scmp.eq.s32.totalorder %s21, 0
    %p209 = por %p207, %p208
    %p210 = scmp.ne.s32.totalorder %s202, %s204
    %p211 = scmp.eq.s32.totalorder %s26, 1
    %p212 = por %p210, %p211
    %p213 = scmp.ne.s32.totalorder %s204, %s205
    %p214 = scmp.eq.s32.totalorder %s26, 0
    %p215 = por %p213, %p214
    %p216 = scmp.ne.s32.totalorder %s204, %s205
    %p217 = scmp.eq.s32.totalorder %s27, 1
    %p218 = por %p216, %p217
    %p220 = scmp.ne.s32.totalorder %s205, %s219
    %p221 = scmp.eq.s32.totalorder %s27, 0
    %p222 = por %p220, %p221
    %s224 = sadd.s32 %s223, 1
    %p227 = scmp.eq.s32.totalorder %s21, 1
    %p228 = scmp.ne.s32.totalorder %s223, %s225
    %p229 = scmp.eq.s32.totalorder %s21, 0
    %p230 = por %p228, %p229
    %p231 = scmp.ne.s32.totalorder %s223, %s225
    %p232 = scmp.eq.s32.totalorder %s26, 1
    %p233 = por %p231, %p232
    %p234 = scmp.ne.s32.totalorder %s225, %s226
    %p235 = scmp.eq.s32.totalorder %s26, 0
    %p236 = por %p234, %p235
    %p237 = scmp.ne.s32.totalorder %s225, %s226
    %p238 = scmp.eq.s32.totalorder %s27, 1
    %p239 = por %p237, %p238
    %p241 = scmp.ne.s32.totalorder %s226, %s240
    %p242 = scmp.eq.s32.totalorder %s27, 0
    %p243 = por %p241, %p242
    %s245 = sadd.s32 %s244, 1
    %p248 = scmp.eq.s32.totalorder %s21, 1
    %p249 = scmp.ne.s32.totalorder %s244, %s246
    %p250 = scmp.eq.s32.totalorder %s21, 0
    %p251 = por %p249, %p250
    %p252 = scmp.ne.s32.totalorder %s244, %s246
    %p253 = scmp.eq.s32.totalorder %s26, 1
    %p254 = por %p252, %p253
    %p255 = scmp.ne.s32.totalorder %s246, %s247
    %p256 = scmp.eq.s32.totalorder %s26, 0
    %p257 = por %p255, %p256
    %p258 = scmp.ne.s32.totalorder %s246, %s247
    %p259 = scmp.eq.s32.totalorder %s27, 1
    %p260 = por %p258, %p259
    %p262 = scmp.ne.s32.totalorder %s247, %s261
    %p263 = scmp.eq.s32.totalorder %s27, 0
    %p264 = por %p262, %p263
    %s266 = sadd.s32 %s265, 1
    %p269 = scmp.eq.s32.totalorder %s21, 1
    %p270 = scmp.ne.s32.totalorder %s265, %s267
    %p271 = scmp.eq.s32.totalorder %s21, 0
    %p272 = por %p270, %p271
    %p273 = scmp.ne.s32.totalorder %s265, %s267
    %p274 = scmp.eq.s32.totalorder %s26, 1
    %p275 = por %p273, %p274
    %p276 = scmp.ne.s32.totalorder %s267, %s268
    %p277 = scmp.eq.s32.totalorder %s26, 0
    %p278 = por %p276, %p277
    %p279 = scmp.ne.s32.totalorder %s267, %s268
    %p280 = scmp.eq.s32.totalorder %s27, 1
    %p281 = por %p279, %p280
    %p283 = scmp.ne.s32.totalorder %s268, %s282
    %p284 = scmp.eq.s32.totalorder %s27, 0
    %p285 = por %p283, %p284
    %s287 = sadd.s32 %s286, 1
    %p290 = scmp.eq.s32.totalorder %s21, 1
    %p291 = scmp.ne.s32.totalorder %s286, %s288
    %p292 = scmp.eq.s32.totalorder %s21, 0
    %p293 = por %p291, %p292
    %p294 = scmp.ne.s32.totalorder %s286, %s288
    %p295 = scmp.eq.s32.totalorder %s26, 1
    %p296 = por %p294, %p295
    %p297 = scmp.ne.s32.totalorder %s288, %s289
    %p298 = scmp.eq.s32.totalorder %s26, 0
    %p299 = por %p297, %p298
    %p300 = scmp.ne.s32.totalorder %s288, %s289
    %p301 = scmp.eq.s32.totalorder %s27, 1
    %p302 = por %p300, %p301
    %p304 = scmp.ne.s32.totalorder %s289, %s303
    %p305 = scmp.eq.s32.totalorder %s27, 0
    %p306 = por %p304, %p305
    %s308 = sadd.s32 %s307, 1
    %p311 = scmp.eq.s32.totalorder %s21, 1
    %p312 = scmp.ne.s32.totalorder %s307, %s309
    %p313 = scmp.eq.s32.totalorder %s21, 0
    %p314 = por %p312, %p313
    %p315 = scmp.ne.s32.totalorder %s307, %s309
    %p316 = scmp.eq.s32.totalorder %s26, 1
    %p317 = por %p315, %p316
    %p318 = scmp.ne.s32.totalorder %s309, %s310
    %p319 = scmp.eq.s32.totalorder %s26, 0
    %p320 = por %p318, %p319
    %p321 = scmp.ne.s32.totalorder %s309, %s310
    %p322 = scmp.eq.s32.totalorder %s27, 1
    %p323 = por %p321, %p322
    %p325 = scmp.ne.s32.totalorder %s310, %s324
    %p326 = scmp.eq.s32.totalorder %s27, 0
    %p327 = por %p325, %p326
    %s329 = sadd.s32 %s328, 1
    %p332 = scmp.eq.s32.totalorder %s21, 1
    %p333 = scmp.ne.s32.totalorder %s328, %s330
    %p334 = scmp.eq.s32.totalorder %s21, 0
    %p335 = por %p333, %p334
    %p336 = scmp.ne.s32.totalorder %s328, %s330
    %p337 = scmp.eq.s32.totalorder %s26, 1
    %p338 = por %p336, %p337
    %p339 = scmp.ne.s32.totalorder %s330, %s331
    %p340 = scmp.eq.s32.totalorder %s26, 0
    %p341 = por %p339, %p340
    %p342 = scmp.ne.s32.totalorder %s330, %s331
    %p343 = scmp.eq.s32.totalorder %s27, 1
    %p344 = por %p342, %p343
    %p346 = scmp.ne.s32.totalorder %s331, %s345
    %p347 = scmp.eq.s32.totalorder %s27, 0
    %p348 = por %p346, %p347
    %s349 = ssub.s32 %s21, %s28
    %p350 = scmp.eq.s32.totalorder %s349, 0
    %s352 = sadd.s32 %s351, 1
    %s353 = scalar_select %p350, %s351, %s352
    %p356 = pneg %p350
    %p357 = scmp.eq.s32.totalorder %s21, 1
    %p358 = por %p356, %p357
    %p359 = scmp.ne.s32.totalorder %s351, %s354
    %p360 = scmp.eq.s32.totalorder %s21, 0
    %p361 = por %p359, %p360
    %p362 = scmp.ne.s32.totalorder %s351, %s354
    %p363 = scmp.eq.s32.totalorder %s26, 1
    %p364 = por %p362, %p363
    %p365 = scmp.ne.s32.totalorder %s354, %s355
    %p366 = scmp.eq.s32.totalorder %s26, 0
    %p367 = por %p365, %p366
    %p368 = scmp.ne.s32.totalorder %s354, %s355
    %p369 = scmp.eq.s32.totalorder %s27, 1
    %p370 = por %p368, %p369
    %p372 = scmp.ne.s32.totalorder %s355, %s371
    %p373 = scmp.eq.s32.totalorder %s27, 0
    %p374 = por %p372, %p373
    %p375 = scmp.le.s32.totalorder 1, %s21
    %p376 = scmp.lt.s32.totalorder %s21, 3
    %p377 = pnand %p375, %p376
    %p378 = pneg %p377
    // Predicated region
    $region9: #{tpu_custom_call.1} parent=5 // pred_check
      _
    $region10: #{tpu_custom_call.1} parent=5 // pred_check_branch
      %380 = sbr.rel (%p377) target = $region12
    $region11: #{tpu_custom_call.1} parent=5 // pred_region
      %s381 = ssub.s32 %s21, 1
      // Predicated region
      $region13: #{tpu_custom_call.1} parent=11 // pred_check
        %p382 = pneg %p68
      $region14: #{tpu_custom_call.1} parent=11 // pred_check_branch
        %384 = sbr.rel (%p382) target = $region16
      $region15: #{tpu_custom_call.1} parent=11 // pred_region
        _
      $region16: #{tpu_custom_call.1} parent=11 // pred_fallthru
        _
      // Predicated region
      $region17: #{tpu_custom_call.1} parent=11 // pred_check
        %p385 = pneg %p89
      $region18: #{tpu_custom_call.1} parent=11 // pred_check_branch
        %387 = sbr.rel (%p385) target = $region20
      $region19: #{tpu_custom_call.1} parent=11 // pred_region
        _
      $region20: #{tpu_custom_call.1} parent=11 // pred_fallthru
        _
      // Predicated region
      $region21: #{tpu_custom_call.1} parent=11 // pred_check
        %p388 = pneg %p110
      $region22: #{tpu_custom_call.1} parent=11 // pred_check_branch
        %390 = sbr.rel (%p388) target = $region24
      $region23: #{tpu_custom_call.1} parent=11 // pred_region
        _
      $region24: #{tpu_custom_call.1} parent=11 // pred_fallthru
        _
      // Predicated region
      $region25: #{tpu_custom_call.1} parent=11 // pred_check
        %p391 = pneg %p131
      $region26: #{tpu_custom_call.1} parent=11 // pred_check_branch
        %393 = sbr.rel (%p391) target = $region28
      $region27: #{tpu_custom_call.1} parent=11 // pred_region
        _
      $region28: #{tpu_custom_call.1} parent=11 // pred_fallthru
        _
      // Predicated region
      $region29: #{tpu_custom_call.1} parent=11 // pred_check
        %p394 = pneg %p152
      $region30: #{tpu_custom_call.1} parent=11 // pred_check_branch
        %396 = sbr.rel (%p394) target = $region32
      $region31: #{tpu_custom_call.1} parent=11 // pred_region
        _
      $region32: #{tpu_custom_call.1} parent=11 // pred_fallthru
        _
      // Predicated region
      $region33: #{tpu_custom_call.1} parent=11 // pred_check
        %p397 = pneg %p173
      $region34: #{tpu_custom_call.1} parent=11 // pred_check_branch
        %399 = sbr.rel (%p397) target = $region36
      $region35: #{tpu_custom_call.1} parent=11 // pred_region
        _
      $region36: #{tpu_custom_call.1} parent=11 // pred_fallthru
        _
      // Predicated region
      $region37: #{tpu_custom_call.1} parent=11 // pred_check
        %p400 = pneg %p194
      $region38: #{tpu_custom_call.1} parent=11 // pred_check_branch
        %402 = sbr.rel (%p400) target = $region40
      $region39: #{tpu_custom_call.1} parent=11 // pred_region
        _
      $region40: #{tpu_custom_call.1} parent=11 // pred_fallthru
        _
      // Predicated region
      $region41: #{tpu_custom_call.1} parent=11 // pred_check
        %p403 = pneg %p215
      $region42: #{tpu_custom_call.1} parent=11 // pred_check_branch
        %405 = sbr.rel (%p403) target = $region44
      $region43: #{tpu_custom_call.1} parent=11 // pred_region
        _
      $region44: #{tpu_custom_call.1} parent=11 // pred_fallthru
        _
      // Predicated region
      $region45: #{tpu_custom_call.1} parent=11 // pred_check
        %p406 = pneg %p236
      $region46: #{tpu_custom_call.1} parent=11 // pred_check_branch
        %408 = sbr.rel (%p406) target = $region48
      $region47: #{tpu_custom_call.1} parent=11 // pred_region
        _
      $region48: #{tpu_custom_call.1} parent=11 // pred_fallthru
        _
      // Predicated region
      $region49: #{tpu_custom_call.1} parent=11 // pred_check
        %p409 = pneg %p257
      $region50: #{tpu_custom_call.1} parent=11 // pred_check_branch
        %411 = sbr.rel (%p409) target = $region52
      $region51: #{tpu_custom_call.1} parent=11 // pred_region
        _
      $region52: #{tpu_custom_call.1} parent=11 // pred_fallthru
        _
      // Predicated region
      $region53: #{tpu_custom_call.1} parent=11 // pred_check
        %p412 = pneg %p278
      $region54: #{tpu_custom_call.1} parent=11 // pred_check_branch
        %414 = sbr.rel (%p412) target = $region56
      $region55: #{tpu_custom_call.1} parent=11 // pred_region
        _
      $region56: #{tpu_custom_call.1} parent=11 // pred_fallthru
        _
      // Predicated region
      $region57: #{tpu_custom_call.1} parent=11 // pred_check
        %p415 = pneg %p299
      $region58: #{tpu_custom_call.1} parent=11 // pred_check_branch
        %417 = sbr.rel (%p415) target = $region60
      $region59: #{tpu_custom_call.1} parent=11 // pred_region
        _
      $region60: #{tpu_custom_call.1} parent=11 // pred_fallthru
        _
      // Predicated region
      $region61: #{tpu_custom_call.1} parent=11 // pred_check
        %p418 = pneg %p320
      $region62: #{tpu_custom_call.1} parent=11 // pred_check_branch
        %420 = sbr.rel (%p418) target = $region64
      $region63: #{tpu_custom_call.1} parent=11 // pred_region
        _
      $region64: #{tpu_custom_call.1} parent=11 // pred_fallthru
        _
      // Predicated region
      $region65: #{tpu_custom_call.1} parent=11 // pred_check
        %p421 = pneg %p341
      $region66: #{tpu_custom_call.1} parent=11 // pred_check_branch
        %423 = sbr.rel (%p421) target = $region68
      $region67: #{tpu_custom_call.1} parent=11 // pred_region
        _
      $region68: #{tpu_custom_call.1} parent=11 // pred_fallthru
        _
    $region12: #{tpu_custom_call.1} parent=5 // pred_fallthru
      _
    %p424 = scmp.lt.s32.totalorder %s21, 2
    // Predicated region
    $region69: #{tpu_custom_call.1} parent=5 // pred_check
      %p425 = pneg %p424
    $region70: #{tpu_custom_call.1} parent=5 // pred_check_branch
      %427 = sbr.rel (%p425) target = $region72
    $region71: #{tpu_custom_call.1} parent=5 // pred_region
      // Predicated region
      $region73: #{tpu_custom_call.1} parent=71 // pred_check
        %p428 = pneg %p41
      $region74: #{tpu_custom_call.1} parent=71 // pred_check_branch
        %430 = sbr.rel (%p428) target = $region76
      $region75: #{tpu_custom_call.1} parent=71 // pred_region
        %p431 = scmp.lt.s32.totalorder %s21, 1
        %s432 = scalar_select %p431, %s21, 1
        %s433 = smul.addr %s432, 4
        %s434 = smul.addr %s433, 8
        %s435 = scalar_lea.vmem %s0, %s434
      $region76: #{tpu_custom_call.1} parent=71 // pred_fallthru
        _
    $region72: #{tpu_custom_call.1} parent=5 // pred_fallthru
      _
    %p436 = scmp.le.s32.totalorder 1, %s21
    %p437 = scmp.lt.s32.totalorder %s21, 3
    %p438 = pnand %p436, %p437
    %p439 = pneg %p438
    // Predicated region
    $region77: #{tpu_custom_call.1} parent=5 // pred_check
      _
    $region78: #{tpu_custom_call.1} parent=5 // pred_check_branch
      %441 = sbr.rel (%p438) target = $region80
    $region79: #{tpu_custom_call.1} parent=5 // pred_region
      %s442 = ssub.s32 %s21, 1
      %p443 = scmp.lt.s32.totalorder %s26, 1
      %s444 = scalar_select %p443, %s26, 1
      %s445 = smul.addr %s444, 4
      %s446 = smul.addr %s445, 8
      %s447 = scalar_lea.vmem %s0, %s446
      %p448 = pneg %p47
      %p449 = pneg %p44
      %p450 = pneg %p68
      %p451 = pneg %p65
      %p452 = pneg %p89
      %p453 = pneg %p86
      %p454 = pneg %p110
      %p455 = pneg %p107
      %p456 = pneg %p131
      %p457 = pneg %p128
      %p458 = pneg %p152
      %p459 = pneg %p149
      %p460 = pneg %p173
      %p461 = pneg %p170
      %p462 = pneg %p194
      %p463 = pneg %p191
      %p464 = pneg %p215
      %p465 = pneg %p212
      %p466 = pneg %p236
      %p467 = pneg %p233
      %p468 = pneg %p257
      %p469 = pneg %p254
      %p470 = pneg %p278
      %p471 = pneg %p275
      %p472 = pneg %p299
      %p473 = pneg %p296
      %p474 = pneg %p320
      %p475 = pneg %p317
      %p476 = pneg %p341
      %p477 = pneg %p338
      %p478 = pneg %p367
      %p479 = pneg %p364
      %p480 = scmp.lt.s32.totalorder %s26, 1
      %s481 = scalar_select %p480, %s26, 1
      %s482 = smul.addr %s481, 8
      %s483 = scalar_lea.vmem %s15, %s482
      %p484 = scmp.lt.s32.totalorder %s26, 1
      %s485 = scalar_select %p484, %s26, 1
      %s486 = smul.addr %s485, 4
      %s487 = smul.addr %s486, 8
      %s488 = scalar_lea.vmem %s0, %s487
      %p489 = scmp.lt.s32.totalorder %s26, 1
      %s490 = scalar_select %p489, %s26, 1
      %s491 = smul.addr %s490, 8
      %s492 = scalar_lea.vmem %s15, %s491
      %v493 = vld [vmem:[%s488] sm:$0xff]
      %v494 = vld [vmem:[%s488 + $0x8] sm:$0xff]
      %v495 = vld [vmem:[%s488 + $0x10] sm:$0xff]
      %v496 = vld [vmem:[%s488 + $0x18] sm:$0xff]
      %v497 = vld [vmem:[%s1] sm:$0xff]
      %v498 = vld [vmem:[%s1 + $0x8] sm:$0xff]
      %v499 = vld [vmem:[%s2] sm:$0xff]
      %v500 = vld [vmem:[%s2 + $0x8] sm:$0xff]
      %v501 = vld [vmem:[%s2 + $0x10] sm:$0xff]
      %v502 = vld [vmem:[%s2 + $0x18] sm:$0xff]
      %v503 = vld [vmem:[%s2 + $0x20] sm:$0xff]
      %v504 = vld [vmem:[%s2 + $0x28] sm:$0xff]
      %v505 = vld [vmem:[%s2 + $0x30] sm:$0xff]
      %v506 = vld [vmem:[%s2 + $0x38] sm:$0xff]
      %v507 = vld [vmem:[%s2 + $0x40] sm:$0xff]
      %v508 = vld [vmem:[%s2 + $0x48] sm:$0xff]
      %v509 = vld [vmem:[%s2 + $0x50] sm:$0xff]
      %v510 = vld [vmem:[%s2 + $0x58] sm:$0xff]
      %v511 = vld [vmem:[%s2 + $0x60] sm:$0xff]
      %v512 = vld [vmem:[%s2 + $0x68] sm:$0xff]
      %v513 = vld [vmem:[%s2 + $0x70] sm:$0xff]
      %v514 = vld [vmem:[%s2 + $0x78] sm:$0xff]
      %515 = vmatpush.msra.mxu0 %v514
      %516 = vmatpush.msra.mxu0 %v513
      %517 = vmatpush.msra.mxu0 %v512
      %518 = vmatpush.msra.mxu0 %v511
      %519 = vmatpush.msra.mxu0 %v510
      %520 = vmatpush.msra.mxu0 %v509
      %521 = vmatpush.msra.mxu0 %v508
      %522 = vmatpush.msra.mxu0 %v507
      %523 = vmatpush.msra.mxu0 %v506
      %524 = vmatpush.msra.mxu0 %v505
      %525 = vmatpush.msra.mxu0 %v504
      %526 = vmatpush.msra.mxu0 %v503
      %527 = vmatpush.msra.mxu0 %v502
      %528 = vmatpush.msra.mxu0 %v501
      %529 = vmatpush.msra.mxu0 %v500
      %530 = vmatpush.msra.mxu0 %v499
      %531 = vmatmul.f32.gmra.mxu0 %v493
      %v532 = vpop.f32.mrf.mxu0
      %v533 = vadd.f32 0.0, %v532
      %534 = vmatmul.f32.gmra.mxu0 %v494
      %v535 = vpop.f32.mrf.mxu0
      %v536 = vadd.f32 0.0, %v535
      %537 = vmatmul.f32.gmra.mxu0 %v495
      %v538 = vpop.f32.mrf.mxu0
      %v539 = vadd.f32 0.0, %v538
      %540 = vmatmul.f32.gmra.mxu0 %v496
      %v541 = vpop.f32.mrf.mxu0
      %v542 = vadd.f32 0.0, %v541
      %543 = vdwg.mxu0
      %s544 = scalar_lea.vmem %s1, 16
      %v545 = vld [vmem:[%s544] sm:$0xff]
      %v546 = vld [vmem:[%s544 + $0x8] sm:$0xff]
      %s547 = scalar_lea.vmem %s2, 128
      %v548 = vld [vmem:[%s547] sm:$0xff]
      %v549 = vld [vmem:[%s547 + $0x8] sm:$0xff]
      %v550 = vld [vmem:[%s547 + $0x10] sm:$0xff]
      %v551 = vld [vmem:[%s547 + $0x18] sm:$0xff]
      %v552 = vld [vmem:[%s547 + $0x20] sm:$0xff]
      %v553 = vld [vmem:[%s547 + $0x28] sm:$0xff]
      %v554 = vld [vmem:[%s547 + $0x30] sm:$0xff]
      %v555 = vld [vmem:[%s547 + $0x38] sm:$0xff]
      %v556 = vld [vmem:[%s547 + $0x40] sm:$0xff]
      %v557 = vld [vmem:[%s547 + $0x48] sm:$0xff]
      %v558 = vld [vmem:[%s547 + $0x50] sm:$0xff]
      %v559 = vld [vmem:[%s547 + $0x58] sm:$0xff]
      %v560 = vld [vmem:[%s547 + $0x60] sm:$0xff]
      %v561 = vld [vmem:[%s547 + $0x68] sm:$0xff]
      %v562 = vld [vmem:[%s547 + $0x70] sm:$0xff]
      %v563 = vld [vmem:[%s547 + $0x78] sm:$0xff]
      %564 = vmatpush.msra.mxu0 %v563
      %565 = vmatpush.msra.mxu0 %v562
      %566 = vmatpush.msra.mxu0 %v561
      %567 = vmatpush.msra.mxu0 %v560
      %568 = vmatpush.msra.mxu0 %v559
      %569 = vmatpush.msra.mxu0 %v558
      %570 = vmatpush.msra.mxu0 %v557
      %571 = vmatpush.msra.mxu0 %v556
      %572 = vmatpush.msra.mxu0 %v555
      %573 = vmatpush.msra.mxu0 %v554
      %574 = vmatpush.msra.mxu0 %v553
      %575 = vmatpush.msra.mxu0 %v552
      %576 = vmatpush.msra.mxu0 %v551
      %577 = vmatpush.msra.mxu0 %v550
      %578 = vmatpush.msra.mxu0 %v549
      %579 = vmatpush.msra.mxu0 %v548
      %580 = vmatmul.f32.gmra.mxu0 %v493
      %v581 = vpop.f32.mrf.mxu0
      %v582 = vadd.f32 0.0, %v581
      %583 = vmatmul.f32.gmra.mxu0 %v494
      %v584 = vpop.f32.mrf.mxu0
      %v585 = vadd.f32 0.0, %v584
      %586 = vmatmul.f32.gmra.mxu0 %v495
      %v587 = vpop.f32.mrf.mxu0
      %v588 = vadd.f32 0.0, %v587
      %589 = vmatmul.f32.gmra.mxu0 %v496
      %v590 = vpop.f32.mrf.mxu0
      %v591 = vadd.f32 0.0, %v590
      %592 = vdwg.mxu0
      %vm593 = vcmask 261120
      %v595 = vsel %vm593, %v545, 0
      %v598 = vsel %vm593, %v546, 0
      %600 = vmatpush.msra.mxu0 0.0
      %601 = vmatpush.msra.mxu0 0.0
      %602 = vmatpush.msra.mxu0 0.0
      %603 = vmatpush.msra.mxu0 0.0
      %604 = vmatpush.msra.mxu0 0.0
      %605 = vmatpush.msra.mxu0 0.0
      %606 = vmatpush.msra.mxu0 0.0
      %607 = vmatpush.msra.mxu0 0.0
      %608 = vmatpush.msra.mxu0 0.0
      %609 = vmatpush.msra.mxu0 0.0
      %610 = vmatpush.msra.mxu0 0.0
      %611 = vmatpush.msra.mxu0 0.0
      %612 = vmatpush.msra.mxu0 %v591
      %613 = vmatpush.msra.mxu0 %v588
      %614 = vmatpush.msra.mxu0 %v585
      %615 = vmatpush.msra.mxu0 %v582
      %616 = vmatmul.f32.gmra.mxu0 %v595
      %v617 = vpop.f32.mrf.mxu0
      %v618 = vadd.f32 0.0, %v617
      %619 = vmatmul.f32.gmra.mxu0 %v598
      %v620 = vpop.f32.mrf.mxu0
      %v621 = vadd.f32 0.0, %v620
      %622 = vdwg.mxu0
      %v624 = vsel %vm593, %v497, 0
      %v627 = vsel %vm593, %v498, 0
      %629 = vmatpush.msra.mxu0 0.0
      %630 = vmatpush.msra.mxu0 0.0
      %631 = vmatpush.msra.mxu0 0.0
      %632 = vmatpush.msra.mxu0 0.0
      %633 = vmatpush.msra.mxu0 0.0
      %634 = vmatpush.msra.mxu0 0.0
      %635 = vmatpush.msra.mxu0 0.0
      %636 = vmatpush.msra.mxu0 0.0
      %637 = vmatpush.msra.mxu0 0.0
      %638 = vmatpush.msra.mxu0 0.0
      %639 = vmatpush.msra.mxu0 0.0
      %640 = vmatpush.msra.mxu0 0.0
      %641 = vmatpush.msra.mxu0 %v542
      %642 = vmatpush.msra.mxu0 %v539
      %643 = vmatpush.msra.mxu0 %v536
      %644 = vmatpush.msra.mxu0 %v533
      %645 = vmatmul.f32.gmra.mxu0 %v624
      %v646 = vpop.f32.mrf.mxu0
      %v647 = vadd.f32 %v618, %v646
      %648 = vmatmul.f32.gmra.mxu0 %v627
      %v649 = vpop.f32.mrf.mxu0
      %v650 = vadd.f32 %v621, %v649
      %651 = vdwg.mxu0
      %s652 = scalar_lea.vmem %s1, 32
      %v653 = vld [vmem:[%s652] sm:$0xff]
      %v654 = vld [vmem:[%s652 + $0x8] sm:$0xff]
      %s655 = scalar_lea.vmem %s2, 256
      %v656 = vld [vmem:[%s655] sm:$0xff]
      %v657 = vld [vmem:[%s655 + $0x8] sm:$0xff]
      %v658 = vld [vmem:[%s655 + $0x10] sm:$0xff]
      %v659 = vld [vmem:[%s655 + $0x18] sm:$0xff]
      %v660 = vld [vmem:[%s655 + $0x20] sm:$0xff]
      %v661 = vld [vmem:[%s655 + $0x28] sm:$0xff]
      %v662 = vld [vmem:[%s655 + $0x30] sm:$0xff]
      %v663 = vld [vmem:[%s655 + $0x38] sm:$0xff]
      %v664 = vld [vmem:[%s655 + $0x40] sm:$0xff]
      %v665 = vld [vmem:[%s655 + $0x48] sm:$0xff]
      %v666 = vld [vmem:[%s655 + $0x50] sm:$0xff]
      %v667 = vld [vmem:[%s655 + $0x58] sm:$0xff]
      %v668 = vld [vmem:[%s655 + $0x60] sm:$0xff]
      %v669 = vld [vmem:[%s655 + $0x68] sm:$0xff]
      %v670 = vld [vmem:[%s655 + $0x70] sm:$0xff]
      %v671 = vld [vmem:[%s655 + $0x78] sm:$0xff]
      %672 = vmatpush.msra.mxu0 %v671
      %673 = vmatpush.msra.mxu0 %v670
      %674 = vmatpush.msra.mxu0 %v669
      %675 = vmatpush.msra.mxu0 %v668
      %676 = vmatpush.msra.mxu0 %v667
      %677 = vmatpush.msra.mxu0 %v666
      %678 = vmatpush.msra.mxu0 %v665
      %679 = vmatpush.msra.mxu0 %v664
      %680 = vmatpush.msra.mxu0 %v663
      %681 = vmatpush.msra.mxu0 %v662
      %682 = vmatpush.msra.mxu0 %v661
      %683 = vmatpush.msra.mxu0 %v660
      %684 = vmatpush.msra.mxu0 %v659
      %685 = vmatpush.msra.mxu0 %v658
      %686 = vmatpush.msra.mxu0 %v657
      %687 = vmatpush.msra.mxu0 %v656
      %688 = vmatmul.f32.gmra.mxu0 %v493
      %v689 = vpop.f32.mrf.mxu0
      %v690 = vadd.f32 0.0, %v689
      %691 = vmatmul.f32.gmra.mxu0 %v494
      %v692 = vpop.f32.mrf.mxu0
      %v693 = vadd.f32 0.0, %v692
      %694 = vmatmul.f32.gmra.mxu0 %v495
      %v695 = vpop.f32.mrf.mxu0
      %v696 = vadd.f32 0.0, %v695
      %697 = vmatmul.f32.gmra.mxu0 %v496
      %v698 = vpop.f32.mrf.mxu0
      %v699 = vadd.f32 0.0, %v698
      %700 = vdwg.mxu0
      %v702 = vsel %vm593, %v653, 0
      %v705 = vsel %vm593, %v654, 0
      %707 = vmatpush.msra.mxu0 0.0
      %708 = vmatpush.msra.mxu0 0.0
      %709 = vmatpush.msra.mxu0 0.0
      %710 = vmatpush.msra.mxu0 0.0
      %711 = vmatpush.msra.mxu0 0.0
      %712 = vmatpush.msra.mxu0 0.0
      %713 = vmatpush.msra.mxu0 0.0
      %714 = vmatpush.msra.mxu0 0.0
      %715 = vmatpush.msra.mxu0 0.0
      %716 = vmatpush.msra.mxu0 0.0
      %717 = vmatpush.msra.mxu0 0.0
      %718 = vmatpush.msra.mxu0 0.0
      %719 = vmatpush.msra.mxu0 %v699
      %720 = vmatpush.msra.mxu0 %v696
      %721 = vmatpush.msra.mxu0 %v693
      %722 = vmatpush.msra.mxu0 %v690
      %723 = vmatmul.f32.gmra.mxu0 %v702
      %v724 = vpop.f32.mrf.mxu0
      %v725 = vadd.f32 0.0, %v724
      %726 = vmatmul.f32.gmra.mxu0 %v705
      %v727 = vpop.f32.mrf.mxu0
      %v728 = vadd.f32 0.0, %v727
      %729 = vdwg.mxu0
      %v730 = vadd.f32 %v647, %v725
      %v731 = vadd.f32 %v650, %v728
      %s732 = scalar_lea.vmem %s1, 48
      %v733 = vld [vmem:[%s732] sm:$0xff]
      %v734 = vld [vmem:[%s732 + $0x8] sm:$0xff]
      %s735 = scalar_lea.vmem %s2, 384
      %v736 = vld [vmem:[%s735] sm:$0xff]
      %v737 = vld [vmem:[%s735 + $0x8] sm:$0xff]
      %v738 = vld [vmem:[%s735 + $0x10] sm:$0xff]
      %v739 = vld [vmem:[%s735 + $0x18] sm:$0xff]
      %v740 = vld [vmem:[%s735 + $0x20] sm:$0xff]
      %v741 = vld [vmem:[%s735 + $0x28] sm:$0xff]
      %v742 = vld [vmem:[%s735 + $0x30] sm:$0xff]
      %v743 = vld [vmem:[%s735 + $0x38] sm:$0xff]
      %v744 = vld [vmem:[%s735 + $0x40] sm:$0xff]
      %v745 = vld [vmem:[%s735 + $0x48] sm:$0xff]
      %v746 = vld [vmem:[%s735 + $0x50] sm:$0xff]
      %v747 = vld [vmem:[%s735 + $0x58] sm:$0xff]
      %v748 = vld [vmem:[%s735 + $0x60] sm:$0xff]
      %v749 = vld [vmem:[%s735 + $0x68] sm:$0xff]
      %v750 = vld [vmem:[%s735 + $0x70] sm:$0xff]
      %v751 = vld [vmem:[%s735 + $0x78] sm:$0xff]
      %752 = vmatpush.msra.mxu0 %v751
      %753 = vmatpush.msra.mxu0 %v750
      %754 = vmatpush.msra.mxu0 %v749
      %755 = vmatpush.msra.mxu0 %v748
      %756 = vmatpush.msra.mxu0 %v747
      %757 = vmatpush.msra.mxu0 %v746
      %758 = vmatpush.msra.mxu0 %v745
      %759 = vmatpush.msra.mxu0 %v744
      %760 = vmatpush.msra.mxu0 %v743
      %761 = vmatpush.msra.mxu0 %v742
      %762 = vmatpush.msra.mxu0 %v741
      %763 = vmatpush.msra.mxu0 %v740
      %764 = vmatpush.msra.mxu0 %v739
      %765 = vmatpush.msra.mxu0 %v738
      %766 = vmatpush.msra.mxu0 %v737
      %767 = vmatpush.msra.mxu0 %v736
      %768 = vmatmul.f32.gmra.mxu0 %v493
      %v769 = vpop.f32.mrf.mxu0
      %v770 = vadd.f32 0.0, %v769
      %771 = vmatmul.f32.gmra.mxu0 %v494
      %v772 = vpop.f32.mrf.mxu0
      %v773 = vadd.f32 0.0, %v772
      %774 = vmatmul.f32.gmra.mxu0 %v495
      %v775 = vpop.f32.mrf.mxu0
      %v776 = vadd.f32 0.0, %v775
      %777 = vmatmul.f32.gmra.mxu0 %v496
      %v778 = vpop.f32.mrf.mxu0
      %v779 = vadd.f32 0.0, %v778
      %780 = vdwg.mxu0
      %v782 = vsel %vm593, %v733, 0
      %v785 = vsel %vm593, %v734, 0
      %787 = vmatpush.msra.mxu0 0.0
      %788 = vmatpush.msra.mxu0 0.0
      %789 = vmatpush.msra.mxu0 0.0
      %790 = vmatpush.msra.mxu0 0.0
      %791 = vmatpush.msra.mxu0 0.0
      %792 = vmatpush.msra.mxu0 0.0
      %793 = vmatpush.msra.mxu0 0.0
      %794 = vmatpush.msra.mxu0 0.0
      %795 = vmatpush.msra.mxu0 0.0
      %796 = vmatpush.msra.mxu0 0.0
      %797 = vmatpush.msra.mxu0 0.0
      %798 = vmatpush.msra.mxu0 0.0
      %799 = vmatpush.msra.mxu0 %v779
      %800 = vmatpush.msra.mxu0 %v776
      %801 = vmatpush.msra.mxu0 %v773
      %802 = vmatpush.msra.mxu0 %v770
      %803 = vmatmul.f32.gmra.mxu0 %v782
      %v804 = vpop.f32.mrf.mxu0
      %v805 = vadd.f32 0.0, %v804
      %806 = vmatmul.f32.gmra.mxu0 %v785
      %v807 = vpop.f32.mrf.mxu0
      %v808 = vadd.f32 0.0, %v807
      %809 = vdwg.mxu0
      %v810 = vadd.f32 %v730, %v805
      %v811 = vadd.f32 %v731, %v808
      %v812 = vld [vmem:[%s3] sm:$0x1]
      %v814 = vperm.slane %v812, 0
      %v816 = vadd.f32 %v810, %v814
      %v817 = vadd.f32 %v811, %v814
      %vm818 = vcmp.ge.f32.partialorder %v816, 0.0
      %vm819 = vcmp.ge.f32.partialorder %v817, 0.0
      %v820 = vmul.f32 %v816, 0.2
      %v821 = vmul.f32 %v817, 0.2
      %v822 = vsel %vm818, %v816, %v820
      %v823 = vsel %vm819, %v817, %v821
      %v824 = vld [vmem:[%s4] sm:$0xff]
      %v825 = vld [vmem:[%s5] sm:$0xff]
      %v826 = vld [vmem:[%s5 + $0x8] sm:$0xff]
      %v827 = vld [vmem:[%s5 + $0x10] sm:$0xff]
      %v828 = vld [vmem:[%s5 + $0x18] sm:$0xff]
      %v829 = vld [vmem:[%s5 + $0x20] sm:$0xff]
      %v830 = vld [vmem:[%s5 + $0x28] sm:$0xff]
      %v831 = vld [vmem:[%s5 + $0x30] sm:$0xff]
      %v832 = vld [vmem:[%s5 + $0x38] sm:$0xff]
      %v833 = vld [vmem:[%s5 + $0x40] sm:$0xff]
      %v834 = vld [vmem:[%s5 + $0x48] sm:$0xff]
      %v835 = vld [vmem:[%s5 + $0x50] sm:$0xff]
      %v836 = vld [vmem:[%s5 + $0x58] sm:$0xff]
      %v837 = vld [vmem:[%s5 + $0x60] sm:$0xff]
      %v838 = vld [vmem:[%s5 + $0x68] sm:$0xff]
      %v839 = vld [vmem:[%s5 + $0x70] sm:$0xff]
      %v840 = vld [vmem:[%s5 + $0x78] sm:$0xff]
      %841 = vmatpush.msra.mxu0 %v840
      %842 = vmatpush.msra.mxu0 %v839
      %843 = vmatpush.msra.mxu0 %v838
      %844 = vmatpush.msra.mxu0 %v837
      %845 = vmatpush.msra.mxu0 %v836
      %846 = vmatpush.msra.mxu0 %v835
      %847 = vmatpush.msra.mxu0 %v834
      %848 = vmatpush.msra.mxu0 %v833
      %849 = vmatpush.msra.mxu0 %v832
      %850 = vmatpush.msra.mxu0 %v831
      %851 = vmatpush.msra.mxu0 %v830
      %852 = vmatpush.msra.mxu0 %v829
      %853 = vmatpush.msra.mxu0 %v828
      %854 = vmatpush.msra.mxu0 %v827
      %855 = vmatpush.msra.mxu0 %v826
      %856 = vmatpush.msra.mxu0 %v825
      %857 = vmatmul.f32.gmra.mxu0 %v822
      %v858 = vpop.f32.mrf.mxu0
      %v859 = vadd.f32 0.0, %v858
      %860 = vmatmul.f32.gmra.mxu0 %v823
      %v861 = vpop.f32.mrf.mxu0
      %v862 = vadd.f32 0.0, %v861
      %863 = vdwg.mxu0
      %s864 = scalar_lea.vmem %s4, 8
      %v865 = vld [vmem:[%s864] sm:$0xff]
      %s866 = scalar_lea.vmem %s5, 128
      %v867 = vld [vmem:[%s866] sm:$0xff]
      %v868 = vld [vmem:[%s866 + $0x8] sm:$0xff]
      %v869 = vld [vmem:[%s866 + $0x10] sm:$0xff]
      %v870 = vld [vmem:[%s866 + $0x18] sm:$0xff]
      %v871 = vld [vmem:[%s866 + $0x20] sm:$0xff]
      %v872 = vld [vmem:[%s866 + $0x28] sm:$0xff]
      %v873 = vld [vmem:[%s866 + $0x30] sm:$0xff]
      %v874 = vld [vmem:[%s866 + $0x38] sm:$0xff]
      %v875 = vld [vmem:[%s866 + $0x40] sm:$0xff]
      %v876 = vld [vmem:[%s866 + $0x48] sm:$0xff]
      %v877 = vld [vmem:[%s866 + $0x50] sm:$0xff]
      %v878 = vld [vmem:[%s866 + $0x58] sm:$0xff]
      %v879 = vld [vmem:[%s866 + $0x60] sm:$0xff]
      %v880 = vld [vmem:[%s866 + $0x68] sm:$0xff]
      %v881 = vld [vmem:[%s866 + $0x70] sm:$0xff]
      %v882 = vld [vmem:[%s866 + $0x78] sm:$0xff]
      %883 = vmatpush.msra.mxu0 %v882
      %884 = vmatpush.msra.mxu0 %v881
      %885 = vmatpush.msra.mxu0 %v880
      %886 = vmatpush.msra.mxu0 %v879
      %887 = vmatpush.msra.mxu0 %v878
      %888 = vmatpush.msra.mxu0 %v877
      %889 = vmatpush.msra.mxu0 %v876
      %890 = vmatpush.msra.mxu0 %v875
      %891 = vmatpush.msra.mxu0 %v874
      %892 = vmatpush.msra.mxu0 %v873
      %893 = vmatpush.msra.mxu0 %v872
      %894 = vmatpush.msra.mxu0 %v871
      %895 = vmatpush.msra.mxu0 %v870
      %896 = vmatpush.msra.mxu0 %v869
      %897 = vmatpush.msra.mxu0 %v868
      %898 = vmatpush.msra.mxu0 %v867
      %899 = vmatmul.f32.gmra.mxu0 %v822
      %v900 = vpop.f32.mrf.mxu0
      %v901 = vadd.f32 0.0, %v900
      %902 = vmatmul.f32.gmra.mxu0 %v823
      %v903 = vpop.f32.mrf.mxu0
      %v904 = vadd.f32 0.0, %v903
      %905 = vdwg.mxu0
      %vm906 = vcmask 130048
      %v908 = vsel %vm906, %v865, 0
      %910 = vmatpush.msra.mxu0 0.0
      %911 = vmatpush.msra.mxu0 0.0
      %912 = vmatpush.msra.mxu0 0.0
      %913 = vmatpush.msra.mxu0 0.0
      %914 = vmatpush.msra.mxu0 0.0
      %915 = vmatpush.msra.mxu0 0.0
      %916 = vmatpush.msra.mxu0 0.0
      %917 = vmatpush.msra.mxu0 0.0
      %918 = vmatpush.msra.mxu0 0.0
      %919 = vmatpush.msra.mxu0 0.0
      %920 = vmatpush.msra.mxu0 0.0
      %921 = vmatpush.msra.mxu0 0.0
      %922 = vmatpush.msra.mxu0 0.0
      %923 = vmatpush.msra.mxu0 0.0
      %924 = vmatpush.msra.mxu0 %v904
      %925 = vmatpush.msra.mxu0 %v901
      %926 = vmatmul.f32.gmra.mxu0 %v908
      %v927 = vpop.f32.mrf.mxu0
      %v928 = vadd.f32 0.0, %v927
      %929 = vdwg.mxu0
      %v931 = vsel %vm906, %v824, 0
      %933 = vmatpush.msra.mxu0 0.0
      %934 = vmatpush.msra.mxu0 0.0
      %935 = vmatpush.msra.mxu0 0.0
      %936 = vmatpush.msra.mxu0 0.0
      %937 = vmatpush.msra.mxu0 0.0
      %938 = vmatpush.msra.mxu0 0.0
      %939 = vmatpush.msra.mxu0 0.0
      %940 = vmatpush.msra.mxu0 0.0
      %941 = vmatpush.msra.mxu0 0.0
      %942 = vmatpush.msra.mxu0 0.0
      %943 = vmatpush.msra.mxu0 0.0
      %944 = vmatpush.msra.mxu0 0.0
      %945 = vmatpush.msra.mxu0 0.0
      %946 = vmatpush.msra.mxu0 0.0
      %947 = vmatpush.msra.mxu0 %v862
      %948 = vmatpush.msra.mxu0 %v859
      %949 = vmatmul.f32.gmra.mxu0 %v931
      %v950 = vpop.f32.mrf.mxu0
      %v951 = vadd.f32 %v928, %v950
      %952 = vdwg.mxu0
      %s953 = scalar_lea.vmem %s4, 16
      %v954 = vld [vmem:[%s953] sm:$0xff]
      %s955 = scalar_lea.vmem %s5, 256
      %v956 = vld [vmem:[%s955] sm:$0xff]
      %v957 = vld [vmem:[%s955 + $0x8] sm:$0xff]
      %v958 = vld [vmem:[%s955 + $0x10] sm:$0xff]
      %v959 = vld [vmem:[%s955 + $0x18] sm:$0xff]
      %v960 = vld [vmem:[%s955 + $0x20] sm:$0xff]
      %v961 = vld [vmem:[%s955 + $0x28] sm:$0xff]
      %v962 = vld [vmem:[%s955 + $0x30] sm:$0xff]
      %v963 = vld [vmem:[%s955 + $0x38] sm:$0xff]
      %v964 = vld [vmem:[%s955 + $0x40] sm:$0xff]
      %v965 = vld [vmem:[%s955 + $0x48] sm:$0xff]
      %v966 = vld [vmem:[%s955 + $0x50] sm:$0xff]
      %v967 = vld [vmem:[%s955 + $0x58] sm:$0xff]
      %v968 = vld [vmem:[%s955 + $0x60] sm:$0xff]
      %v969 = vld [vmem:[%s955 + $0x68] sm:$0xff]
      %v970 = vld [vmem:[%s955 + $0x70] sm:$0xff]
      %v971 = vld [vmem:[%s955 + $0x78] sm:$0xff]
      %972 = vmatpush.msra.mxu0 %v971
      %973 = vmatpush.msra.mxu0 %v970
      %974 = vmatpush.msra.mxu0 %v969
      %975 = vmatpush.msra.mxu0 %v968
      %976 = vmatpush.msra.mxu0 %v967
      %977 = vmatpush.msra.mxu0 %v966
      %978 = vmatpush.msra.mxu0 %v965
      %979 = vmatpush.msra.mxu0 %v964
      %980 = vmatpush.msra.mxu0 %v963
      %981 = vmatpush.msra.mxu0 %v962
      %982 = vmatpush.msra.mxu0 %v961
      %983 = vmatpush.msra.mxu0 %v960
      %984 = vmatpush.msra.mxu0 %v959
      %985 = vmatpush.msra.mxu0 %v958
      %986 = vmatpush.msra.mxu0 %v957
      %987 = vmatpush.msra.mxu0 %v956
      %988 = vmatmul.f32.gmra.mxu0 %v822
      %v989 = vpop.f32.mrf.mxu0
      %v990 = vadd.f32 0.0, %v989
      %991 = vmatmul.f32.gmra.mxu0 %v823
      %v992 = vpop.f32.mrf.mxu0
      %v993 = vadd.f32 0.0, %v992
      %994 = vdwg.mxu0
      %v996 = vsel %vm906, %v954, 0
      %998 = vmatpush.msra.mxu0 0.0
      %999 = vmatpush.msra.mxu0 0.0
      %1000 = vmatpush.msra.mxu0 0.0
      %1001 = vmatpush.msra.mxu0 0.0
      %1002 = vmatpush.msra.mxu0 0.0
      %1003 = vmatpush.msra.mxu0 0.0
      %1004 = vmatpush.msra.mxu0 0.0
      %1005 = vmatpush.msra.mxu0 0.0
      %1006 = vmatpush.msra.mxu0 0.0
      %1007 = vmatpush.msra.mxu0 0.0
      %1008 = vmatpush.msra.mxu0 0.0
      %1009 = vmatpush.msra.mxu0 0.0
      %1010 = vmatpush.msra.mxu0 0.0
      %1011 = vmatpush.msra.mxu0 0.0
      %1012 = vmatpush.msra.mxu0 %v993
      %1013 = vmatpush.msra.mxu0 %v990
      %1014 = vmatmul.f32.gmra.mxu0 %v996
      %v1015 = vpop.f32.mrf.mxu0
      %v1016 = vadd.f32 0.0, %v1015
      %1017 = vdwg.mxu0
      %v1018 = vadd.f32 %v951, %v1016
      %s1019 = scalar_lea.vmem %s4, 24
      %v1020 = vld [vmem:[%s1019] sm:$0xff]
      %s1021 = scalar_lea.vmem %s5, 384
      %v1022 = vld [vmem:[%s1021] sm:$0xff]
      %v1023 = vld [vmem:[%s1021 + $0x8] sm:$0xff]
      %v1024 = vld [vmem:[%s1021 + $0x10] sm:$0xff]
      %v1025 = vld [vmem:[%s1021 + $0x18] sm:$0xff]
      %v1026 = vld [vmem:[%s1021 + $0x20] sm:$0xff]
      %v1027 = vld [vmem:[%s1021 + $0x28] sm:$0xff]
      %v1028 = vld [vmem:[%s1021 + $0x30] sm:$0xff]
      %v1029 = vld [vmem:[%s1021 + $0x38] sm:$0xff]
      %v1030 = vld [vmem:[%s1021 + $0x40] sm:$0xff]
      %v1031 = vld [vmem:[%s1021 + $0x48] sm:$0xff]
      %v1032 = vld [vmem:[%s1021 + $0x50] sm:$0xff]
      %v1033 = vld [vmem:[%s1021 + $0x58] sm:$0xff]
      %v1034 = vld [vmem:[%s1021 + $0x60] sm:$0xff]
      %v1035 = vld [vmem:[%s1021 + $0x68] sm:$0xff]
      %v1036 = vld [vmem:[%s1021 + $0x70] sm:$0xff]
      %v1037 = vld [vmem:[%s1021 + $0x78] sm:$0xff]
      %1038 = vmatpush.msra.mxu0 %v1037
      %1039 = vmatpush.msra.mxu0 %v1036
      %1040 = vmatpush.msra.mxu0 %v1035
      %1041 = vmatpush.msra.mxu0 %v1034
      %1042 = vmatpush.msra.mxu0 %v1033
      %1043 = vmatpush.msra.mxu0 %v1032
      %1044 = vmatpush.msra.mxu0 %v1031
      %1045 = vmatpush.msra.mxu0 %v1030
      %1046 = vmatpush.msra.mxu0 %v1029
      %1047 = vmatpush.msra.mxu0 %v1028
      %1048 = vmatpush.msra.mxu0 %v1027
      %1049 = vmatpush.msra.mxu0 %v1026
      %1050 = vmatpush.msra.mxu0 %v1025
      %1051 = vmatpush.msra.mxu0 %v1024
      %1052 = vmatpush.msra.mxu0 %v1023
      %1053 = vmatpush.msra.mxu0 %v1022
      %1054 = vmatmul.f32.gmra.mxu0 %v822
      %v1055 = vpop.f32.mrf.mxu0
      %v1056 = vadd.f32 0.0, %v1055
      %1057 = vmatmul.f32.gmra.mxu0 %v823
      %v1058 = vpop.f32.mrf.mxu0
      %v1059 = vadd.f32 0.0, %v1058
      %1060 = vdwg.mxu0
      %v1062 = vsel %vm906, %v1020, 0
      %1064 = vmatpush.msra.mxu0 0.0
      %1065 = vmatpush.msra.mxu0 0.0
      %1066 = vmatpush.msra.mxu0 0.0
      %1067 = vmatpush.msra.mxu0 0.0
      %1068 = vmatpush.msra.mxu0 0.0
      %1069 = vmatpush.msra.mxu0 0.0
      %1070 = vmatpush.msra.mxu0 0.0
      %1071 = vmatpush.msra.mxu0 0.0
      %1072 = vmatpush.msra.mxu0 0.0
      %1073 = vmatpush.msra.mxu0 0.0
      %1074 = vmatpush.msra.mxu0 0.0
      %1075 = vmatpush.msra.mxu0 0.0
      %1076 = vmatpush.msra.mxu0 0.0
      %1077 = vmatpush.msra.mxu0 0.0
      %1078 = vmatpush.msra.mxu0 %v1059
      %1079 = vmatpush.msra.mxu0 %v1056
      %1080 = vmatmul.f32.gmra.mxu0 %v1062
      %v1081 = vpop.f32.mrf.mxu0
      %v1082 = vadd.f32 0.0, %v1081
      %1083 = vdwg.mxu0
      %v1084 = vadd.f32 %v1018, %v1082
      %v1085 = vrot.slane %v1084, 4
      %v1086 = vadd.f32 %v1084, %v1085
      %v1087 = vrot.slane %v1086, 2
      %v1088 = vadd.f32 %v1086, %v1087
      %v1089 = vrot.slane %v1088, 1
      %v1090 = vadd.f32 %v1088, %v1089
      %v1091 = vld [vmem:[%s6] sm:$0xff]
      %v1092 = vld [vmem:[%s6 + $0x8] sm:$0xff]
      %v1093 = vld [vmem:[%s6 + $0x10] sm:$0xff]
      %v1094 = vld [vmem:[%s6 + $0x18] sm:$0xff]
      %v1095 = vld [vmem:[%s6 + $0x20] sm:$0xff]
      %v1096 = vld [vmem:[%s6 + $0x28] sm:$0xff]
      %v1097 = vld [vmem:[%s6 + $0x30] sm:$0xff]
      %v1098 = vld [vmem:[%s6 + $0x38] sm:$0xff]
      %v1099 = vld [vmem:[%s6 + $0x40] sm:$0xff]
      %v1100 = vld [vmem:[%s6 + $0x48] sm:$0xff]
      %v1101 = vld [vmem:[%s6 + $0x50] sm:$0xff]
      %v1102 = vld [vmem:[%s6 + $0x58] sm:$0xff]
      %v1103 = vld [vmem:[%s6 + $0x60] sm:$0xff]
      %v1104 = vld [vmem:[%s6 + $0x68] sm:$0xff]
      %v1105 = vld [vmem:[%s6 + $0x70] sm:$0xff]
      %v1106 = vld [vmem:[%s6 + $0x78] sm:$0xff]
      %1107 = vmatpush.msra.mxu0 %v1106
      %1108 = vmatpush.msra.mxu0 %v1105
      %1109 = vmatpush.msra.mxu0 %v1104
      %1110 = vmatpush.msra.mxu0 %v1103
      %1111 = vmatpush.msra.mxu0 %v1102
      %1112 = vmatpush.msra.mxu0 %v1101
      %1113 = vmatpush.msra.mxu0 %v1100
      %1114 = vmatpush.msra.mxu0 %v1099
      %1115 = vmatpush.msra.mxu0 %v1098
      %1116 = vmatpush.msra.mxu0 %v1097
      %1117 = vmatpush.msra.mxu0 %v1096
      %1118 = vmatpush.msra.mxu0 %v1095
      %1119 = vmatpush.msra.mxu0 %v1094
      %1120 = vmatpush.msra.mxu0 %v1093
      %1121 = vmatpush.msra.mxu0 %v1092
      %1122 = vmatpush.msra.mxu0 %v1091
      %1123 = vmatmul.f32.gmra.mxu0 %v1090
      %v1124 = vpop.f32.mrf.mxu0
      %v1125 = vadd.f32 0.0, %v1124
      %1126 = vdwg.mxu0
      %v1127 = vmul.f32 %v1125, 0.015625
      %v1128 = vld [vmem:[%s7] sm:$0xff]
      %v1129 = vld [vmem:[%s7 + $0x8] sm:$0xff]
      %v1131 = vsel %vm906, %v1127, 0
      %1133 = vmatpush.msra.mxu0 0.0
      %1134 = vmatpush.msra.mxu0 0.0
      %1135 = vmatpush.msra.mxu0 0.0
      %1136 = vmatpush.msra.mxu0 0.0
      %1137 = vmatpush.msra.mxu0 0.0
      %1138 = vmatpush.msra.mxu0 0.0
      %1139 = vmatpush.msra.mxu0 0.0
      %1140 = vmatpush.msra.mxu0 0.0
      %1141 = vmatpush.msra.mxu0 0.0
      %1142 = vmatpush.msra.mxu0 0.0
      %1143 = vmatpush.msra.mxu0 0.0
      %1144 = vmatpush.msra.mxu0 0.0
      %1145 = vmatpush.msra.mxu0 0.0
      %1146 = vmatpush.msra.mxu0 0.0
      %1147 = vmatpush.msra.mxu0 %v1129
      %1148 = vmatpush.msra.mxu0 %v1128
      %1149 = vmatmul.f32.gmra.mxu0 %v1131
      %v1150 = vpop.f32.mrf.mxu0
      %v1151 = vadd.f32 0.0, %v1150
      %1152 = vdwg.mxu0
      %v1153 = vperm.slane %v1151, 0
      %v1154 = vsub.f32 %v1084, %v1153
      %v1155 = vmul.f32 %v1154, %v1154
      %v1156 = vrot.slane %v1155, 4
      %v1157 = vadd.f32 %v1155, %v1156
      %v1158 = vrot.slane %v1157, 2
      %v1159 = vadd.f32 %v1157, %v1158
      %v1160 = vrot.slane %v1159, 1
      %v1161 = vadd.f32 %v1159, %v1160
      %1162 = vmatpush.msra.mxu0 %v1106
      %1163 = vmatpush.msra.mxu0 %v1105
      %1164 = vmatpush.msra.mxu0 %v1104
      %1165 = vmatpush.msra.mxu0 %v1103
      %1166 = vmatpush.msra.mxu0 %v1102
      %1167 = vmatpush.msra.mxu0 %v1101
      %1168 = vmatpush.msra.mxu0 %v1100
      %1169 = vmatpush.msra.mxu0 %v1099
      %1170 = vmatpush.msra.mxu0 %v1098
      %1171 = vmatpush.msra.mxu0 %v1097
      %1172 = vmatpush.msra.mxu0 %v1096
      %1173 = vmatpush.msra.mxu0 %v1095
      %1174 = vmatpush.msra.mxu0 %v1094
      %1175 = vmatpush.msra.mxu0 %v1093
      %1176 = vmatpush.msra.mxu0 %v1092
      %1177 = vmatpush.msra.mxu0 %v1091
      %1178 = vmatmul.f32.gmra.mxu0 %v1161
      %v1179 = vpop.f32.mrf.mxu0
      %v1180 = vadd.f32 0.0, %v1179
      %1181 = vdwg.mxu0
      %v1182 = vmul.f32 %v1180, 0.015625
      %v1183 = vadd.f32 %v1182, 1e-05
      %v1184 = vrsqrt.pop %v1183
      %v1185 = vmul.f32 %v1184, %v1183
      %v1186 = vmul.f32 %v1185, %v1184
      %v1187 = vmul.f32 0.5, %v1186
      %v1188 = vsub.f32 1.5, %v1187
      %v1189 = vmul.f32 %v1184, %v1188
      %vm1190 = vweird.f32 %v1183
      %vm1191 = vweird.f32 %v1184
      %vm1192 = vmor %vm1190, %vm1191
      %v1193 = vsel %vm1192, %v1184, %v1189
      %v1195 = vsel %vm906, %v1193, 0
      %1197 = vmatpush.msra.mxu0 0.0
      %1198 = vmatpush.msra.mxu0 0.0
      %1199 = vmatpush.msra.mxu0 0.0
      %1200 = vmatpush.msra.mxu0 0.0
      %1201 = vmatpush.msra.mxu0 0.0
      %1202 = vmatpush.msra.mxu0 0.0
      %1203 = vmatpush.msra.mxu0 0.0
      %1204 = vmatpush.msra.mxu0 0.0
      %1205 = vmatpush.msra.mxu0 0.0
      %1206 = vmatpush.msra.mxu0 0.0
      %1207 = vmatpush.msra.mxu0 0.0
      %1208 = vmatpush.msra.mxu0 0.0
      %1209 = vmatpush.msra.mxu0 0.0
      %1210 = vmatpush.msra.mxu0 0.0
      %1211 = vmatpush.msra.mxu0 %v1129
      %1212 = vmatpush.msra.mxu0 %v1128
      %1213 = vmatmul.f32.gmra.mxu0 %v1195
      %v1214 = vpop.f32.mrf.mxu0
      %v1215 = vadd.f32 0.0, %v1214
      %1216 = vdwg.mxu0
      %v1217 = vperm.slane %v1215, 0
      %v1218 = vmul.f32 %v1154, %v1217
      %vm1219 = vcmp.ge.f32.partialorder %v1218, 0.0
      %v1220 = vmul.f32 %v1218, 0.2
      %v1221 = vsel %vm1219, %v1218, %v1220
      %v1222 = vld [vmem:[%s8] sm:$0x7f]
      %v1223 = vld [vmem:[%s9] sm:$0xff]
      %v1224 = vld [vmem:[%s9 + $0x8] sm:$0xff]
      %v1225 = vld [vmem:[%s9 + $0x10] sm:$0xff]
      %v1226 = vld [vmem:[%s9 + $0x18] sm:$0xff]
      %v1227 = vld [vmem:[%s9 + $0x20] sm:$0xff]
      %v1228 = vld [vmem:[%s9 + $0x28] sm:$0xff]
      %v1229 = vld [vmem:[%s9 + $0x30] sm:$0xff]
      %v1230 = vld [vmem:[%s9 + $0x38] sm:$0xff]
      %v1231 = vld [vmem:[%s9 + $0x40] sm:$0xff]
      %v1232 = vld [vmem:[%s9 + $0x48] sm:$0xff]
      %v1233 = vld [vmem:[%s9 + $0x50] sm:$0xff]
      %v1234 = vld [vmem:[%s9 + $0x58] sm:$0xff]
      %v1235 = vld [vmem:[%s9 + $0x60] sm:$0xff]
      %v1236 = vld [vmem:[%s9 + $0x68] sm:$0xff]
      %v1237 = vld [vmem:[%s9 + $0x70] sm:$0xff]
      %v1238 = vld [vmem:[%s9 + $0x78] sm:$0xff]
      %v1239 = vld [vmem:[%s9 + $0x80] sm:$0xff]
      %v1240 = vld [vmem:[%s9 + $0x88] sm:$0xff]
      %v1241 = vld [vmem:[%s9 + $0x90] sm:$0xff]
      %v1242 = vld [vmem:[%s9 + $0x98] sm:$0xff]
      %v1243 = vld [vmem:[%s9 + $0xa0] sm:$0xff]
      %v1244 = vld [vmem:[%s9 + $0xa8] sm:$0xff]
      %v1245 = vld [vmem:[%s9 + $0xb0] sm:$0xff]
      %v1246 = vld [vmem:[%s9 + $0xb8] sm:$0xff]
      %v1247 = vld [vmem:[%s9 + $0xc0] sm:$0xff]
      %v1248 = vld [vmem:[%s9 + $0xc8] sm:$0xff]
      %v1249 = vld [vmem:[%s9 + $0xd0] sm:$0xff]
      %v1250 = vld [vmem:[%s9 + $0xd8] sm:$0xff]
      %v1251 = vld [vmem:[%s9 + $0xe0] sm:$0xff]
      %v1252 = vld [vmem:[%s9 + $0xe8] sm:$0xff]
      %v1253 = vld [vmem:[%s9 + $0xf0] sm:$0xff]
      %v1254 = vld [vmem:[%s9 + $0xf8] sm:$0xff]
      %1255 = vmatpush.msra.mxu0 %v1253
      %1256 = vmatpush.msra.mxu0 %v1251
      %1257 = vmatpush.msra.mxu0 %v1249
      %1258 = vmatpush.msra.mxu0 %v1247
      %1259 = vmatpush.msra.mxu0 %v1245
      %1260 = vmatpush.msra.mxu0 %v1243
      %1261 = vmatpush.msra.mxu0 %v1241
      %1262 = vmatpush.msra.mxu0 %v1239
      %1263 = vmatpush.msra.mxu0 %v1237
      %1264 = vmatpush.msra.mxu0 %v1235
      %1265 = vmatpush.msra.mxu0 %v1233
      %1266 = vmatpush.msra.mxu0 %v1231
      %1267 = vmatpush.msra.mxu0 %v1229
      %1268 = vmatpush.msra.mxu0 %v1227
      %1269 = vmatpush.msra.mxu0 %v1225
      %1270 = vmatpush.msra.mxu0 %v1223
      %1271 = vmatmul.f32.gmra.mxu0 %v1221
      %v1272 = vpop.f32.mrf.mxu0
      %v1273 = vadd.f32 0.0, %v1272
      %1274 = vdwg.mxu0
      %1275 = vmatpush.msra.mxu0 %v1254
      %1276 = vmatpush.msra.mxu0 %v1252
      %1277 = vmatpush.msra.mxu0 %v1250
      %1278 = vmatpush.msra.mxu0 %v1248
      %1279 = vmatpush.msra.mxu0 %v1246
      %1280 = vmatpush.msra.mxu0 %v1244
      %1281 = vmatpush.msra.mxu0 %v1242
      %1282 = vmatpush.msra.mxu0 %v1240
      %1283 = vmatpush.msra.mxu0 %v1238
      %1284 = vmatpush.msra.mxu0 %v1236
      %1285 = vmatpush.msra.mxu0 %v1234
      %1286 = vmatpush.msra.mxu0 %v1232
      %1287 = vmatpush.msra.mxu0 %v1230
      %1288 = vmatpush.msra.mxu0 %v1228
      %1289 = vmatpush.msra.mxu0 %v1226
      %1290 = vmatpush.msra.mxu0 %v1224
      %1291 = vmatmul.f32.gmra.mxu0 %v1221
      %v1292 = vpop.f32.mrf.mxu0
      %v1293 = vadd.f32 0.0, %v1292
      %1294 = vdwg.mxu0
      %s1295 = scalar_lea.vmem %s8, 8
      %v1296 = vld [vmem:[%s1295] sm:$0x7f]
      %s1297 = scalar_lea.vmem %s9, 256
      %v1298 = vld [vmem:[%s1297] sm:$0xff]
      %v1299 = vld [vmem:[%s1297 + $0x8] sm:$0xff]
      %v1300 = vld [vmem:[%s1297 + $0x10] sm:$0xff]
      %v1301 = vld [vmem:[%s1297 + $0x18] sm:$0xff]
      %v1302 = vld [vmem:[%s1297 + $0x20] sm:$0xff]
      %v1303 = vld [vmem:[%s1297 + $0x28] sm:$0xff]
      %v1304 = vld [vmem:[%s1297 + $0x30] sm:$0xff]
      %v1305 = vld [vmem:[%s1297 + $0x38] sm:$0xff]
      %v1306 = vld [vmem:[%s1297 + $0x40] sm:$0xff]
      %v1307 = vld [vmem:[%s1297 + $0x48] sm:$0xff]
      %v1308 = vld [vmem:[%s1297 + $0x50] sm:$0xff]
      %v1309 = vld [vmem:[%s1297 + $0x58] sm:$0xff]
      %v1310 = vld [vmem:[%s1297 + $0x60] sm:$0xff]
      %v1311 = vld [vmem:[%s1297 + $0x68] sm:$0xff]
      %v1312 = vld [vmem:[%s1297 + $0x70] sm:$0xff]
      %v1313 = vld [vmem:[%s1297 + $0x78] sm:$0xff]
      %v1314 = vld [vmem:[%s1297 + $0x80] sm:$0xff]
      %v1315 = vld [vmem:[%s1297 + $0x88] sm:$0xff]
      %v1316 = vld [vmem:[%s1297 + $0x90] sm:$0xff]
      %v1317 = vld [vmem:[%s1297 + $0x98] sm:$0xff]
      %v1318 = vld [vmem:[%s1297 + $0xa0] sm:$0xff]
      %v1319 = vld [vmem:[%s1297 + $0xa8] sm:$0xff]
      %v1320 = vld [vmem:[%s1297 + $0xb0] sm:$0xff]
      %v1321 = vld [vmem:[%s1297 + $0xb8] sm:$0xff]
      %v1322 = vld [vmem:[%s1297 + $0xc0] sm:$0xff]
      %v1323 = vld [vmem:[%s1297 + $0xc8] sm:$0xff]
      %v1324 = vld [vmem:[%s1297 + $0xd0] sm:$0xff]
      %v1325 = vld [vmem:[%s1297 + $0xd8] sm:$0xff]
      %v1326 = vld [vmem:[%s1297 + $0xe0] sm:$0xff]
      %v1327 = vld [vmem:[%s1297 + $0xe8] sm:$0xff]
      %v1328 = vld [vmem:[%s1297 + $0xf0] sm:$0xff]
      %v1329 = vld [vmem:[%s1297 + $0xf8] sm:$0xff]
      %1330 = vmatpush.msra.mxu0 %v1328
      %1331 = vmatpush.msra.mxu0 %v1326
      %1332 = vmatpush.msra.mxu0 %v1324
      %1333 = vmatpush.msra.mxu0 %v1322
      %1334 = vmatpush.msra.mxu0 %v1320
      %1335 = vmatpush.msra.mxu0 %v1318
      %1336 = vmatpush.msra.mxu0 %v1316
      %1337 = vmatpush.msra.mxu0 %v1314
      %1338 = vmatpush.msra.mxu0 %v1312
      %1339 = vmatpush.msra.mxu0 %v1310
      %1340 = vmatpush.msra.mxu0 %v1308
      %1341 = vmatpush.msra.mxu0 %v1306
      %1342 = vmatpush.msra.mxu0 %v1304
      %1343 = vmatpush.msra.mxu0 %v1302
      %1344 = vmatpush.msra.mxu0 %v1300
      %1345 = vmatpush.msra.mxu0 %v1298
      %1346 = vmatmul.f32.gmra.mxu0 %v1221
      %v1347 = vpop.f32.mrf.mxu0
      %v1348 = vadd.f32 0.0, %v1347
      %1349 = vdwg.mxu0
      %1350 = vmatpush.msra.mxu0 %v1329
      %1351 = vmatpush.msra.mxu0 %v1327
      %1352 = vmatpush.msra.mxu0 %v1325
      %1353 = vmatpush.msra.mxu0 %v1323
      %1354 = vmatpush.msra.mxu0 %v1321
      %1355 = vmatpush.msra.mxu0 %v1319
      %1356 = vmatpush.msra.mxu0 %v1317
      %1357 = vmatpush.msra.mxu0 %v1315
      %1358 = vmatpush.msra.mxu0 %v1313
      %1359 = vmatpush.msra.mxu0 %v1311
      %1360 = vmatpush.msra.mxu0 %v1309
      %1361 = vmatpush.msra.mxu0 %v1307
      %1362 = vmatpush.msra.mxu0 %v1305
      %1363 = vmatpush.msra.mxu0 %v1303
      %1364 = vmatpush.msra.mxu0 %v1301
      %1365 = vmatpush.msra.mxu0 %v1299
      %1366 = vmatmul.f32.gmra.mxu0 %v1221
      %v1367 = vpop.f32.mrf.mxu0
      %v1368 = vadd.f32 0.0, %v1367
      %1369 = vdwg.mxu0
      %vm1370 = vcmask 64512
      %v1372 = vsel %vm1370, %v1296, 0
      %1374 = vmatpush.msra.mxu0 0.0
      %1375 = vmatpush.msra.mxu0 0.0
      %1376 = vmatpush.msra.mxu0 0.0
      %1377 = vmatpush.msra.mxu0 0.0
      %1378 = vmatpush.msra.mxu0 0.0
      %1379 = vmatpush.msra.mxu0 0.0
      %1380 = vmatpush.msra.mxu0 0.0
      %1381 = vmatpush.msra.mxu0 0.0
      %1382 = vmatpush.msra.mxu0 0.0
      %1383 = vmatpush.msra.mxu0 0.0
      %1384 = vmatpush.msra.mxu0 0.0
      %1385 = vmatpush.msra.mxu0 0.0
      %1386 = vmatpush.msra.mxu0 0.0
      %1387 = vmatpush.msra.mxu0 0.0
      %1388 = vmatpush.msra.mxu0 0.0
      %1389 = vmatpush.msra.mxu0 %v1348
      %1390 = vmatmul.f32.gmra.mxu0 %v1372
      %v1391 = vpop.f32.mrf.mxu0
      %v1392 = vadd.f32 0.0, %v1391
      %1393 = vdwg.mxu0
      %1394 = vmatpush.msra.mxu0 0.0
      %1395 = vmatpush.msra.mxu0 0.0
      %1396 = vmatpush.msra.mxu0 0.0
      %1397 = vmatpush.msra.mxu0 0.0
      %1398 = vmatpush.msra.mxu0 0.0
      %1399 = vmatpush.msra.mxu0 0.0
      %1400 = vmatpush.msra.mxu0 0.0
      %1401 = vmatpush.msra.mxu0 0.0
      %1402 = vmatpush.msra.mxu0 0.0
      %1403 = vmatpush.msra.mxu0 0.0
      %1404 = vmatpush.msra.mxu0 0.0
      %1405 = vmatpush.msra.mxu0 0.0
      %1406 = vmatpush.msra.mxu0 0.0
      %1407 = vmatpush.msra.mxu0 0.0
      %1408 = vmatpush.msra.mxu0 0.0
      %1409 = vmatpush.msra.mxu0 %v1368
      %1410 = vmatmul.f32.gmra.mxu0 %v1372
      %v1411 = vpop.f32.mrf.mxu0
      %v1412 = vadd.f32 0.0, %v1411
      %1413 = vdwg.mxu0
      %v1415 = vsel %vm1370, %v1222, 0
      %1417 = vmatpush.msra.mxu0 0.0
      %1418 = vmatpush.msra.mxu0 0.0
      %1419 = vmatpush.msra.mxu0 0.0
      %1420 = vmatpush.msra.mxu0 0.0
      %1421 = vmatpush.msra.mxu0 0.0
      %1422 = vmatpush.msra.mxu0 0.0
      %1423 = vmatpush.msra.mxu0 0.0
      %1424 = vmatpush.msra.mxu0 0.0
      %1425 = vmatpush.msra.mxu0 0.0
      %1426 = vmatpush.msra.mxu0 0.0
      %1427 = vmatpush.msra.mxu0 0.0
      %1428 = vmatpush.msra.mxu0 0.0
      %1429 = vmatpush.msra.mxu0 0.0
      %1430 = vmatpush.msra.mxu0 0.0
      %1431 = vmatpush.msra.mxu0 0.0
      %1432 = vmatpush.msra.mxu0 %v1273
      %1433 = vmatmul.f32.gmra.mxu0 %v1415
      %v1434 = vpop.f32.mrf.mxu0
      %v1435 = vadd.f32 %v1392, %v1434
      %1436 = vdwg.mxu0
      %1437 = vmatpush.msra.mxu0 0.0
      %1438 = vmatpush.msra.mxu0 0.0
      %1439 = vmatpush.msra.mxu0 0.0
      %1440 = vmatpush.msra.mxu0 0.0
      %1441 = vmatpush.msra.mxu0 0.0
      %1442 = vmatpush.msra.mxu0 0.0
      %1443 = vmatpush.msra.mxu0 0.0
      %1444 = vmatpush.msra.mxu0 0.0
      %1445 = vmatpush.msra.mxu0 0.0
      %1446 = vmatpush.msra.mxu0 0.0
      %1447 = vmatpush.msra.mxu0 0.0
      %1448 = vmatpush.msra.mxu0 0.0
      %1449 = vmatpush.msra.mxu0 0.0
      %1450 = vmatpush.msra.mxu0 0.0
      %1451 = vmatpush.msra.mxu0 0.0
      %1452 = vmatpush.msra.mxu0 %v1293
      %1453 = vmatmul.f32.gmra.mxu0 %v1415
      %v1454 = vpop.f32.mrf.mxu0
      %v1455 = vadd.f32 %v1412, %v1454
      %1456 = vdwg.mxu0
      %s1457 = scalar_lea.vmem %s8, 16
      %v1458 = vld [vmem:[%s1457] sm:$0x7f]
      %s1459 = scalar_lea.vmem %s9, 512
      %v1460 = vld [vmem:[%s1459] sm:$0xff]
      %v1461 = vld [vmem:[%s1459 + $0x8] sm:$0xff]
      %v1462 = vld [vmem:[%s1459 + $0x10] sm:$0xff]
      %v1463 = vld [vmem:[%s1459 + $0x18] sm:$0xff]
      %v1464 = vld [vmem:[%s1459 + $0x20] sm:$0xff]
      %v1465 = vld [vmem:[%s1459 + $0x28] sm:$0xff]
      %v1466 = vld [vmem:[%s1459 + $0x30] sm:$0xff]
      %v1467 = vld [vmem:[%s1459 + $0x38] sm:$0xff]
      %v1468 = vld [vmem:[%s1459 + $0x40] sm:$0xff]
      %v1469 = vld [vmem:[%s1459 + $0x48] sm:$0xff]
      %v1470 = vld [vmem:[%s1459 + $0x50] sm:$0xff]
      %v1471 = vld [vmem:[%s1459 + $0x58] sm:$0xff]
      %v1472 = vld [vmem:[%s1459 + $0x60] sm:$0xff]
      %v1473 = vld [vmem:[%s1459 + $0x68] sm:$0xff]
      %v1474 = vld [vmem:[%s1459 + $0x70] sm:$0xff]
      %v1475 = vld [vmem:[%s1459 + $0x78] sm:$0xff]
      %v1476 = vld [vmem:[%s1459 + $0x80] sm:$0xff]
      %v1477 = vld [vmem:[%s1459 + $0x88] sm:$0xff]
      %v1478 = vld [vmem:[%s1459 + $0x90] sm:$0xff]
      %v1479 = vld [vmem:[%s1459 + $0x98] sm:$0xff]
      %v1480 = vld [vmem:[%s1459 + $0xa0] sm:$0xff]
      %v1481 = vld [vmem:[%s1459 + $0xa8] sm:$0xff]
      %v1482 = vld [vmem:[%s1459 + $0xb0] sm:$0xff]
      %v1483 = vld [vmem:[%s1459 + $0xb8] sm:$0xff]
      %v1484 = vld [vmem:[%s1459 + $0xc0] sm:$0xff]
      %v1485 = vld [vmem:[%s1459 + $0xc8] sm:$0xff]
      %v1486 = vld [vmem:[%s1459 + $0xd0] sm:$0xff]
      %v1487 = vld [vmem:[%s1459 + $0xd8] sm:$0xff]
      %v1488 = vld [vmem:[%s1459 + $0xe0] sm:$0xff]
      %v1489 = vld [vmem:[%s1459 + $0xe8] sm:$0xff]
      %v1490 = vld [vmem:[%s1459 + $0xf0] sm:$0xff]
      %v1491 = vld [vmem:[%s1459 + $0xf8] sm:$0xff]
      %1492 = vmatpush.msra.mxu0 %v1490
      %1493 = vmatpush.msra.mxu0 %v1488
      %1494 = vmatpush.msra.mxu0 %v1486
      %1495 = vmatpush.msra.mxu0 %v1484
      %1496 = vmatpush.msra.mxu0 %v1482
      %1497 = vmatpush.msra.mxu0 %v1480
      %1498 = vmatpush.msra.mxu0 %v1478
      %1499 = vmatpush.msra.mxu0 %v1476
      %1500 = vmatpush.msra.mxu0 %v1474
      %1501 = vmatpush.msra.mxu0 %v1472
      %1502 = vmatpush.msra.mxu0 %v1470
      %1503 = vmatpush.msra.mxu0 %v1468
      %1504 = vmatpush.msra.mxu0 %v1466
      %1505 = vmatpush.msra.mxu0 %v1464
      %1506 = vmatpush.msra.mxu0 %v1462
      %1507 = vmatpush.msra.mxu0 %v1460
      %1508 = vmatmul.f32.gmra.mxu0 %v1221
      %v1509 = vpop.f32.mrf.mxu0
      %v1510 = vadd.f32 0.0, %v1509
      %1511 = vdwg.mxu0
      %1512 = vmatpush.msra.mxu0 %v1491
      %1513 = vmatpush.msra.mxu0 %v1489
      %1514 = vmatpush.msra.mxu0 %v1487
      %1515 = vmatpush.msra.mxu0 %v1485
      %1516 = vmatpush.msra.mxu0 %v1483
      %1517 = vmatpush.msra.mxu0 %v1481
      %1518 = vmatpush.msra.mxu0 %v1479
      %1519 = vmatpush.msra.mxu0 %v1477
      %1520 = vmatpush.msra.mxu0 %v1475
      %1521 = vmatpush.msra.mxu0 %v1473
      %1522 = vmatpush.msra.mxu0 %v1471
      %1523 = vmatpush.msra.mxu0 %v1469
      %1524 = vmatpush.msra.mxu0 %v1467
      %1525 = vmatpush.msra.mxu0 %v1465
      %1526 = vmatpush.msra.mxu0 %v1463
      %1527 = vmatpush.msra.mxu0 %v1461
      %1528 = vmatmul.f32.gmra.mxu0 %v1221
      %v1529 = vpop.f32.mrf.mxu0
      %v1530 = vadd.f32 0.0, %v1529
      %1531 = vdwg.mxu0
      %v1533 = vsel %vm1370, %v1458, 0
      %1535 = vmatpush.msra.mxu0 0.0
      %1536 = vmatpush.msra.mxu0 0.0
      %1537 = vmatpush.msra.mxu0 0.0
      %1538 = vmatpush.msra.mxu0 0.0
      %1539 = vmatpush.msra.mxu0 0.0
      %1540 = vmatpush.msra.mxu0 0.0
      %1541 = vmatpush.msra.mxu0 0.0
      %1542 = vmatpush.msra.mxu0 0.0
      %1543 = vmatpush.msra.mxu0 0.0
      %1544 = vmatpush.msra.mxu0 0.0
      %1545 = vmatpush.msra.mxu0 0.0
      %1546 = vmatpush.msra.mxu0 0.0
      %1547 = vmatpush.msra.mxu0 0.0
      %1548 = vmatpush.msra.mxu0 0.0
      %1549 = vmatpush.msra.mxu0 0.0
      %1550 = vmatpush.msra.mxu0 %v1510
      %1551 = vmatmul.f32.gmra.mxu0 %v1533
      %v1552 = vpop.f32.mrf.mxu0
      %v1553 = vadd.f32 0.0, %v1552
      %1554 = vdwg.mxu0
      %1555 = vmatpush.msra.mxu0 0.0
      %1556 = vmatpush.msra.mxu0 0.0
      %1557 = vmatpush.msra.mxu0 0.0
      %1558 = vmatpush.msra.mxu0 0.0
      %1559 = vmatpush.msra.mxu0 0.0
      %1560 = vmatpush.msra.mxu0 0.0
      %1561 = vmatpush.msra.mxu0 0.0
      %1562 = vmatpush.msra.mxu0 0.0
      %1563 = vmatpush.msra.mxu0 0.0
      %1564 = vmatpush.msra.mxu0 0.0
      %1565 = vmatpush.msra.mxu0 0.0
      %1566 = vmatpush.msra.mxu0 0.0
      %1567 = vmatpush.msra.mxu0 0.0
      %1568 = vmatpush.msra.mxu0 0.0
      %1569 = vmatpush.msra.mxu0 0.0
      %1570 = vmatpush.msra.mxu0 %v1530
      %1571 = vmatmul.f32.gmra.mxu0 %v1533
      %v1572 = vpop.f32.mrf.mxu0
      %v1573 = vadd.f32 0.0, %v1572
      %1574 = vdwg.mxu0
      %v1575 = vadd.f32 %v1435, %v1553
      %v1576 = vadd.f32 %v1455, %v1573
      %s1577 = scalar_lea.vmem %s8, 24
      %v1578 = vld [vmem:[%s1577] sm:$0x7f]
      %s1579 = scalar_lea.vmem %s9, 768
      %v1580 = vld [vmem:[%s1579] sm:$0xff]
      %v1581 = vld [vmem:[%s1579 + $0x8] sm:$0xff]
      %v1582 = vld [vmem:[%s1579 + $0x10] sm:$0xff]
      %v1583 = vld [vmem:[%s1579 + $0x18] sm:$0xff]
      %v1584 = vld [vmem:[%s1579 + $0x20] sm:$0xff]
      %v1585 = vld [vmem:[%s1579 + $0x28] sm:$0xff]
      %v1586 = vld [vmem:[%s1579 + $0x30] sm:$0xff]
      %v1587 = vld [vmem:[%s1579 + $0x38] sm:$0xff]
      %v1588 = vld [vmem:[%s1579 + $0x40] sm:$0xff]
      %v1589 = vld [vmem:[%s1579 + $0x48] sm:$0xff]
      %v1590 = vld [vmem:[%s1579 + $0x50] sm:$0xff]
      %v1591 = vld [vmem:[%s1579 + $0x58] sm:$0xff]
      %v1592 = vld [vmem:[%s1579 + $0x60] sm:$0xff]
      %v1593 = vld [vmem:[%s1579 + $0x68] sm:$0xff]
      %v1594 = vld [vmem:[%s1579 + $0x70] sm:$0xff]
      %v1595 = vld [vmem:[%s1579 + $0x78] sm:$0xff]
      %v1596 = vld [vmem:[%s1579 + $0x80] sm:$0xff]
      %v1597 = vld [vmem:[%s1579 + $0x88] sm:$0xff]
      %v1598 = vld [vmem:[%s1579 + $0x90] sm:$0xff]
      %v1599 = vld [vmem:[%s1579 + $0x98] sm:$0xff]
      %v1600 = vld [vmem:[%s1579 + $0xa0] sm:$0xff]
      %v1601 = vld [vmem:[%s1579 + $0xa8] sm:$0xff]
      %v1602 = vld [vmem:[%s1579 + $0xb0] sm:$0xff]
      %v1603 = vld [vmem:[%s1579 + $0xb8] sm:$0xff]
      %v1604 = vld [vmem:[%s1579 + $0xc0] sm:$0xff]
      %v1605 = vld [vmem:[%s1579 + $0xc8] sm:$0xff]
      %v1606 = vld [vmem:[%s1579 + $0xd0] sm:$0xff]
      %v1607 = vld [vmem:[%s1579 + $0xd8] sm:$0xff]
      %v1608 = vld [vmem:[%s1579 + $0xe0] sm:$0xff]
      %v1609 = vld [vmem:[%s1579 + $0xe8] sm:$0xff]
      %v1610 = vld [vmem:[%s1579 + $0xf0] sm:$0xff]
      %v1611 = vld [vmem:[%s1579 + $0xf8] sm:$0xff]
      %1612 = vmatpush.msra.mxu0 %v1610
      %1613 = vmatpush.msra.mxu0 %v1608
      %1614 = vmatpush.msra.mxu0 %v1606
      %1615 = vmatpush.msra.mxu0 %v1604
      %1616 = vmatpush.msra.mxu0 %v1602
      %1617 = vmatpush.msra.mxu0 %v1600
      %1618 = vmatpush.msra.mxu0 %v1598
      %1619 = vmatpush.msra.mxu0 %v1596
      %1620 = vmatpush.msra.mxu0 %v1594
      %1621 = vmatpush.msra.mxu0 %v1592
      %1622 = vmatpush.msra.mxu0 %v1590
      %1623 = vmatpush.msra.mxu0 %v1588
      %1624 = vmatpush.msra.mxu0 %v1586
      %1625 = vmatpush.msra.mxu0 %v1584
      %1626 = vmatpush.msra.mxu0 %v1582
      %1627 = vmatpush.msra.mxu0 %v1580
      %1628 = vmatmul.f32.gmra.mxu0 %v1221
      %v1629 = vpop.f32.mrf.mxu0
      %v1630 = vadd.f32 0.0, %v1629
      %1631 = vdwg.mxu0
      %1632 = vmatpush.msra.mxu0 %v1611
      %1633 = vmatpush.msra.mxu0 %v1609
      %1634 = vmatpush.msra.mxu0 %v1607
      %1635 = vmatpush.msra.mxu0 %v1605
      %1636 = vmatpush.msra.mxu0 %v1603
      %1637 = vmatpush.msra.mxu0 %v1601
      %1638 = vmatpush.msra.mxu0 %v1599
      %1639 = vmatpush.msra.mxu0 %v1597
      %1640 = vmatpush.msra.mxu0 %v1595
      %1641 = vmatpush.msra.mxu0 %v1593
      %1642 = vmatpush.msra.mxu0 %v1591
      %1643 = vmatpush.msra.mxu0 %v1589
      %1644 = vmatpush.msra.mxu0 %v1587
      %1645 = vmatpush.msra.mxu0 %v1585
      %1646 = vmatpush.msra.mxu0 %v1583
      %1647 = vmatpush.msra.mxu0 %v1581
      %1648 = vmatmul.f32.gmra.mxu0 %v1221
      %v1649 = vpop.f32.mrf.mxu0
      %v1650 = vadd.f32 0.0, %v1649
      %1651 = vdwg.mxu0
      %v1653 = vsel %vm1370, %v1578, 0
      %1655 = vmatpush.msra.mxu0 0.0
      %1656 = vmatpush.msra.mxu0 0.0
      %1657 = vmatpush.msra.mxu0 0.0
      %1658 = vmatpush.msra.mxu0 0.0
      %1659 = vmatpush.msra.mxu0 0.0
      %1660 = vmatpush.msra.mxu0 0.0
      %1661 = vmatpush.msra.mxu0 0.0
      %1662 = vmatpush.msra.mxu0 0.0
      %1663 = vmatpush.msra.mxu0 0.0
      %1664 = vmatpush.msra.mxu0 0.0
      %1665 = vmatpush.msra.mxu0 0.0
      %1666 = vmatpush.msra.mxu0 0.0
      %1667 = vmatpush.msra.mxu0 0.0
      %1668 = vmatpush.msra.mxu0 0.0
      %1669 = vmatpush.msra.mxu0 0.0
      %1670 = vmatpush.msra.mxu0 %v1630
      %1671 = vmatmul.f32.gmra.mxu0 %v1653
      %v1672 = vpop.f32.mrf.mxu0
      %v1673 = vadd.f32 0.0, %v1672
      %1674 = vdwg.mxu0
      %1675 = vmatpush.msra.mxu0 0.0
      %1676 = vmatpush.msra.mxu0 0.0
      %1677 = vmatpush.msra.mxu0 0.0
      %1678 = vmatpush.msra.mxu0 0.0
      %1679 = vmatpush.msra.mxu0 0.0
      %1680 = vmatpush.msra.mxu0 0.0
      %1681 = vmatpush.msra.mxu0 0.0
      %1682 = vmatpush.msra.mxu0 0.0
      %1683 = vmatpush.msra.mxu0 0.0
      %1684 = vmatpush.msra.mxu0 0.0
      %1685 = vmatpush.msra.mxu0 0.0
      %1686 = vmatpush.msra.mxu0 0.0
      %1687 = vmatpush.msra.mxu0 0.0
      %1688 = vmatpush.msra.mxu0 0.0
      %1689 = vmatpush.msra.mxu0 0.0
      %1690 = vmatpush.msra.mxu0 %v1650
      %1691 = vmatmul.f32.gmra.mxu0 %v1653
      %v1692 = vpop.f32.mrf.mxu0
      %v1693 = vadd.f32 0.0, %v1692
      %1694 = vdwg.mxu0
      %v1695 = vadd.f32 %v1575, %v1673
      %v1696 = vadd.f32 %v1576, %v1693
      %vm1697 = vcmask 1046528
      %v1698 = vsel %vm1697, %v1695, 0.0
      %v1699 = vrot.slane %v1698, 4
      %v1700 = vadd.f32 %v1698, %v1699
      %v1701 = vrot.slane %v1700, 2
      %v1702 = vadd.f32 %v1700, %v1701
      %v1703 = vrot.slane %v1702, 1
      %v1704 = vadd.f32 %v1702, %v1703
      %vm1705 = vcmask 784384
      %v1706 = vsel %vm1705, %v1696, 0.0
      %v1707 = vrot.slane %v1706, 4
      %v1708 = vadd.f32 %v1706, %v1707
      %v1709 = vrot.slane %v1708, 2
      %v1710 = vadd.f32 %v1708, %v1709
      %v1711 = vrot.slane %v1710, 1
      %v1712 = vadd.f32 %v1710, %v1711
      %v1713 = vld [vmem:[%s10] sm:$0xff]
      %v1714 = vld [vmem:[%s10 + $0x8] sm:$0xff]
      %v1715 = vld [vmem:[%s10 + $0x10] sm:$0xff]
      %v1716 = vld [vmem:[%s10 + $0x18] sm:$0xff]
      %v1717 = vld [vmem:[%s10 + $0x20] sm:$0xff]
      %v1718 = vld [vmem:[%s10 + $0x28] sm:$0xff]
      %v1719 = vld [vmem:[%s10 + $0x30] sm:$0xff]
      %v1720 = vld [vmem:[%s10 + $0x38] sm:$0xff]
      %v1721 = vld [vmem:[%s10 + $0x40] sm:$0xff]
      %v1722 = vld [vmem:[%s10 + $0x48] sm:$0xff]
      %v1723 = vld [vmem:[%s10 + $0x50] sm:$0xff]
      %v1724 = vld [vmem:[%s10 + $0x58] sm:$0xff]
      %v1725 = vld [vmem:[%s10 + $0x60] sm:$0xff]
      %v1726 = vld [vmem:[%s10 + $0x68] sm:$0xff]
      %v1727 = vld [vmem:[%s10 + $0x70] sm:$0xff]
      %v1728 = vld [vmem:[%s10 + $0x78] sm:$0xff]
      %v1729 = vld [vmem:[%s10 + $0x80] sm:$0xff]
      %v1730 = vld [vmem:[%s10 + $0x88] sm:$0xff]
      %v1731 = vld [vmem:[%s10 + $0x90] sm:$0xff]
      %v1732 = vld [vmem:[%s10 + $0x98] sm:$0xff]
      %v1733 = vld [vmem:[%s10 + $0xa0] sm:$0xff]
      %v1734 = vld [vmem:[%s10 + $0xa8] sm:$0xff]
      %v1735 = vld [vmem:[%s10 + $0xb0] sm:$0xff]
      %v1736 = vld [vmem:[%s10 + $0xb8] sm:$0xff]
      %v1737 = vld [vmem:[%s10 + $0xc0] sm:$0xff]
      %v1738 = vld [vmem:[%s10 + $0xc8] sm:$0xff]
      %v1739 = vld [vmem:[%s10 + $0xd0] sm:$0xff]
      %v1740 = vld [vmem:[%s10 + $0xd8] sm:$0xff]
      %vm1741 = vcmask 785408
      %v1743 = vsel %vm1741, %v1712, 0
      %1745 = vmatpush.msra.mxu0 %v1728
      %1746 = vmatpush.msra.mxu0 %v1727
      %1747 = vmatpush.msra.mxu0 %v1726
      %1748 = vmatpush.msra.mxu0 %v1725
      %1749 = vmatpush.msra.mxu0 %v1724
      %1750 = vmatpush.msra.mxu0 %v1723
      %1751 = vmatpush.msra.mxu0 %v1722
      %1752 = vmatpush.msra.mxu0 %v1721
      %1753 = vmatpush.msra.mxu0 %v1720
      %1754 = vmatpush.msra.mxu0 %v1719
      %1755 = vmatpush.msra.mxu0 %v1718
      %1756 = vmatpush.msra.mxu0 %v1717
      %1757 = vmatpush.msra.mxu0 %v1716
      %1758 = vmatpush.msra.mxu0 %v1715
      %1759 = vmatpush.msra.mxu0 %v1714
      %1760 = vmatpush.msra.mxu0 %v1713
      %1761 = vmatmul.f32.gmra.mxu0 %v1704
      %v1762 = vpop.f32.mrf.mxu0
      %v1763 = vadd.f32 0.0, %v1762
      %1764 = vdwg.mxu0
      %1765 = vmatpush.msra.mxu0 0.0
      %1766 = vmatpush.msra.mxu0 0.0
      %1767 = vmatpush.msra.mxu0 0.0
      %1768 = vmatpush.msra.mxu0 0.0
      %1769 = vmatpush.msra.mxu0 %v1740
      %1770 = vmatpush.msra.mxu0 %v1739
      %1771 = vmatpush.msra.mxu0 %v1738
      %1772 = vmatpush.msra.mxu0 %v1737
      %1773 = vmatpush.msra.mxu0 %v1736
      %1774 = vmatpush.msra.mxu0 %v1735
      %1775 = vmatpush.msra.mxu0 %v1734
      %1776 = vmatpush.msra.mxu0 %v1733
      %1777 = vmatpush.msra.mxu0 %v1732
      %1778 = vmatpush.msra.mxu0 %v1731
      %1779 = vmatpush.msra.mxu0 %v1730
      %1780 = vmatpush.msra.mxu0 %v1729
      %1781 = vmatmul.f32.gmra.mxu0 %v1743
      %v1782 = vpop.f32.mrf.mxu0
      %v1783 = vadd.f32 %v1763, %v1782
      %1784 = vdwg.mxu0
      %v1785 = vmul.f32 %v1783, 0.020408163
      %v1786 = vld [vmem:[%s11] sm:$0xff]
      %v1787 = vld [vmem:[%s11 + $0x8] sm:$0xff]
      %v1788 = vld [vmem:[%s11 + $0x10] sm:$0xff]
      %v1789 = vld [vmem:[%s11 + $0x18] sm:$0xff]
      %v1790 = vld [vmem:[%s11 + $0x20] sm:$0xff]
      %v1791 = vld [vmem:[%s11 + $0x28] sm:$0xff]
      %v1792 = vld [vmem:[%s11 + $0x30] sm:$0xff]
      %v1793 = vld [vmem:[%s11 + $0x38] sm:$0xff]
      %v1795 = vsel %vm593, %v1785, 0
      %1797 = vmatpush.msra.mxu0 0.0
      %1798 = vmatpush.msra.mxu0 0.0
      %1799 = vmatpush.msra.mxu0 0.0
      %1800 = vmatpush.msra.mxu0 0.0
      %1801 = vmatpush.msra.mxu0 0.0
      %1802 = vmatpush.msra.mxu0 0.0
      %1803 = vmatpush.msra.mxu0 0.0
      %1804 = vmatpush.msra.mxu0 0.0
      %1805 = vmatpush.msra.mxu0 0.0
      %1806 = vmatpush.msra.mxu0 0.0
      %1807 = vmatpush.msra.mxu0 0.0
      %1808 = vmatpush.msra.mxu0 0.0
      %1809 = vmatpush.msra.mxu0 %v1792
      %1810 = vmatpush.msra.mxu0 %v1790
      %1811 = vmatpush.msra.mxu0 %v1788
      %1812 = vmatpush.msra.mxu0 %v1786
      %1813 = vmatmul.f32.gmra.mxu0 %v1795
      %v1814 = vpop.f32.mrf.mxu0
      %v1815 = vadd.f32 0.0, %v1814
      %1816 = vdwg.mxu0
      %1817 = vmatpush.msra.mxu0 0.0
      %1818 = vmatpush.msra.mxu0 0.0
      %1819 = vmatpush.msra.mxu0 0.0
      %1820 = vmatpush.msra.mxu0 0.0
      %1821 = vmatpush.msra.mxu0 0.0
      %1822 = vmatpush.msra.mxu0 0.0
      %1823 = vmatpush.msra.mxu0 0.0
      %1824 = vmatpush.msra.mxu0 0.0
      %1825 = vmatpush.msra.mxu0 0.0
      %1826 = vmatpush.msra.mxu0 0.0
      %1827 = vmatpush.msra.mxu0 0.0
      %1828 = vmatpush.msra.mxu0 0.0
      %1829 = vmatpush.msra.mxu0 %v1793
      %1830 = vmatpush.msra.mxu0 %v1791
      %1831 = vmatpush.msra.mxu0 %v1789
      %1832 = vmatpush.msra.mxu0 %v1787
      %1833 = vmatmul.f32.gmra.mxu0 %v1795
      %v1834 = vpop.f32.mrf.mxu0
      %v1835 = vadd.f32 0.0, %v1834
      %1836 = vdwg.mxu0
      %v1837 = vperm.slane %v1815, 0
      %v1838 = vperm.slane %v1835, 0
      %v1839 = vsub.f32 %v1695, %v1837
      %v1840 = vsub.f32 %v1696, %v1838
      %v1841 = vmul.f32 %v1839, %v1839
      %v1842 = vmul.f32 %v1840, %v1840
      %v1843 = vsel %vm1697, %v1841, 0.0
      %v1844 = vrot.slane %v1843, 4
      %v1845 = vadd.f32 %v1843, %v1844
      %v1846 = vrot.slane %v1845, 2
      %v1847 = vadd.f32 %v1845, %v1846
      %v1848 = vrot.slane %v1847, 1
      %v1849 = vadd.f32 %v1847, %v1848
      %v1850 = vsel %vm1705, %v1842, 0.0
      %v1851 = vrot.slane %v1850, 4
      %v1852 = vadd.f32 %v1850, %v1851
      %v1853 = vrot.slane %v1852, 2
      %v1854 = vadd.f32 %v1852, %v1853
      %v1855 = vrot.slane %v1854, 1
      %v1856 = vadd.f32 %v1854, %v1855
      %v1858 = vsel %vm1741, %v1856, 0
      %1860 = vmatpush.msra.mxu0 %v1728
      %1861 = vmatpush.msra.mxu0 %v1727
      %1862 = vmatpush.msra.mxu0 %v1726
      %1863 = vmatpush.msra.mxu0 %v1725
      %1864 = vmatpush.msra.mxu0 %v1724
      %1865 = vmatpush.msra.mxu0 %v1723
      %1866 = vmatpush.msra.mxu0 %v1722
      %1867 = vmatpush.msra.mxu0 %v1721
      %1868 = vmatpush.msra.mxu0 %v1720
      %1869 = vmatpush.msra.mxu0 %v1719
      %1870 = vmatpush.msra.mxu0 %v1718
      %1871 = vmatpush.msra.mxu0 %v1717
      %1872 = vmatpush.msra.mxu0 %v1716
      %1873 = vmatpush.msra.mxu0 %v1715
      %1874 = vmatpush.msra.mxu0 %v1714
      %1875 = vmatpush.msra.mxu0 %v1713
      %1876 = vmatmul.f32.gmra.mxu0 %v1849
      %v1877 = vpop.f32.mrf.mxu0
      %v1878 = vadd.f32 0.0, %v1877
      %1879 = vdwg.mxu0
      %1880 = vmatpush.msra.mxu0 0.0
      %1881 = vmatpush.msra.mxu0 0.0
      %1882 = vmatpush.msra.mxu0 0.0
      %1883 = vmatpush.msra.mxu0 0.0
      %1884 = vmatpush.msra.mxu0 %v1740
      %1885 = vmatpush.msra.mxu0 %v1739
      %1886 = vmatpush.msra.mxu0 %v1738
      %1887 = vmatpush.msra.mxu0 %v1737
      %1888 = vmatpush.msra.mxu0 %v1736
      %1889 = vmatpush.msra.mxu0 %v1735
      %1890 = vmatpush.msra.mxu0 %v1734
      %1891 = vmatpush.msra.mxu0 %v1733
      %1892 = vmatpush.msra.mxu0 %v1732
      %1893 = vmatpush.msra.mxu0 %v1731
      %1894 = vmatpush.msra.mxu0 %v1730
      %1895 = vmatpush.msra.mxu0 %v1729
      %1896 = vmatmul.f32.gmra.mxu0 %v1858
      %v1897 = vpop.f32.mrf.mxu0
      %v1898 = vadd.f32 %v1878, %v1897
      %1899 = vdwg.mxu0
      %v1900 = vmul.f32 %v1898, 0.020408163
      %v1901 = vadd.f32 %v1900, 1e-05
      %v1902 = vrsqrt.pop %v1901
      %v1903 = vmul.f32 %v1902, %v1901
      %v1904 = vmul.f32 %v1903, %v1902
      %v1905 = vmul.f32 0.5, %v1904
      %v1906 = vsub.f32 1.5, %v1905
      %v1907 = vmul.f32 %v1902, %v1906
      %vm1908 = vweird.f32 %v1901
      %vm1909 = vweird.f32 %v1902
      %vm1910 = vmor %vm1908, %vm1909
      %v1911 = vsel %vm1910, %v1902, %v1907
      %v1913 = vsel %vm593, %v1911, 0
      %1915 = vmatpush.msra.mxu0 0.0
      %1916 = vmatpush.msra.mxu0 0.0
      %1917 = vmatpush.msra.mxu0 0.0
      %1918 = vmatpush.msra.mxu0 0.0
      %1919 = vmatpush.msra.mxu0 0.0
      %1920 = vmatpush.msra.mxu0 0.0
      %1921 = vmatpush.msra.mxu0 0.0
      %1922 = vmatpush.msra.mxu0 0.0
      %1923 = vmatpush.msra.mxu0 0.0
      %1924 = vmatpush.msra.mxu0 0.0
      %1925 = vmatpush.msra.mxu0 0.0
      %1926 = vmatpush.msra.mxu0 0.0
      %1927 = vmatpush.msra.mxu0 %v1792
      %1928 = vmatpush.msra.mxu0 %v1790
      %1929 = vmatpush.msra.mxu0 %v1788
      %1930 = vmatpush.msra.mxu0 %v1786
      %1931 = vmatmul.f32.gmra.mxu0 %v1913
      %v1932 = vpop.f32.mrf.mxu0
      %v1933 = vadd.f32 0.0, %v1932
      %1934 = vdwg.mxu0
      %1935 = vmatpush.msra.mxu0 0.0
      %1936 = vmatpush.msra.mxu0 0.0
      %1937 = vmatpush.msra.mxu0 0.0
      %1938 = vmatpush.msra.mxu0 0.0
      %1939 = vmatpush.msra.mxu0 0.0
      %1940 = vmatpush.msra.mxu0 0.0
      %1941 = vmatpush.msra.mxu0 0.0
      %1942 = vmatpush.msra.mxu0 0.0
      %1943 = vmatpush.msra.mxu0 0.0
      %1944 = vmatpush.msra.mxu0 0.0
      %1945 = vmatpush.msra.mxu0 0.0
      %1946 = vmatpush.msra.mxu0 0.0
      %1947 = vmatpush.msra.mxu0 %v1793
      %1948 = vmatpush.msra.mxu0 %v1791
      %1949 = vmatpush.msra.mxu0 %v1789
      %1950 = vmatpush.msra.mxu0 %v1787
      %1951 = vmatmul.f32.gmra.mxu0 %v1913
      %v1952 = vpop.f32.mrf.mxu0
      %v1953 = vadd.f32 0.0, %v1952
      %1954 = vdwg.mxu0
      %v1955 = vperm.slane %v1933, 0
      %v1956 = vperm.slane %v1953, 0
      %v1957 = vmul.f32 %v1839, %v1955
      %v1958 = vmul.f32 %v1840, %v1956
      %vm1959 = vcmp.ge.f32.partialorder %v1957, 0.0
      %vm1960 = vcmp.ge.f32.partialorder %v1958, 0.0
      %v1961 = vmul.f32 %v1957, 0.2
      %v1962 = vmul.f32 %v1958, 0.2
      %v1963 = vsel %vm1959, %v1957, %v1961
      %v1964 = vsel %vm1960, %v1958, %v1962
      %v1965 = vld [vmem:[%s12] sm:$0x3f]
      %v1966 = vld [vmem:[%s13] sm:$0xff]
      %v1967 = vld [vmem:[%s13 + $0x8] sm:$0xff]
      %v1968 = vld [vmem:[%s13 + $0x10] sm:$0xff]
      %v1969 = vld [vmem:[%s13 + $0x18] sm:$0xff]
      %v1970 = vld [vmem:[%s13 + $0x20] sm:$0xff]
      %v1971 = vld [vmem:[%s13 + $0x28] sm:$0xff]
      %v1972 = vld [vmem:[%s13 + $0x30] sm:$0xff]
      %v1973 = vld [vmem:[%s13 + $0x38] sm:$0xff]
      %v1974 = vld [vmem:[%s13 + $0x40] sm:$0xff]
      %v1975 = vld [vmem:[%s13 + $0x48] sm:$0xff]
      %v1976 = vld [vmem:[%s13 + $0x50] sm:$0xff]
      %v1977 = vld [vmem:[%s13 + $0x58] sm:$0xff]
      %v1978 = vld [vmem:[%s13 + $0x60] sm:$0xff]
      %v1979 = vld [vmem:[%s13 + $0x68] sm:$0xff]
      %v1980 = vld [vmem:[%s13 + $0x70] sm:$0xff]
      %v1981 = vld [vmem:[%s13 + $0x78] sm:$0xff]
      %v1982 = vld [vmem:[%s13 + $0x80] sm:$0xff]
      %v1983 = vld [vmem:[%s13 + $0x88] sm:$0xff]
      %v1984 = vld [vmem:[%s13 + $0x90] sm:$0xff]
      %v1985 = vld [vmem:[%s13 + $0x98] sm:$0xff]
      %v1986 = vld [vmem:[%s13 + $0xa0] sm:$0xff]
      %v1987 = vld [vmem:[%s13 + $0xa8] sm:$0xff]
      %v1988 = vld [vmem:[%s13 + $0xb0] sm:$0xff]
      %v1989 = vld [vmem:[%s13 + $0xb8] sm:$0xff]
      %v1990 = vld [vmem:[%s13 + $0xc0] sm:$0xff]
      %v1991 = vld [vmem:[%s13 + $0xc8] sm:$0xff]
      %v1992 = vld [vmem:[%s13 + $0xd0] sm:$0xff]
      %v1993 = vld [vmem:[%s13 + $0xd8] sm:$0xff]
      %v1995 = vsel %vm1741, %v1964, 0
      %1997 = vmatpush.msra.mxu0 %v1981
      %1998 = vmatpush.msra.mxu0 %v1980
      %1999 = vmatpush.msra.mxu0 %v1979
      %2000 = vmatpush.msra.mxu0 %v1978
      %2001 = vmatpush.msra.mxu0 %v1977
      %2002 = vmatpush.msra.mxu0 %v1976
      %2003 = vmatpush.msra.mxu0 %v1975
      %2004 = vmatpush.msra.mxu0 %v1974
      %2005 = vmatpush.msra.mxu0 %v1973
      %2006 = vmatpush.msra.mxu0 %v1972
      %2007 = vmatpush.msra.mxu0 %v1971
      %2008 = vmatpush.msra.mxu0 %v1970
      %2009 = vmatpush.msra.mxu0 %v1969
      %2010 = vmatpush.msra.mxu0 %v1968
      %2011 = vmatpush.msra.mxu0 %v1967
      %2012 = vmatpush.msra.mxu0 %v1966
      %2013 = vmatmul.f32.gmra.mxu0 %v1963
      %v2014 = vpop.f32.mrf.mxu0
      %v2015 = vadd.f32 0.0, %v2014
      %2016 = vdwg.mxu0
      %2017 = vmatpush.msra.mxu0 0.0
      %2018 = vmatpush.msra.mxu0 0.0
      %2019 = vmatpush.msra.mxu0 0.0
      %2020 = vmatpush.msra.mxu0 0.0
      %2021 = vmatpush.msra.mxu0 %v1993
      %2022 = vmatpush.msra.mxu0 %v1992
      %2023 = vmatpush.msra.mxu0 %v1991
      %2024 = vmatpush.msra.mxu0 %v1990
      %2025 = vmatpush.msra.mxu0 %v1989
      %2026 = vmatpush.msra.mxu0 %v1988
      %2027 = vmatpush.msra.mxu0 %v1987
      %2028 = vmatpush.msra.mxu0 %v1986
      %2029 = vmatpush.msra.mxu0 %v1985
      %2030 = vmatpush.msra.mxu0 %v1984
      %2031 = vmatpush.msra.mxu0 %v1983
      %2032 = vmatpush.msra.mxu0 %v1982
      %2033 = vmatmul.f32.gmra.mxu0 %v1995
      %v2034 = vpop.f32.mrf.mxu0
      %v2035 = vadd.f32 %v2015, %v2034
      %2036 = vdwg.mxu0
      %s2037 = scalar_lea.vmem %s12, 8
      %v2038 = vld [vmem:[%s2037] sm:$0x3f]
      %s2039 = scalar_lea.vmem %s13, 224
      %v2040 = vld [vmem:[%s2039] sm:$0xff]
      %v2041 = vld [vmem:[%s2039 + $0x8] sm:$0xff]
      %v2042 = vld [vmem:[%s2039 + $0x10] sm:$0xff]
      %v2043 = vld [vmem:[%s2039 + $0x18] sm:$0xff]
      %v2044 = vld [vmem:[%s2039 + $0x20] sm:$0xff]
      %v2045 = vld [vmem:[%s2039 + $0x28] sm:$0xff]
      %v2046 = vld [vmem:[%s2039 + $0x30] sm:$0xff]
      %v2047 = vld [vmem:[%s2039 + $0x38] sm:$0xff]
      %v2048 = vld [vmem:[%s2039 + $0x40] sm:$0xff]
      %v2049 = vld [vmem:[%s2039 + $0x48] sm:$0xff]
      %v2050 = vld [vmem:[%s2039 + $0x50] sm:$0xff]
      %v2051 = vld [vmem:[%s2039 + $0x58] sm:$0xff]
      %v2052 = vld [vmem:[%s2039 + $0x60] sm:$0xff]
      %v2053 = vld [vmem:[%s2039 + $0x68] sm:$0xff]
      %v2054 = vld [vmem:[%s2039 + $0x70] sm:$0xff]
      %v2055 = vld [vmem:[%s2039 + $0x78] sm:$0xff]
      %v2056 = vld [vmem:[%s2039 + $0x80] sm:$0xff]
      %v2057 = vld [vmem:[%s2039 + $0x88] sm:$0xff]
      %v2058 = vld [vmem:[%s2039 + $0x90] sm:$0xff]
      %v2059 = vld [vmem:[%s2039 + $0x98] sm:$0xff]
      %v2060 = vld [vmem:[%s2039 + $0xa0] sm:$0xff]
      %v2061 = vld [vmem:[%s2039 + $0xa8] sm:$0xff]
      %v2062 = vld [vmem:[%s2039 + $0xb0] sm:$0xff]
      %v2063 = vld [vmem:[%s2039 + $0xb8] sm:$0xff]
      %v2064 = vld [vmem:[%s2039 + $0xc0] sm:$0xff]
      %v2065 = vld [vmem:[%s2039 + $0xc8] sm:$0xff]
      %v2066 = vld [vmem:[%s2039 + $0xd0] sm:$0xff]
      %v2067 = vld [vmem:[%s2039 + $0xd8] sm:$0xff]
      %2068 = vmatpush.msra.mxu0 %v2055
      %2069 = vmatpush.msra.mxu0 %v2054
      %2070 = vmatpush.msra.mxu0 %v2053
      %2071 = vmatpush.msra.mxu0 %v2052
      %2072 = vmatpush.msra.mxu0 %v2051
      %2073 = vmatpush.msra.mxu0 %v2050
      %2074 = vmatpush.msra.mxu0 %v2049
      %2075 = vmatpush.msra.mxu0 %v2048
      %2076 = vmatpush.msra.mxu0 %v2047
      %2077 = vmatpush.msra.mxu0 %v2046
      %2078 = vmatpush.msra.mxu0 %v2045
      %2079 = vmatpush.msra.mxu0 %v2044
      %2080 = vmatpush.msra.mxu0 %v2043
      %2081 = vmatpush.msra.mxu0 %v2042
      %2082 = vmatpush.msra.mxu0 %v2041
      %2083 = vmatpush.msra.mxu0 %v2040
      %2084 = vmatmul.f32.gmra.mxu0 %v1963
      %v2085 = vpop.f32.mrf.mxu0
      %v2086 = vadd.f32 0.0, %v2085
      %2087 = vdwg.mxu0
      %2088 = vmatpush.msra.mxu0 0.0
      %2089 = vmatpush.msra.mxu0 0.0
      %2090 = vmatpush.msra.mxu0 0.0
      %2091 = vmatpush.msra.mxu0 0.0
      %2092 = vmatpush.msra.mxu0 %v2067
      %2093 = vmatpush.msra.mxu0 %v2066
      %2094 = vmatpush.msra.mxu0 %v2065
      %2095 = vmatpush.msra.mxu0 %v2064
      %2096 = vmatpush.msra.mxu0 %v2063
      %2097 = vmatpush.msra.mxu0 %v2062
      %2098 = vmatpush.msra.mxu0 %v2061
      %2099 = vmatpush.msra.mxu0 %v2060
      %2100 = vmatpush.msra.mxu0 %v2059
      %2101 = vmatpush.msra.mxu0 %v2058
      %2102 = vmatpush.msra.mxu0 %v2057
      %2103 = vmatpush.msra.mxu0 %v2056
      %2104 = vmatmul.f32.gmra.mxu0 %v1995
      %v2105 = vpop.f32.mrf.mxu0
      %v2106 = vadd.f32 %v2086, %v2105
      %2107 = vdwg.mxu0
      %vm2108 = vcmask 56320
      %v2110 = vsel %vm2108, %v2038, 0
      %v2113 = vsel %vm1697, %v2106, 0
      %2115 = vmatpush.msra.mxu0 0.0
      %2116 = vmatpush.msra.mxu0 0.0
      %2117 = vmatpush.msra.mxu0 0.0
      %2118 = vmatpush.msra.mxu0 0.0
      %2119 = vmatpush.msra.mxu0 0.0
      %2120 = vmatpush.msra.mxu0 0.0
      %2121 = vmatpush.msra.mxu0 0.0
      %2122 = vmatpush.msra.mxu0 0.0
      %2123 = vmatpush.msra.mxu0 0.0
      %2124 = vmatpush.msra.mxu0 0.0
      %2125 = vmatpush.msra.mxu0 0.0
      %2126 = vmatpush.msra.mxu0 0.0
      %2127 = vmatpush.msra.mxu0 0.0
      %2128 = vmatpush.msra.mxu0 0.0
      %2129 = vmatpush.msra.mxu0 0.0
      %2130 = vmatpush.msra.mxu0 %v2113
      %2131 = vmatmul.f32.gmra.mxu0 %v2110
      %v2132 = vpop.f32.mrf.mxu0
      %v2133 = vadd.f32 0.0, %v2132
      %2134 = vdwg.mxu0
      %v2136 = vsel %vm2108, %v1965, 0
      %v2139 = vsel %vm1697, %v2035, 0
      %2141 = vmatpush.msra.mxu0 0.0
      %2142 = vmatpush.msra.mxu0 0.0
      %2143 = vmatpush.msra.mxu0 0.0
      %2144 = vmatpush.msra.mxu0 0.0
      %2145 = vmatpush.msra.mxu0 0.0
      %2146 = vmatpush.msra.mxu0 0.0
      %2147 = vmatpush.msra.mxu0 0.0
      %2148 = vmatpush.msra.mxu0 0.0
      %2149 = vmatpush.msra.mxu0 0.0
      %2150 = vmatpush.msra.mxu0 0.0
      %2151 = vmatpush.msra.mxu0 0.0
      %2152 = vmatpush.msra.mxu0 0.0
      %2153 = vmatpush.msra.mxu0 0.0
      %2154 = vmatpush.msra.mxu0 0.0
      %2155 = vmatpush.msra.mxu0 0.0
      %2156 = vmatpush.msra.mxu0 %v2139
      %2157 = vmatmul.f32.gmra.mxu0 %v2136
      %v2158 = vpop.f32.mrf.mxu0
      %v2159 = vadd.f32 %v2133, %v2158
      %2160 = vdwg.mxu0
      %s2161 = scalar_lea.vmem %s12, 16
      %v2162 = vld [vmem:[%s2161] sm:$0x3f]
      %s2163 = scalar_lea.vmem %s13, 448
      %v2164 = vld [vmem:[%s2163] sm:$0xff]
      %v2165 = vld [vmem:[%s2163 + $0x8] sm:$0xff]
      %v2166 = vld [vmem:[%s2163 + $0x10] sm:$0xff]
      %v2167 = vld [vmem:[%s2163 + $0x18] sm:$0xff]
      %v2168 = vld [vmem:[%s2163 + $0x20] sm:$0xff]
      %v2169 = vld [vmem:[%s2163 + $0x28] sm:$0xff]
      %v2170 = vld [vmem:[%s2163 + $0x30] sm:$0xff]
      %v2171 = vld [vmem:[%s2163 + $0x38] sm:$0xff]
      %v2172 = vld [vmem:[%s2163 + $0x40] sm:$0xff]
      %v2173 = vld [vmem:[%s2163 + $0x48] sm:$0xff]
      %v2174 = vld [vmem:[%s2163 + $0x50] sm:$0xff]
      %v2175 = vld [vmem:[%s2163 + $0x58] sm:$0xff]
      %v2176 = vld [vmem:[%s2163 + $0x60] sm:$0xff]
      %v2177 = vld [vmem:[%s2163 + $0x68] sm:$0xff]
      %v2178 = vld [vmem:[%s2163 + $0x70] sm:$0xff]
      %v2179 = vld [vmem:[%s2163 + $0x78] sm:$0xff]
      %v2180 = vld [vmem:[%s2163 + $0x80] sm:$0xff]
      %v2181 = vld [vmem:[%s2163 + $0x88] sm:$0xff]
      %v2182 = vld [vmem:[%s2163 + $0x90] sm:$0xff]
      %v2183 = vld [vmem:[%s2163 + $0x98] sm:$0xff]
      %v2184 = vld [vmem:[%s2163 + $0xa0] sm:$0xff]
      %v2185 = vld [vmem:[%s2163 + $0xa8] sm:$0xff]
      %v2186 = vld [vmem:[%s2163 + $0xb0] sm:$0xff]
      %v2187 = vld [vmem:[%s2163 + $0xb8] sm:$0xff]
      %v2188 = vld [vmem:[%s2163 + $0xc0] sm:$0xff]
      %v2189 = vld [vmem:[%s2163 + $0xc8] sm:$0xff]
      %v2190 = vld [vmem:[%s2163 + $0xd0] sm:$0xff]
      %v2191 = vld [vmem:[%s2163 + $0xd8] sm:$0xff]
      %2192 = vmatpush.msra.mxu0 %v2179
      %2193 = vmatpush.msra.mxu0 %v2178
      %2194 = vmatpush.msra.mxu0 %v2177
      %2195 = vmatpush.msra.mxu0 %v2176
      %2196 = vmatpush.msra.mxu0 %v2175
      %2197 = vmatpush.msra.mxu0 %v2174
      %2198 = vmatpush.msra.mxu0 %v2173
      %2199 = vmatpush.msra.mxu0 %v2172
      %2200 = vmatpush.msra.mxu0 %v2171
      %2201 = vmatpush.msra.mxu0 %v2170
      %2202 = vmatpush.msra.mxu0 %v2169
      %2203 = vmatpush.msra.mxu0 %v2168
      %2204 = vmatpush.msra.mxu0 %v2167
      %2205 = vmatpush.msra.mxu0 %v2166
      %2206 = vmatpush.msra.mxu0 %v2165
      %2207 = vmatpush.msra.mxu0 %v2164
      %2208 = vmatmul.f32.gmra.mxu0 %v1963
      %v2209 = vpop.f32.mrf.mxu0
      %v2210 = vadd.f32 0.0, %v2209
      %2211 = vdwg.mxu0
      %2212 = vmatpush.msra.mxu0 0.0
      %2213 = vmatpush.msra.mxu0 0.0
      %2214 = vmatpush.msra.mxu0 0.0
      %2215 = vmatpush.msra.mxu0 0.0
      %2216 = vmatpush.msra.mxu0 %v2191
      %2217 = vmatpush.msra.mxu0 %v2190
      %2218 = vmatpush.msra.mxu0 %v2189
      %2219 = vmatpush.msra.mxu0 %v2188
      %2220 = vmatpush.msra.mxu0 %v2187
      %2221 = vmatpush.msra.mxu0 %v2186
      %2222 = vmatpush.msra.mxu0 %v2185
      %2223 = vmatpush.msra.mxu0 %v2184
      %2224 = vmatpush.msra.mxu0 %v2183
      %2225 = vmatpush.msra.mxu0 %v2182
      %2226 = vmatpush.msra.mxu0 %v2181
      %2227 = vmatpush.msra.mxu0 %v2180
      %2228 = vmatmul.f32.gmra.mxu0 %v1995
      %v2229 = vpop.f32.mrf.mxu0
      %v2230 = vadd.f32 %v2210, %v2229
      %2231 = vdwg.mxu0
      %v2233 = vsel %vm2108, %v2162, 0
      %v2236 = vsel %vm1697, %v2230, 0
      %2238 = vmatpush.msra.mxu0 0.0
      %2239 = vmatpush.msra.mxu0 0.0
      %2240 = vmatpush.msra.mxu0 0.0
      %2241 = vmatpush.msra.mxu0 0.0
      %2242 = vmatpush.msra.mxu0 0.0
      %2243 = vmatpush.msra.mxu0 0.0
      %2244 = vmatpush.msra.mxu0 0.0
      %2245 = vmatpush.msra.mxu0 0.0
      %2246 = vmatpush.msra.mxu0 0.0
      %2247 = vmatpush.msra.mxu0 0.0
      %2248 = vmatpush.msra.mxu0 0.0
      %2249 = vmatpush.msra.mxu0 0.0
      %2250 = vmatpush.msra.mxu0 0.0
      %2251 = vmatpush.msra.mxu0 0.0
      %2252 = vmatpush.msra.mxu0 0.0
      %2253 = vmatpush.msra.mxu0 %v2236
      %2254 = vmatmul.f32.gmra.mxu0 %v2233
      %v2255 = vpop.f32.mrf.mxu0
      %v2256 = vadd.f32 0.0, %v2255
      %2257 = vdwg.mxu0
      %v2258 = vadd.f32 %v2159, %v2256
      %s2259 = scalar_lea.vmem %s12, 24
      %v2260 = vld [vmem:[%s2259] sm:$0x3f]
      %s2261 = scalar_lea.vmem %s13, 672
      %v2262 = vld [vmem:[%s2261] sm:$0xff]
      %v2263 = vld [vmem:[%s2261 + $0x8] sm:$0xff]
      %v2264 = vld [vmem:[%s2261 + $0x10] sm:$0xff]
      %v2265 = vld [vmem:[%s2261 + $0x18] sm:$0xff]
      %v2266 = vld [vmem:[%s2261 + $0x20] sm:$0xff]
      %v2267 = vld [vmem:[%s2261 + $0x28] sm:$0xff]
      %v2268 = vld [vmem:[%s2261 + $0x30] sm:$0xff]
      %v2269 = vld [vmem:[%s2261 + $0x38] sm:$0xff]
      %v2270 = vld [vmem:[%s2261 + $0x40] sm:$0xff]
      %v2271 = vld [vmem:[%s2261 + $0x48] sm:$0xff]
      %v2272 = vld [vmem:[%s2261 + $0x50] sm:$0xff]
      %v2273 = vld [vmem:[%s2261 + $0x58] sm:$0xff]
      %v2274 = vld [vmem:[%s2261 + $0x60] sm:$0xff]
      %v2275 = vld [vmem:[%s2261 + $0x68] sm:$0xff]
      %v2276 = vld [vmem:[%s2261 + $0x70] sm:$0xff]
      %v2277 = vld [vmem:[%s2261 + $0x78] sm:$0xff]
      %v2278 = vld [vmem:[%s2261 + $0x80] sm:$0xff]
      %v2279 = vld [vmem:[%s2261 + $0x88] sm:$0xff]
      %v2280 = vld [vmem:[%s2261 + $0x90] sm:$0xff]
      %v2281 = vld [vmem:[%s2261 + $0x98] sm:$0xff]
      %v2282 = vld [vmem:[%s2261 + $0xa0] sm:$0xff]
      %v2283 = vld [vmem:[%s2261 + $0xa8] sm:$0xff]
      %v2284 = vld [vmem:[%s2261 + $0xb0] sm:$0xff]
      %v2285 = vld [vmem:[%s2261 + $0xb8] sm:$0xff]
      %v2286 = vld [vmem:[%s2261 + $0xc0] sm:$0xff]
      %v2287 = vld [vmem:[%s2261 + $0xc8] sm:$0xff]
      %v2288 = vld [vmem:[%s2261 + $0xd0] sm:$0xff]
      %v2289 = vld [vmem:[%s2261 + $0xd8] sm:$0xff]
      %2290 = vmatpush.msra.mxu0 %v2277
      %2291 = vmatpush.msra.mxu0 %v2276
      %2292 = vmatpush.msra.mxu0 %v2275
      %2293 = vmatpush.msra.mxu0 %v2274
      %2294 = vmatpush.msra.mxu0 %v2273
      %2295 = vmatpush.msra.mxu0 %v2272
      %2296 = vmatpush.msra.mxu0 %v2271
      %2297 = vmatpush.msra.mxu0 %v2270
      %2298 = vmatpush.msra.mxu0 %v2269
      %2299 = vmatpush.msra.mxu0 %v2268
      %2300 = vmatpush.msra.mxu0 %v2267
      %2301 = vmatpush.msra.mxu0 %v2266
      %2302 = vmatpush.msra.mxu0 %v2265
      %2303 = vmatpush.msra.mxu0 %v2264
      %2304 = vmatpush.msra.mxu0 %v2263
      %2305 = vmatpush.msra.mxu0 %v2262
      %2306 = vmatmul.f32.gmra.mxu0 %v1963
      %v2307 = vpop.f32.mrf.mxu0
      %v2308 = vadd.f32 0.0, %v2307
      %2309 = vdwg.mxu0
      %2310 = vmatpush.msra.mxu0 0.0
      %2311 = vmatpush.msra.mxu0 0.0
      %2312 = vmatpush.msra.mxu0 0.0
      %2313 = vmatpush.msra.mxu0 0.0
      %2314 = vmatpush.msra.mxu0 %v2289
      %2315 = vmatpush.msra.mxu0 %v2288
      %2316 = vmatpush.msra.mxu0 %v2287
      %2317 = vmatpush.msra.mxu0 %v2286
      %2318 = vmatpush.msra.mxu0 %v2285
      %2319 = vmatpush.msra.mxu0 %v2284
      %2320 = vmatpush.msra.mxu0 %v2283
      %2321 = vmatpush.msra.mxu0 %v2282
      %2322 = vmatpush.msra.mxu0 %v2281
      %2323 = vmatpush.msra.mxu0 %v2280
      %2324 = vmatpush.msra.mxu0 %v2279
      %2325 = vmatpush.msra.mxu0 %v2278
      %2326 = vmatmul.f32.gmra.mxu0 %v1995
      %v2327 = vpop.f32.mrf.mxu0
      %v2328 = vadd.f32 %v2308, %v2327
      %2329 = vdwg.mxu0
      %v2331 = vsel %vm2108, %v2260, 0
      %v2334 = vsel %vm1697, %v2328, 0
      %2336 = vmatpush.msra.mxu0 0.0
      %2337 = vmatpush.msra.mxu0 0.0
      %2338 = vmatpush.msra.mxu0 0.0
      %2339 = vmatpush.msra.mxu0 0.0
      %2340 = vmatpush.msra.mxu0 0.0
      %2341 = vmatpush.msra.mxu0 0.0
      %2342 = vmatpush.msra.mxu0 0.0
      %2343 = vmatpush.msra.mxu0 0.0
      %2344 = vmatpush.msra.mxu0 0.0
      %2345 = vmatpush.msra.mxu0 0.0
      %2346 = vmatpush.msra.mxu0 0.0
      %2347 = vmatpush.msra.mxu0 0.0
      %2348 = vmatpush.msra.mxu0 0.0
      %2349 = vmatpush.msra.mxu0 0.0
      %2350 = vmatpush.msra.mxu0 0.0
      %2351 = vmatpush.msra.mxu0 %v2334
      %2352 = vmatmul.f32.gmra.mxu0 %v2331
      %v2353 = vpop.f32.mrf.mxu0
      %v2354 = vadd.f32 0.0, %v2353
      %2355 = vdwg.mxu0
      %v2356 = vadd.f32 %v2258, %v2354
      %v2357 = vld [vmem:[%s14] sm:$0x1]
      %v2359 = vperm.slane %v2357, 0
      %v2361 = vadd.f32 %v2356, %v2359
      %vm2362 = vcmask 46080
      %2363 = vst.msk [vmem:[%s492] sm:$0x3f] %vm2362, %v2361
      %p2364 = scmp.lt.s32.totalorder %s26, 1
      %s2365 = scalar_select %p2364, %s26, 1
      %s2366 = smul.addr %s2365, 8
      %s2367 = scalar_lea.vmem %s15, %s2366
      // Predicated region
      $region81: #{tpu_custom_call.1} parent=79 // pred_check
        %p2368 = pneg %p364
      $region82: #{tpu_custom_call.1} parent=79 // pred_check_branch
        %2370 = sbr.rel (%p2368) target = $region84
      $region83: #{tpu_custom_call.1} parent=79 // pred_region
        _
      $region84: #{tpu_custom_call.1} parent=79 // pred_fallthru
        _
    $region80: #{tpu_custom_call.1} parent=5 // pred_fallthru
      _
    %p2371 = scmp.le.s32.totalorder 2, %s21
    // Predicated region
    $region85: #{tpu_custom_call.1} parent=5 // pred_check
      %p2372 = pneg %p2371
    $region86: #{tpu_custom_call.1} parent=5 // pred_check_branch
      %2374 = sbr.rel (%p2372) target = $region88
    $region87: #{tpu_custom_call.1} parent=5 // pred_region
      %s2375 = ssub.s32 %s21, 2
      // Predicated region
      $region89: #{tpu_custom_call.1} parent=87 // pred_check
        %p2376 = pneg %p370
      $region90: #{tpu_custom_call.1} parent=87 // pred_check_branch
        %2378 = sbr.rel (%p2376) target = $region92
      $region91: #{tpu_custom_call.1} parent=87 // pred_region
        %p2379 = scmp.lt.s32.totalorder %s27, 1
        %s2380 = scalar_select %p2379, %s27, 1
        %s2381 = smul.addr %s2380, 8
        %s2382 = scalar_lea.vmem %s15, %s2381
      $region92: #{tpu_custom_call.1} parent=87 // pred_fallthru
        _
    $region88: #{tpu_custom_call.1} parent=5 // pred_fallthru
      _
  $region6: #{tpu_custom_call.1} parent=0 // loop_footer
    %s25 = sadd.s32 1, %s21
  $region7: #{tpu_custom_call.1} parent=0 // loop_footer_branch
    %20 = sbr.rel target = $region3
  $region8: #{tpu_custom_call.1} parent=0 // loop_exit
    _

</llo_original>
